<compile_context>
chip_gen: v5e
topology: v5e:2x2
jax: 0.10.0
libtpu: 0.0.40
codegen_flags: <defaults>
</compile_context>

<pallas_src>
import functools
import math

import jax
import jax.numpy as jnp
from jax import lax
from jax.experimental import pallas as pl
from jax.experimental.pallas import tpu as pltpu


# ----------------------------------------------------------------------------
# Fused forward kernel (one grid step per batch element)
# ----------------------------------------------------------------------------
def _fused_forward_kernel(
    x_ref, y_ref, bias_enc_ref, bias_dec_ref,
    xw_ref, xb_ref, yw_ref, yb_ref,
    wqkv_ref, wo_ref, w1_ref, b1_ref, w2_ref, b2_ref,
    ow_ref, ob_ref,
    o_ref,
    *, n_head, n_enc_layers, n_dec_layers):
  f32 = jnp.float32
  bf16 = jnp.bfloat16
  H = n_head

  # ---- input projections (node features + global-y conditioning) ----
  x = (jnp.dot(x_ref[0].astype(bf16), xw_ref[...],
               preferred_element_type=f32) + xb_ref[...])          # (N, Dh)
  x = x + (jnp.dot(y_ref[0].astype(bf16), yw_ref[...],
                   preferred_element_type=f32) + yb_ref[...])      # (1, Dh) bcast

  N, Dh = x.shape
  dh = Dh // H

  # ---- encoder + decoder transformer layers (static unroll, VMEM-resident) --
  n_layers = n_enc_layers + n_dec_layers
  for l in range(n_layers):
    bias_ref = bias_enc_ref if l < n_enc_layers else bias_dec_ref
    xb16 = x.astype(bf16)

    # fused QKV projection: one full-width MXU push per layer, single cast.
    qkv = jnp.dot(xb16, wqkv_ref[l], preferred_element_type=f32).astype(bf16)

    heads = []
    for h in range(H):
      qh = qkv[:, h * dh:(h + 1) * dh]                    # (N, dh) bf16
      kh = qkv[:, Dh + h * dh:Dh + (h + 1) * dh]
      vh = qkv[:, 2 * Dh + h * dh:2 * Dh + (h + 1) * dh]
      # q @ k^T without explicit transpose; 1/sqrt(dh) folded into Q weights.
      s = lax.dot_general(qh, kh,
                          dimension_numbers=(((1,), (1,)), ((), ())),
                          preferred_element_type=f32)      # (N, N) f32
      s = s + bias_ref[0, h]
      s = s - s.max(axis=-1, keepdims=True)
      p = jnp.exp(s)
      p = p * pl.reciprocal(p.sum(axis=-1, keepdims=True), approx=True)
      heads.append(jnp.dot(p.astype(bf16), vh,
                           preferred_element_type=f32))    # (N, dh) f32

    # fused output projection: lane-concat heads (XLU), single (N,Dh)@(Dh,Dh).
    oh_all = jnp.concatenate(heads, axis=-1).astype(bf16)  # (N, Dh)
    x = x + jnp.dot(oh_all, wo_ref[l], preferred_element_type=f32)

    # feed-forward MLP with residual
    xb16 = x.astype(bf16)
    hmid = jnp.maximum(
        jnp.dot(xb16, w1_ref[l], preferred_element_type=f32) + b1_ref[l], 0.0)
    x = x + jnp.dot(hmid.astype(bf16), w2_ref[l],
                    preferred_element_type=f32) + b2_ref[l]

  # ---- decoder output projection (model `scale` pre-folded into ow/ob) ----
  # TODO(synk): d_out=4 is lane-sparse; if d_out grows, pad ow/out to 128 lanes
  # and slice in the caller to avoid masked partial stores.
  out = jnp.dot(x.astype(bf16), ow_ref[...],
                preferred_element_type=f32) + ob_ref[...]
  o_ref[0] = out.astype(o_ref.dtype)


def fused_forward(X, y, bias_enc, bias_dec, packed, *, n_head, n_enc_layers,
                  n_dec_layers):
  B, N, d_x_in = X.shape
  (xw, xb, yw, yb, wqkv, wo, w1, b1, w2, b2, ow, ob) = packed

  Dh = xw.shape[1]
  d_y = yw.shape[0]
  Dff = w1.shape[-1]
  d_out = ow.shape[1]
  L = wqkv.shape[0]
  H = n_head

  y3 = y[:, None, :]                                   # (B, 1, d_y)

  # Right-size the VMEM request from the actual resident footprint
  # (2x for double buffering + fixed headroom) instead of asking for 64 MiB.
  def _nbytes(a):
    return a.size * a.dtype.itemsize
  weights = (xw, xb, yw, yb, wqkv, wo, w1, b1, w2, b2, ow, ob)
  per_step = (sum(_nbytes(a) for a in weights)
              + _nbytes(X) // B + _nbytes(y3) // B
              + _nbytes(bias_enc) // B + _nbytes(bias_dec) // B
              + N * d_out * 4)
  vmem_limit = min(int(2 * per_step) + 8 * 1024 * 1024, 48 * 1024 * 1024)

  kernel = functools.partial(
      _fused_forward_kernel, n_head=H, n_enc_layers=n_enc_layers,
      n_dec_layers=n_dec_layers)

  return pl.pallas_call(
      kernel,
      out_shape=jax.ShapeDtypeStruct((B, N, d_out), jnp.float32),
      grid=(B,),
      in_specs=[
          pl.BlockSpec((1, N, d_x_in), lambda b: (b, 0, 0)),      # X
          pl.BlockSpec((1, 1, d_y), lambda b: (b, 0, 0)),         # y
          pl.BlockSpec((1, H, N, N), lambda b: (b, 0, 0, 0)),     # enc bias
          pl.BlockSpec((1, H, N, N), lambda b: (b, 0, 0, 0)),     # dec bias
          pl.BlockSpec((d_x_in, Dh), lambda b: (0, 0)),           # x_in_w
          pl.BlockSpec((1, Dh), lambda b: (0, 0)),                # x_in_b
          pl.BlockSpec((d_y, Dh), lambda b: (0, 0)),              # y_in_w
          pl.BlockSpec((1, Dh), lambda b: (0, 0)),                # y_in_b
          pl.BlockSpec((L, Dh, 3 * Dh), lambda b: (0, 0, 0)),     # fused wqkv
          pl.BlockSpec((L, Dh, Dh), lambda b: (0, 0, 0)),         # wo
          pl.BlockSpec((L, Dh, Dff), lambda b: (0, 0, 0)),        # w1
          pl.BlockSpec((L, 1, Dff), lambda b: (0, 0, 0)),         # b1
          pl.BlockSpec((L, Dff, Dh), lambda b: (0, 0, 0)),        # w2
          pl.BlockSpec((L, 1, Dh), lambda b: (0, 0, 0)),          # b2
          pl.BlockSpec((Dh, d_out), lambda b: (0, 0)),            # out_w*scale
          pl.BlockSpec((1, d_out), lambda b: (0, 0)),             # out_b*scale
      ],
      out_specs=pl.BlockSpec((1, N, d_out), lambda b: (b, 0, 0)),
      compiler_params=pltpu.CompilerParams(
          dimension_semantics=("parallel",),
          vmem_limit_bytes=vmem_limit),
  )(X, y3, bias_enc, bias_dec, xw, xb, yw, yb,
    wqkv, wo, w1, b1, w2, b2, ow, ob)


# ----------------------------------------------------------------------------
# Parameter construction (deterministic, nn.Linear-style uniform init)
# ----------------------------------------------------------------------------
def _dense(key, din, dout):
  kw, kb = jax.random.split(key)
  lim = 1.0 / math.sqrt(din)
  w = jax.random.uniform(kw, (din, dout), jnp.float32, -lim, lim)
  b = jax.random.uniform(kb, (1, dout), jnp.float32, -lim, lim)
  return w, b


def _layer_params(key, d, dff):
  ks = jax.random.split(key, 6)
  lim = 1.0 / math.sqrt(d)
  wq = jax.random.uniform(ks[0], (d, d), jnp.float32, -lim, lim)
  wk = jax.random.uniform(ks[1], (d, d), jnp.float32, -lim, lim)
  wv = jax.random.uniform(ks[2], (d, d), jnp.float32, -lim, lim)
  wo = jax.random.uniform(ks[3], (d, d), jnp.float32, -lim, lim)
  w1, b1 = _dense(ks[4], d, dff)
  w2, b2 = _dense(ks[5], dff, d)
  return dict(wq=wq, wk=wk, wv=wv, wo=wo, w1=w1, b1=b1, w2=w2, b2=b2)


def init_params(key, cfg):
  d_x_in = cfg["supp_d_x"] + cfg["d_raw_x"]
  d_y = cfg["supp_d_y"]
  ecf, dcf = cfg["enc"], cfg["dec"]
  keys = jax.random.split(key, 12)

  enc = dict()
  enc["x_in_w"], enc["x_in_b"] = _dense(keys[0], d_x_in, ecf["hid_dim_X"])
  enc["y_in_w"], enc["y_in_b"] = _dense(keys[1], d_y, ecf["hid_dim_X"])
  enc["e_in_w"], enc["e_in_b"] = _dense(keys[2], ecf["in_dim_E"], ecf["hid_dim_E"])
  enc["e_bias_w"], enc["e_bias_b"] = _dense(keys[3], ecf["hid_dim_E"], ecf["n_head"])
  enc["layers"] = [
      _layer_params(k, ecf["hid_dim_X"], 2 * ecf["hid_dim_X"])
      for k in jax.random.split(keys[4], ecf["n_layers"])
  ]

  dec = dict()
  dec["e_in_w"], dec["e_in_b"] = _dense(keys[5], dcf["in_dim_E"], dcf["hid_dim_E"])
  dec["e_bias_w"], dec["e_bias_b"] = _dense(keys[6], dcf["hid_dim_E"], dcf["n_head"])
  dec["layers"] = [
      _layer_params(k, ecf["hid_dim_X"], 2 * ecf["hid_dim_X"])
      for k in jax.random.split(keys[7], dcf["n_layers"])
  ]
  dec["out_w"], dec["out_b"] = _dense(keys[8], ecf["hid_dim_X"], cfg["d_raw_x"])
  return dict(enc=enc, dec=dec)


# ----------------------------------------------------------------------------
# Pack params into the fused-kernel layout (stacked, bf16 matmul operands)
# ----------------------------------------------------------------------------
def pack_params(params, cfg):
  enc, dec = params["enc"], params["dec"]
  assert cfg["enc"]["n_head"] == cfg["dec"]["n_head"]
  assert cfg["enc"]["hid_dim_X"] == cfg["dec"]["hid_dim_X"]
  H = cfg["enc"]["n_head"]
  Dh = cfg["enc"]["hid_dim_X"]
  dh = Dh // H
  inv_sqrt_dh = 1.0 / math.sqrt(dh)
  layers = enc["layers"] + dec["layers"]
  bf16 = jnp.bfloat16

  # Fused QKV weights (L, Dh, 3*Dh); 1/sqrt(dh) folded into the Q block.
  wqkv = jnp.stack([
      jnp.concatenate([lp["wq"] * inv_sqrt_dh, lp["wk"], lp["wv"]], axis=1)
      for lp in layers]).astype(bf16)
  wo = jnp.stack([lp["wo"] for lp in layers]).astype(bf16)   # (L, Dh, Dh)
  w1 = jnp.stack([lp["w1"] for lp in layers]).astype(bf16)
  b1 = jnp.stack([lp["b1"] for lp in layers])                # f32
  w2 = jnp.stack([lp["w2"] for lp in layers]).astype(bf16)
  b2 = jnp.stack([lp["b2"] for lp in layers])                # f32

  # Fold the model `scale` into the output projection.
  scale = cfg["scale"]
  ow = (dec["out_w"] * scale).astype(bf16)
  ob = dec["out_b"] * scale

  return (enc["x_in_w"].astype(bf16), enc["x_in_b"],
          enc["y_in_w"].astype(bf16), enc["y_in_b"],
          wqkv, wo, w1, b1, w2, b2, ow, ob)


def edge_bias(E, e_in_w, e_bias_w):
  # The two edge linears compose (no nonlinearity between them). The constant
  # term (e_in_b @ e_bias_w + e_bias_b) is uniform over keys per head -> it is
  # a softmax no-op and is dropped.
  # TODO(synk): if the real Encoder/Decoder applies an activation between the
  # edge embedding and the bias projection, compute the bias in two steps.
  w_comb = e_in_w @ e_bias_w                          # (De, H)
  return jnp.einsum("bijc,ch->bhij", E, w_comb)       # (B, H, N, N) f32


# ----------------------------------------------------------------------------
# Forward pass (Encoder -> Decoder), single fused Pallas kernel
# ----------------------------------------------------------------------------
def base_forward(params, X, E, y, cfg):
  packed = pack_params(params, cfg)
  bias_enc = edge_bias(E, params["enc"]["e_in_w"], params["enc"]["e_bias_w"])
  bias_dec = edge_bias(E, params["dec"]["e_in_w"], params["dec"]["e_bias_w"])
  return fused_forward(
      X, y, bias_enc, bias_dec, packed,
      n_head=cfg["enc"]["n_head"],
      n_enc_layers=cfg["enc"]["n_layers"],
      n_dec_layers=cfg["dec"]["n_layers"])


# ----------------------------------------------------------------------------
# Main
# ----------------------------------------------------------------------------
if __name__ == "__main__":
  cfg = dict(
      supp_d_x=4, supp_d_y=4, d_raw_x=4, scale=2.0,
      enc=dict(in_dim_E=4, hid_dim_X=128, hid_dim_E=16, hid_dim_y=16,
               n_layers=2, n_head=4),
      dec=dict(in_dim_E=4, hid_dim_X=128, hid_dim_E=16, hid_dim_y=16,
               n_layers=2, n_head=4),
  )
  B, N = 2, 8
  d_x_in = cfg["supp_d_x"] + cfg["d_raw_x"]

  key = jax.random.PRNGKey(0)
  kp, kx, ke, ky = jax.random.split(key, 4)
  params = init_params(kp, cfg)

  X = jax.random.normal(kx, (B, N, d_x_in), jnp.float32)                     # node feats
  E = jax.random.normal(ke, (B, N, N, cfg["enc"]["in_dim_E"]), jnp.float32)  # edge feats
  y = jax.random.normal(ky, (B, cfg["supp_d_y"]), jnp.float32)               # global feats

  fwd = jax.jit(lambda p, x_, e_, y_: base_forward(p, x_, e_, y_, cfg))
  out = jax.block_until_ready(fwd(params, X, E, y))
  assert out.shape == (B, N, cfg["d_raw_x"])
  assert jnp.all(jnp.isfinite(out))
  print("KERNEL_OK")
</pallas_src>

<mosaic_0001>
module attributes {stable_mosaic.version = 11 : i64} {
  func.func @_fused_forward_kernel(%arg0: i32, %arg1: memref<1x8x8xf32, #tpu.memory_space<vmem>>, %arg2: memref<1x1x4xf32, #tpu.memory_space<vmem>>, %arg3: memref<1x4x8x8xf32, #tpu.memory_space<vmem>>, %arg4: memref<1x4x8x8xf32, #tpu.memory_space<vmem>>, %arg5: memref<8x128xbf16, #tpu.memory_space<vmem>>, %arg6: memref<1x128xf32, #tpu.memory_space<vmem>>, %arg7: memref<4x128xbf16, #tpu.memory_space<vmem>>, %arg8: memref<1x128xf32, #tpu.memory_space<vmem>>, %arg9: memref<4x128x384xbf16, #tpu.memory_space<vmem>>, %arg10: memref<4x128x128xbf16, #tpu.memory_space<vmem>>, %arg11: memref<4x128x256xbf16, #tpu.memory_space<vmem>>, %arg12: memref<4x1x256xf32, #tpu.memory_space<vmem>>, %arg13: memref<4x256x128xbf16, #tpu.memory_space<vmem>>, %arg14: memref<4x1x128xf32, #tpu.memory_space<vmem>>, %arg15: memref<128x4xbf16, #tpu.memory_space<vmem>>, %arg16: memref<1x4xf32, #tpu.memory_space<vmem>>, %arg17: memref<1x8x4xf32, #tpu.memory_space<vmem>>) attributes {dimension_semantics = [#tpu.dimension_semantics<parallel>], iteration_bounds = array<i64: 2>, scalar_prefetch = 0 : i64, scratch_operands = 0 : i64, tpu.core_type = #tpu.core_type<tc>, window_params = [{transform_indices = @transform_0, window_bounds = array<i64: 1, 8, 8>}, {transform_indices = @transform_1, window_bounds = array<i64: 1, 1, 4>}, {transform_indices = @transform_2, window_bounds = array<i64: 1, 4, 8, 8>}, {transform_indices = @transform_3, window_bounds = array<i64: 1, 4, 8, 8>}, {pipeline_mode = #tpu.pipeline_mode<synchronous>, transform_indices = @transform_4, window_bounds = array<i64: 8, 128>}, {pipeline_mode = #tpu.pipeline_mode<synchronous>, transform_indices = @transform_5, window_bounds = array<i64: 1, 128>}, {pipeline_mode = #tpu.pipeline_mode<synchronous>, transform_indices = @transform_6, window_bounds = array<i64: 4, 128>}, {pipeline_mode = #tpu.pipeline_mode<synchronous>, transform_indices = @transform_7, window_bounds = array<i64: 1, 128>}, {pipeline_mode = #tpu.pipeline_mode<synchronous>, transform_indices = @transform_8, window_bounds = array<i64: 4, 128, 384>}, {pipeline_mode = #tpu.pipeline_mode<synchronous>, transform_indices = @transform_9, window_bounds = array<i64: 4, 128, 128>}, {pipeline_mode = #tpu.pipeline_mode<synchronous>, transform_indices = @transform_10, window_bounds = array<i64: 4, 128, 256>}, {pipeline_mode = #tpu.pipeline_mode<synchronous>, transform_indices = @transform_11, window_bounds = array<i64: 4, 1, 256>}, {pipeline_mode = #tpu.pipeline_mode<synchronous>, transform_indices = @transform_12, window_bounds = array<i64: 4, 256, 128>}, {pipeline_mode = #tpu.pipeline_mode<synchronous>, transform_indices = @transform_13, window_bounds = array<i64: 4, 1, 128>}, {pipeline_mode = #tpu.pipeline_mode<synchronous>, transform_indices = @transform_14, window_bounds = array<i64: 128, 4>}, {pipeline_mode = #tpu.pipeline_mode<synchronous>, transform_indices = @transform_15, window_bounds = array<i64: 1, 4>}, {transform_indices = @transform_16, window_bounds = array<i64: 1, 8, 4>}]} {
    %c0 = arith.constant 0 : index
    %c0_0 = arith.constant 0 : index
    %c0_1 = arith.constant 0 : index
    %0 = vector.load %arg1[%c0, %c0_0, %c0_1] : memref<1x8x8xf32, #tpu.memory_space<vmem>>, vector<1x8x8xf32>
    %1 = vector.shape_cast %0 : vector<1x8x8xf32> to vector<8x8xf32>
    %2 = arith.truncf %1 : vector<8x8xf32> to vector<8x8xbf16>
    %c0_2 = arith.constant 0 : index
    %c0_3 = arith.constant 0 : index
    %3 = vector.load %arg5[%c0_2, %c0_3] : memref<8x128xbf16, #tpu.memory_space<vmem>>, vector<8x128xbf16>
    %cst = arith.constant dense<0.000000e+00> : vector<8x128xf32>
    %4 = tpu.matmul %2, %3, %cst {dimension_numbers = #tpu.dot_dimension_numbers<[1], [0], [0], [1], [0, 0, 1, 1], [], []>} : vector<8x8xbf16>, vector<8x128xbf16>, vector<8x128xf32> -> vector<8x128xf32>
    %c0_4 = arith.constant 0 : index
    %c0_5 = arith.constant 0 : index
    %5 = vector.load %arg6[%c0_4, %c0_5] : memref<1x128xf32, #tpu.memory_space<vmem>>, vector<1x128xf32>
    %6 = vector.broadcast %5 : vector<1x128xf32> to vector<8x128xf32>
    %7 = arith.addf %4, %6 : vector<8x128xf32>
    %c0_6 = arith.constant 0 : index
    %c0_7 = arith.constant 0 : index
    %c0_8 = arith.constant 0 : index
    %8 = vector.load %arg2[%c0_6, %c0_7, %c0_8] : memref<1x1x4xf32, #tpu.memory_space<vmem>>, vector<1x1x4xf32>
    %9 = vector.shape_cast %8 : vector<1x1x4xf32> to vector<1x4xf32>
    %10 = arith.truncf %9 : vector<1x4xf32> to vector<1x4xbf16>
    %c0_9 = arith.constant 0 : index
    %c0_10 = arith.constant 0 : index
    %11 = vector.load %arg7[%c0_9, %c0_10] : memref<4x128xbf16, #tpu.memory_space<vmem>>, vector<4x128xbf16>
    %cst_11 = arith.constant dense<0.000000e+00> : vector<1x128xf32>
    %12 = tpu.matmul %10, %11, %cst_11 {dimension_numbers = #tpu.dot_dimension_numbers<[1], [0], [0], [1], [0, 0, 1, 1], [], []>} : vector<1x4xbf16>, vector<4x128xbf16>, vector<1x128xf32> -> vector<1x128xf32>
    %c0_12 = arith.constant 0 : index
    %c0_13 = arith.constant 0 : index
    %13 = vector.load %arg8[%c0_12, %c0_13] : memref<1x128xf32, #tpu.memory_space<vmem>>, vector<1x128xf32>
    %14 = arith.addf %12, %13 : vector<1x128xf32>
    %15 = vector.broadcast %14 : vector<1x128xf32> to vector<8x128xf32>
    %16 = arith.addf %7, %15 : vector<8x128xf32>
    %17 = arith.truncf %16 : vector<8x128xf32> to vector<8x128xbf16>
    %c0_14 = arith.constant 0 : index
    %c0_15 = arith.constant 0 : index
    %c0_16 = arith.constant 0 : index
    %18 = vector.load %arg9[%c0_14, %c0_15, %c0_16] : memref<4x128x384xbf16, #tpu.memory_space<vmem>>, vector<1x128x384xbf16>
    %19 = vector.shape_cast %18 : vector<1x128x384xbf16> to vector<128x384xbf16>
    %cst_17 = arith.constant dense<0.000000e+00> : vector<8x384xf32>
    %20 = tpu.matmul %17, %19, %cst_17 {dimension_numbers = #tpu.dot_dimension_numbers<[1], [0], [0], [1], [0, 0, 1, 1], [], []>} : vector<8x128xbf16>, vector<128x384xbf16>, vector<8x384xf32> -> vector<8x384xf32>
    %21 = arith.truncf %20 : vector<8x384xf32> to vector<8x384xbf16>
    %22 = vector.extract_strided_slice %21 {offsets = [0, 0], sizes = [8, 32], strides = [1, 1]} : vector<8x384xbf16> to vector<8x32xbf16>
    %23 = vector.extract_strided_slice %21 {offsets = [0, 128], sizes = [8, 32], strides = [1, 1]} : vector<8x384xbf16> to vector<8x32xbf16>
    %24 = vector.extract_strided_slice %21 {offsets = [0, 256], sizes = [8, 32], strides = [1, 1]} : vector<8x384xbf16> to vector<8x32xbf16>
    %cst_18 = arith.constant dense<0.000000e+00> : vector<8x8xf32>
    %25 = tpu.matmul %22, %23, %cst_18 {dimension_numbers = #tpu.dot_dimension_numbers<[1], [1], [0], [0], [0, 0, 1, 0], [], []>} : vector<8x32xbf16>, vector<8x32xbf16>, vector<8x8xf32> -> vector<8x8xf32>
    %c0_19 = arith.constant 0 : index
    %c0_20 = arith.constant 0 : index
    %c0_21 = arith.constant 0 : index
    %c0_22 = arith.constant 0 : index
    %26 = vector.load %arg3[%c0_19, %c0_20, %c0_21, %c0_22] : memref<1x4x8x8xf32, #tpu.memory_space<vmem>>, vector<1x1x8x8xf32>
    %27 = vector.shape_cast %26 : vector<1x1x8x8xf32> to vector<8x8xf32>
    %28 = arith.addf %25, %27 : vector<8x8xf32>
    %cst_23 = arith.constant dense<0xFF800000> : vector<8xf32>
    %29 = vector.multi_reduction <maximumf>, %28, %cst_23 [1] : vector<8x8xf32> to vector<8xf32>
    %30 = vector.shape_cast %29 : vector<8xf32> to vector<8x1xf32>
    %31 = vector.broadcast %30 : vector<8x1xf32> to vector<8x8xf32>
    %32 = arith.subf %28, %31 : vector<8x8xf32>
    %33 = math.exp %32 : vector<8x8xf32>
    %cst_24 = arith.constant dense<0.000000e+00> : vector<8xf32>
    %34 = vector.multi_reduction <add>, %33, %cst_24 [1] : vector<8x8xf32> to vector<8xf32>
    %35 = vector.shape_cast %34 : vector<8xf32> to vector<8x1xf32>
    %36 = tpu.reciprocal %35 {approx = true} : vector<8x1xf32> -> vector<8x1xf32>
    %37 = vector.broadcast %36 : vector<8x1xf32> to vector<8x8xf32>
    %38 = arith.mulf %33, %37 : vector<8x8xf32>
    %39 = arith.truncf %38 : vector<8x8xf32> to vector<8x8xbf16>
    %cst_25 = arith.constant dense<0.000000e+00> : vector<8x32xf32>
    %40 = tpu.matmul %39, %24, %cst_25 {dimension_numbers = #tpu.dot_dimension_numbers<[1], [0], [0], [1], [0, 0, 1, 1], [], []>} : vector<8x8xbf16>, vector<8x32xbf16>, vector<8x32xf32> -> vector<8x32xf32>
    %41 = vector.extract_strided_slice %21 {offsets = [0, 32], sizes = [8, 32], strides = [1, 1]} : vector<8x384xbf16> to vector<8x32xbf16>
    %42 = vector.extract_strided_slice %21 {offsets = [0, 160], sizes = [8, 32], strides = [1, 1]} : vector<8x384xbf16> to vector<8x32xbf16>
    %43 = vector.extract_strided_slice %21 {offsets = [0, 288], sizes = [8, 32], strides = [1, 1]} : vector<8x384xbf16> to vector<8x32xbf16>
    %cst_26 = arith.constant dense<0.000000e+00> : vector<8x8xf32>
    %44 = tpu.matmul %41, %42, %cst_26 {dimension_numbers = #tpu.dot_dimension_numbers<[1], [1], [0], [0], [0, 0, 1, 0], [], []>} : vector<8x32xbf16>, vector<8x32xbf16>, vector<8x8xf32> -> vector<8x8xf32>
    %c0_27 = arith.constant 0 : index
    %c1 = arith.constant 1 : index
    %c0_28 = arith.constant 0 : index
    %c0_29 = arith.constant 0 : index
    %45 = vector.load %arg3[%c0_27, %c1, %c0_28, %c0_29] : memref<1x4x8x8xf32, #tpu.memory_space<vmem>>, vector<1x1x8x8xf32>
    %46 = vector.shape_cast %45 : vector<1x1x8x8xf32> to vector<8x8xf32>
    %47 = arith.addf %44, %46 : vector<8x8xf32>
    %cst_30 = arith.constant dense<0xFF800000> : vector<8xf32>
    %48 = vector.multi_reduction <maximumf>, %47, %cst_30 [1] : vector<8x8xf32> to vector<8xf32>
    %49 = vector.shape_cast %48 : vector<8xf32> to vector<8x1xf32>
    %50 = vector.broadcast %49 : vector<8x1xf32> to vector<8x8xf32>
    %51 = arith.subf %47, %50 : vector<8x8xf32>
    %52 = math.exp %51 : vector<8x8xf32>
    %cst_31 = arith.constant dense<0.000000e+00> : vector<8xf32>
    %53 = vector.multi_reduction <add>, %52, %cst_31 [1] : vector<8x8xf32> to vector<8xf32>
    %54 = vector.shape_cast %53 : vector<8xf32> to vector<8x1xf32>
    %55 = tpu.reciprocal %54 {approx = true} : vector<8x1xf32> -> vector<8x1xf32>
    %56 = vector.broadcast %55 : vector<8x1xf32> to vector<8x8xf32>
    %57 = arith.mulf %52, %56 : vector<8x8xf32>
    %58 = arith.truncf %57 : vector<8x8xf32> to vector<8x8xbf16>
    %cst_32 = arith.constant dense<0.000000e+00> : vector<8x32xf32>
    %59 = tpu.matmul %58, %43, %cst_32 {dimension_numbers = #tpu.dot_dimension_numbers<[1], [0], [0], [1], [0, 0, 1, 1], [], []>} : vector<8x8xbf16>, vector<8x32xbf16>, vector<8x32xf32> -> vector<8x32xf32>
    %60 = vector.extract_strided_slice %21 {offsets = [0, 64], sizes = [8, 32], strides = [1, 1]} : vector<8x384xbf16> to vector<8x32xbf16>
    %61 = vector.extract_strided_slice %21 {offsets = [0, 192], sizes = [8, 32], strides = [1, 1]} : vector<8x384xbf16> to vector<8x32xbf16>
    %62 = vector.extract_strided_slice %21 {offsets = [0, 320], sizes = [8, 32], strides = [1, 1]} : vector<8x384xbf16> to vector<8x32xbf16>
    %cst_33 = arith.constant dense<0.000000e+00> : vector<8x8xf32>
    %63 = tpu.matmul %60, %61, %cst_33 {dimension_numbers = #tpu.dot_dimension_numbers<[1], [1], [0], [0], [0, 0, 1, 0], [], []>} : vector<8x32xbf16>, vector<8x32xbf16>, vector<8x8xf32> -> vector<8x8xf32>
    %c0_34 = arith.constant 0 : index
    %c2 = arith.constant 2 : index
    %c0_35 = arith.constant 0 : index
    %c0_36 = arith.constant 0 : index
    %64 = vector.load %arg3[%c0_34, %c2, %c0_35, %c0_36] : memref<1x4x8x8xf32, #tpu.memory_space<vmem>>, vector<1x1x8x8xf32>
    %65 = vector.shape_cast %64 : vector<1x1x8x8xf32> to vector<8x8xf32>
    %66 = arith.addf %63, %65 : vector<8x8xf32>
    %cst_37 = arith.constant dense<0xFF800000> : vector<8xf32>
    %67 = vector.multi_reduction <maximumf>, %66, %cst_37 [1] : vector<8x8xf32> to vector<8xf32>
    %68 = vector.shape_cast %67 : vector<8xf32> to vector<8x1xf32>
    %69 = vector.broadcast %68 : vector<8x1xf32> to vector<8x8xf32>
    %70 = arith.subf %66, %69 : vector<8x8xf32>
    %71 = math.exp %70 : vector<8x8xf32>
    %cst_38 = arith.constant dense<0.000000e+00> : vector<8xf32>
    %72 = vector.multi_reduction <add>, %71, %cst_38 [1] : vector<8x8xf32> to vector<8xf32>
    %73 = vector.shape_cast %72 : vector<8xf32> to vector<8x1xf32>
    %74 = tpu.reciprocal %73 {approx = true} : vector<8x1xf32> -> vector<8x1xf32>
    %75 = vector.broadcast %74 : vector<8x1xf32> to vector<8x8xf32>
    %76 = arith.mulf %71, %75 : vector<8x8xf32>
    %77 = arith.truncf %76 : vector<8x8xf32> to vector<8x8xbf16>
    %cst_39 = arith.constant dense<0.000000e+00> : vector<8x32xf32>
    %78 = tpu.matmul %77, %62, %cst_39 {dimension_numbers = #tpu.dot_dimension_numbers<[1], [0], [0], [1], [0, 0, 1, 1], [], []>} : vector<8x8xbf16>, vector<8x32xbf16>, vector<8x32xf32> -> vector<8x32xf32>
    %79 = vector.extract_strided_slice %21 {offsets = [0, 96], sizes = [8, 32], strides = [1, 1]} : vector<8x384xbf16> to vector<8x32xbf16>
    %80 = vector.extract_strided_slice %21 {offsets = [0, 224], sizes = [8, 32], strides = [1, 1]} : vector<8x384xbf16> to vector<8x32xbf16>
    %81 = vector.extract_strided_slice %21 {offsets = [0, 352], sizes = [8, 32], strides = [1, 1]} : vector<8x384xbf16> to vector<8x32xbf16>
    %cst_40 = arith.constant dense<0.000000e+00> : vector<8x8xf32>
    %82 = tpu.matmul %79, %80, %cst_40 {dimension_numbers = #tpu.dot_dimension_numbers<[1], [1], [0], [0], [0, 0, 1, 0], [], []>} : vector<8x32xbf16>, vector<8x32xbf16>, vector<8x8xf32> -> vector<8x8xf32>
    %c0_41 = arith.constant 0 : index
    %c3 = arith.constant 3 : index
    %c0_42 = arith.constant 0 : index
    %c0_43 = arith.constant 0 : index
    %83 = vector.load %arg3[%c0_41, %c3, %c0_42, %c0_43] : memref<1x4x8x8xf32, #tpu.memory_space<vmem>>, vector<1x1x8x8xf32>
    %84 = vector.shape_cast %83 : vector<1x1x8x8xf32> to vector<8x8xf32>
    %85 = arith.addf %82, %84 : vector<8x8xf32>
    %cst_44 = arith.constant dense<0xFF800000> : vector<8xf32>
    %86 = vector.multi_reduction <maximumf>, %85, %cst_44 [1] : vector<8x8xf32> to vector<8xf32>
    %87 = vector.shape_cast %86 : vector<8xf32> to vector<8x1xf32>
    %88 = vector.broadcast %87 : vector<8x1xf32> to vector<8x8xf32>
    %89 = arith.subf %85, %88 : vector<8x8xf32>
    %90 = math.exp %89 : vector<8x8xf32>
    %cst_45 = arith.constant dense<0.000000e+00> : vector<8xf32>
    %91 = vector.multi_reduction <add>, %90, %cst_45 [1] : vector<8x8xf32> to vector<8xf32>
    %92 = vector.shape_cast %91 : vector<8xf32> to vector<8x1xf32>
    %93 = tpu.reciprocal %92 {approx = true} : vector<8x1xf32> -> vector<8x1xf32>
    %94 = vector.broadcast %93 : vector<8x1xf32> to vector<8x8xf32>
    %95 = arith.mulf %90, %94 : vector<8x8xf32>
    %96 = arith.truncf %95 : vector<8x8xf32> to vector<8x8xbf16>
    %cst_46 = arith.constant dense<0.000000e+00> : vector<8x32xf32>
    %97 = tpu.matmul %96, %81, %cst_46 {dimension_numbers = #tpu.dot_dimension_numbers<[1], [0], [0], [1], [0, 0, 1, 1], [], []>} : vector<8x8xbf16>, vector<8x32xbf16>, vector<8x32xf32> -> vector<8x32xf32>
    %98 = tpu.concatenate %40, %59, %78, %97 in 1 : vector<8x32xf32>, vector<8x32xf32>, vector<8x32xf32>, vector<8x32xf32> -> vector<8x128xf32>
    %99 = arith.truncf %98 : vector<8x128xf32> to vector<8x128xbf16>
    %c0_47 = arith.constant 0 : index
    %c0_48 = arith.constant 0 : index
    %c0_49 = arith.constant 0 : index
    %100 = vector.load %arg10[%c0_47, %c0_48, %c0_49] : memref<4x128x128xbf16, #tpu.memory_space<vmem>>, vector<1x128x128xbf16>
    %101 = vector.shape_cast %100 : vector<1x128x128xbf16> to vector<128x128xbf16>
    %cst_50 = arith.constant dense<0.000000e+00> : vector<8x128xf32>
    %102 = tpu.matmul %99, %101, %cst_50 {dimension_numbers = #tpu.dot_dimension_numbers<[1], [0], [0], [1], [0, 0, 1, 1], [], []>} : vector<8x128xbf16>, vector<128x128xbf16>, vector<8x128xf32> -> vector<8x128xf32>
    %103 = arith.addf %16, %102 : vector<8x128xf32>
    %104 = arith.truncf %103 : vector<8x128xf32> to vector<8x128xbf16>
    %c0_51 = arith.constant 0 : index
    %c0_52 = arith.constant 0 : index
    %c0_53 = arith.constant 0 : index
    %105 = vector.load %arg11[%c0_51, %c0_52, %c0_53] : memref<4x128x256xbf16, #tpu.memory_space<vmem>>, vector<1x128x256xbf16>
    %106 = vector.shape_cast %105 : vector<1x128x256xbf16> to vector<128x256xbf16>
    %cst_54 = arith.constant dense<0.000000e+00> : vector<8x256xf32>
    %107 = tpu.matmul %104, %106, %cst_54 {dimension_numbers = #tpu.dot_dimension_numbers<[1], [0], [0], [1], [0, 0, 1, 1], [], []>} : vector<8x128xbf16>, vector<128x256xbf16>, vector<8x256xf32> -> vector<8x256xf32>
    %c0_55 = arith.constant 0 : index
    %c0_56 = arith.constant 0 : index
    %c0_57 = arith.constant 0 : index
    %108 = vector.load %arg12[%c0_55, %c0_56, %c0_57] : memref<4x1x256xf32, #tpu.memory_space<vmem>>, vector<1x1x256xf32>
    %109 = vector.shape_cast %108 : vector<1x1x256xf32> to vector<1x256xf32>
    %110 = vector.broadcast %109 : vector<1x256xf32> to vector<8x256xf32>
    %111 = arith.addf %107, %110 : vector<8x256xf32>
    %cst_58 = arith.constant 0.000000e+00 : f32
    %112 = vector.broadcast %cst_58 : f32 to vector<8x256xf32>
    %113 = arith.maximumf %111, %112 : vector<8x256xf32>
    %114 = arith.truncf %113 : vector<8x256xf32> to vector<8x256xbf16>
    %c0_59 = arith.constant 0 : index
    %c0_60 = arith.constant 0 : index
    %c0_61 = arith.constant 0 : index
    %115 = vector.load %arg13[%c0_59, %c0_60, %c0_61] : memref<4x256x128xbf16, #tpu.memory_space<vmem>>, vector<1x256x128xbf16>
    %116 = vector.shape_cast %115 : vector<1x256x128xbf16> to vector<256x128xbf16>
    %cst_62 = arith.constant dense<0.000000e+00> : vector<8x128xf32>
    %117 = tpu.matmul %114, %116, %cst_62 {dimension_numbers = #tpu.dot_dimension_numbers<[1], [0], [0], [1], [0, 0, 1, 1], [], []>} : vector<8x256xbf16>, vector<256x128xbf16>, vector<8x128xf32> -> vector<8x128xf32>
    %118 = arith.addf %103, %117 : vector<8x128xf32>
    %c0_63 = arith.constant 0 : index
    %c0_64 = arith.constant 0 : index
    %c0_65 = arith.constant 0 : index
    %119 = vector.load %arg14[%c0_63, %c0_64, %c0_65] : memref<4x1x128xf32, #tpu.memory_space<vmem>>, vector<1x1x128xf32>
    %120 = vector.shape_cast %119 : vector<1x1x128xf32> to vector<1x128xf32>
    %121 = vector.broadcast %120 : vector<1x128xf32> to vector<8x128xf32>
    %122 = arith.addf %118, %121 : vector<8x128xf32>
    %123 = arith.truncf %122 : vector<8x128xf32> to vector<8x128xbf16>
    %c1_66 = arith.constant 1 : index
    %c0_67 = arith.constant 0 : index
    %c0_68 = arith.constant 0 : index
    %124 = vector.load %arg9[%c1_66, %c0_67, %c0_68] : memref<4x128x384xbf16, #tpu.memory_space<vmem>>, vector<1x128x384xbf16>
    %125 = vector.shape_cast %124 : vector<1x128x384xbf16> to vector<128x384xbf16>
    %cst_69 = arith.constant dense<0.000000e+00> : vector<8x384xf32>
    %126 = tpu.matmul %123, %125, %cst_69 {dimension_numbers = #tpu.dot_dimension_numbers<[1], [0], [0], [1], [0, 0, 1, 1], [], []>} : vector<8x128xbf16>, vector<128x384xbf16>, vector<8x384xf32> -> vector<8x384xf32>
    %127 = arith.truncf %126 : vector<8x384xf32> to vector<8x384xbf16>
    %128 = vector.extract_strided_slice %127 {offsets = [0, 0], sizes = [8, 32], strides = [1, 1]} : vector<8x384xbf16> to vector<8x32xbf16>
    %129 = vector.extract_strided_slice %127 {offsets = [0, 128], sizes = [8, 32], strides = [1, 1]} : vector<8x384xbf16> to vector<8x32xbf16>
    %130 = vector.extract_strided_slice %127 {offsets = [0, 256], sizes = [8, 32], strides = [1, 1]} : vector<8x384xbf16> to vector<8x32xbf16>
    %cst_70 = arith.constant dense<0.000000e+00> : vector<8x8xf32>
    %131 = tpu.matmul %128, %129, %cst_70 {dimension_numbers = #tpu.dot_dimension_numbers<[1], [1], [0], [0], [0, 0, 1, 0], [], []>} : vector<8x32xbf16>, vector<8x32xbf16>, vector<8x8xf32> -> vector<8x8xf32>
    %c0_71 = arith.constant 0 : index
    %c0_72 = arith.constant 0 : index
    %c0_73 = arith.constant 0 : index
    %c0_74 = arith.constant 0 : index
    %132 = vector.load %arg3[%c0_71, %c0_72, %c0_73, %c0_74] : memref<1x4x8x8xf32, #tpu.memory_space<vmem>>, vector<1x1x8x8xf32>
    %133 = vector.shape_cast %132 : vector<1x1x8x8xf32> to vector<8x8xf32>
    %134 = arith.addf %131, %133 : vector<8x8xf32>
    %cst_75 = arith.constant dense<0xFF800000> : vector<8xf32>
    %135 = vector.multi_reduction <maximumf>, %134, %cst_75 [1] : vector<8x8xf32> to vector<8xf32>
    %136 = vector.shape_cast %135 : vector<8xf32> to vector<8x1xf32>
    %137 = vector.broadcast %136 : vector<8x1xf32> to vector<8x8xf32>
    %138 = arith.subf %134, %137 : vector<8x8xf32>
    %139 = math.exp %138 : vector<8x8xf32>
    %cst_76 = arith.constant dense<0.000000e+00> : vector<8xf32>
    %140 = vector.multi_reduction <add>, %139, %cst_76 [1] : vector<8x8xf32> to vector<8xf32>
    %141 = vector.shape_cast %140 : vector<8xf32> to vector<8x1xf32>
    %142 = tpu.reciprocal %141 {approx = true} : vector<8x1xf32> -> vector<8x1xf32>
    %143 = vector.broadcast %142 : vector<8x1xf32> to vector<8x8xf32>
    %144 = arith.mulf %139, %143 : vector<8x8xf32>
    %145 = arith.truncf %144 : vector<8x8xf32> to vector<8x8xbf16>
    %cst_77 = arith.constant dense<0.000000e+00> : vector<8x32xf32>
    %146 = tpu.matmul %145, %130, %cst_77 {dimension_numbers = #tpu.dot_dimension_numbers<[1], [0], [0], [1], [0, 0, 1, 1], [], []>} : vector<8x8xbf16>, vector<8x32xbf16>, vector<8x32xf32> -> vector<8x32xf32>
    %147 = vector.extract_strided_slice %127 {offsets = [0, 32], sizes = [8, 32], strides = [1, 1]} : vector<8x384xbf16> to vector<8x32xbf16>
    %148 = vector.extract_strided_slice %127 {offsets = [0, 160], sizes = [8, 32], strides = [1, 1]} : vector<8x384xbf16> to vector<8x32xbf16>
    %149 = vector.extract_strided_slice %127 {offsets = [0, 288], sizes = [8, 32], strides = [1, 1]} : vector<8x384xbf16> to vector<8x32xbf16>
    %cst_78 = arith.constant dense<0.000000e+00> : vector<8x8xf32>
    %150 = tpu.matmul %147, %148, %cst_78 {dimension_numbers = #tpu.dot_dimension_numbers<[1], [1], [0], [0], [0, 0, 1, 0], [], []>} : vector<8x32xbf16>, vector<8x32xbf16>, vector<8x8xf32> -> vector<8x8xf32>
    %c0_79 = arith.constant 0 : index
    %c1_80 = arith.constant 1 : index
    %c0_81 = arith.constant 0 : index
    %c0_82 = arith.constant 0 : index
    %151 = vector.load %arg3[%c0_79, %c1_80, %c0_81, %c0_82] : memref<1x4x8x8xf32, #tpu.memory_space<vmem>>, vector<1x1x8x8xf32>
    %152 = vector.shape_cast %151 : vector<1x1x8x8xf32> to vector<8x8xf32>
    %153 = arith.addf %150, %152 : vector<8x8xf32>
    %cst_83 = arith.constant dense<0xFF800000> : vector<8xf32>
    %154 = vector.multi_reduction <maximumf>, %153, %cst_83 [1] : vector<8x8xf32> to vector<8xf32>
    %155 = vector.shape_cast %154 : vector<8xf32> to vector<8x1xf32>
    %156 = vector.broadcast %155 : vector<8x1xf32> to vector<8x8xf32>
    %157 = arith.subf %153, %156 : vector<8x8xf32>
    %158 = math.exp %157 : vector<8x8xf32>
    %cst_84 = arith.constant dense<0.000000e+00> : vector<8xf32>
    %159 = vector.multi_reduction <add>, %158, %cst_84 [1] : vector<8x8xf32> to vector<8xf32>
    %160 = vector.shape_cast %159 : vector<8xf32> to vector<8x1xf32>
    %161 = tpu.reciprocal %160 {approx = true} : vector<8x1xf32> -> vector<8x1xf32>
    %162 = vector.broadcast %161 : vector<8x1xf32> to vector<8x8xf32>
    %163 = arith.mulf %158, %162 : vector<8x8xf32>
    %164 = arith.truncf %163 : vector<8x8xf32> to vector<8x8xbf16>
    %cst_85 = arith.constant dense<0.000000e+00> : vector<8x32xf32>
    %165 = tpu.matmul %164, %149, %cst_85 {dimension_numbers = #tpu.dot_dimension_numbers<[1], [0], [0], [1], [0, 0, 1, 1], [], []>} : vector<8x8xbf16>, vector<8x32xbf16>, vector<8x32xf32> -> vector<8x32xf32>
    %166 = vector.extract_strided_slice %127 {offsets = [0, 64], sizes = [8, 32], strides = [1, 1]} : vector<8x384xbf16> to vector<8x32xbf16>
    %167 = vector.extract_strided_slice %127 {offsets = [0, 192], sizes = [8, 32], strides = [1, 1]} : vector<8x384xbf16> to vector<8x32xbf16>
    %168 = vector.extract_strided_slice %127 {offsets = [0, 320], sizes = [8, 32], strides = [1, 1]} : vector<8x384xbf16> to vector<8x32xbf16>
    %cst_86 = arith.constant dense<0.000000e+00> : vector<8x8xf32>
    %169 = tpu.matmul %166, %167, %cst_86 {dimension_numbers = #tpu.dot_dimension_numbers<[1], [1], [0], [0], [0, 0, 1, 0], [], []>} : vector<8x32xbf16>, vector<8x32xbf16>, vector<8x8xf32> -> vector<8x8xf32>
    %c0_87 = arith.constant 0 : index
    %c2_88 = arith.constant 2 : index
    %c0_89 = arith.constant 0 : index
    %c0_90 = arith.constant 0 : index
    %170 = vector.load %arg3[%c0_87, %c2_88, %c0_89, %c0_90] : memref<1x4x8x8xf32, #tpu.memory_space<vmem>>, vector<1x1x8x8xf32>
    %171 = vector.shape_cast %170 : vector<1x1x8x8xf32> to vector<8x8xf32>
    %172 = arith.addf %169, %171 : vector<8x8xf32>
    %cst_91 = arith.constant dense<0xFF800000> : vector<8xf32>
    %173 = vector.multi_reduction <maximumf>, %172, %cst_91 [1] : vector<8x8xf32> to vector<8xf32>
    %174 = vector.shape_cast %173 : vector<8xf32> to vector<8x1xf32>
    %175 = vector.broadcast %174 : vector<8x1xf32> to vector<8x8xf32>
    %176 = arith.subf %172, %175 : vector<8x8xf32>
    %177 = math.exp %176 : vector<8x8xf32>
    %cst_92 = arith.constant dense<0.000000e+00> : vector<8xf32>
    %178 = vector.multi_reduction <add>, %177, %cst_92 [1] : vector<8x8xf32> to vector<8xf32>
    %179 = vector.shape_cast %178 : vector<8xf32> to vector<8x1xf32>
    %180 = tpu.reciprocal %179 {approx = true} : vector<8x1xf32> -> vector<8x1xf32>
    %181 = vector.broadcast %180 : vector<8x1xf32> to vector<8x8xf32>
    %182 = arith.mulf %177, %181 : vector<8x8xf32>
    %183 = arith.truncf %182 : vector<8x8xf32> to vector<8x8xbf16>
    %cst_93 = arith.constant dense<0.000000e+00> : vector<8x32xf32>
    %184 = tpu.matmul %183, %168, %cst_93 {dimension_numbers = #tpu.dot_dimension_numbers<[1], [0], [0], [1], [0, 0, 1, 1], [], []>} : vector<8x8xbf16>, vector<8x32xbf16>, vector<8x32xf32> -> vector<8x32xf32>
    %185 = vector.extract_strided_slice %127 {offsets = [0, 96], sizes = [8, 32], strides = [1, 1]} : vector<8x384xbf16> to vector<8x32xbf16>
    %186 = vector.extract_strided_slice %127 {offsets = [0, 224], sizes = [8, 32], strides = [1, 1]} : vector<8x384xbf16> to vector<8x32xbf16>
    %187 = vector.extract_strided_slice %127 {offsets = [0, 352], sizes = [8, 32], strides = [1, 1]} : vector<8x384xbf16> to vector<8x32xbf16>
    %cst_94 = arith.constant dense<0.000000e+00> : vector<8x8xf32>
    %188 = tpu.matmul %185, %186, %cst_94 {dimension_numbers = #tpu.dot_dimension_numbers<[1], [1], [0], [0], [0, 0, 1, 0], [], []>} : vector<8x32xbf16>, vector<8x32xbf16>, vector<8x8xf32> -> vector<8x8xf32>
    %c0_95 = arith.constant 0 : index
    %c3_96 = arith.constant 3 : index
    %c0_97 = arith.constant 0 : index
    %c0_98 = arith.constant 0 : index
    %189 = vector.load %arg3[%c0_95, %c3_96, %c0_97, %c0_98] : memref<1x4x8x8xf32, #tpu.memory_space<vmem>>, vector<1x1x8x8xf32>
    %190 = vector.shape_cast %189 : vector<1x1x8x8xf32> to vector<8x8xf32>
    %191 = arith.addf %188, %190 : vector<8x8xf32>
    %cst_99 = arith.constant dense<0xFF800000> : vector<8xf32>
    %192 = vector.multi_reduction <maximumf>, %191, %cst_99 [1] : vector<8x8xf32> to vector<8xf32>
    %193 = vector.shape_cast %192 : vector<8xf32> to vector<8x1xf32>
    %194 = vector.broadcast %193 : vector<8x1xf32> to vector<8x8xf32>
    %195 = arith.subf %191, %194 : vector<8x8xf32>
    %196 = math.exp %195 : vector<8x8xf32>
    %cst_100 = arith.constant dense<0.000000e+00> : vector<8xf32>
    %197 = vector.multi_reduction <add>, %196, %cst_100 [1] : vector<8x8xf32> to vector<8xf32>
    %198 = vector.shape_cast %197 : vector<8xf32> to vector<8x1xf32>
    %199 = tpu.reciprocal %198 {approx = true} : vector<8x1xf32> -> vector<8x1xf32>
    %200 = vector.broadcast %199 : vector<8x1xf32> to vector<8x8xf32>
    %201 = arith.mulf %196, %200 : vector<8x8xf32>
    %202 = arith.truncf %201 : vector<8x8xf32> to vector<8x8xbf16>
    %cst_101 = arith.constant dense<0.000000e+00> : vector<8x32xf32>
    %203 = tpu.matmul %202, %187, %cst_101 {dimension_numbers = #tpu.dot_dimension_numbers<[1], [0], [0], [1], [0, 0, 1, 1], [], []>} : vector<8x8xbf16>, vector<8x32xbf16>, vector<8x32xf32> -> vector<8x32xf32>
    %204 = tpu.concatenate %146, %165, %184, %203 in 1 : vector<8x32xf32>, vector<8x32xf32>, vector<8x32xf32>, vector<8x32xf32> -> vector<8x128xf32>
    %205 = arith.truncf %204 : vector<8x128xf32> to vector<8x128xbf16>
    %c1_102 = arith.constant 1 : index
    %c0_103 = arith.constant 0 : index
    %c0_104 = arith.constant 0 : index
    %206 = vector.load %arg10[%c1_102, %c0_103, %c0_104] : memref<4x128x128xbf16, #tpu.memory_space<vmem>>, vector<1x128x128xbf16>
    %207 = vector.shape_cast %206 : vector<1x128x128xbf16> to vector<128x128xbf16>
    %cst_105 = arith.constant dense<0.000000e+00> : vector<8x128xf32>
    %208 = tpu.matmul %205, %207, %cst_105 {dimension_numbers = #tpu.dot_dimension_numbers<[1], [0], [0], [1], [0, 0, 1, 1], [], []>} : vector<8x128xbf16>, vector<128x128xbf16>, vector<8x128xf32> -> vector<8x128xf32>
    %209 = arith.addf %122, %208 : vector<8x128xf32>
    %210 = arith.truncf %209 : vector<8x128xf32> to vector<8x128xbf16>
    %c1_106 = arith.constant 1 : index
    %c0_107 = arith.constant 0 : index
    %c0_108 = arith.constant 0 : index
    %211 = vector.load %arg11[%c1_106, %c0_107, %c0_108] : memref<4x128x256xbf16, #tpu.memory_space<vmem>>, vector<1x128x256xbf16>
    %212 = vector.shape_cast %211 : vector<1x128x256xbf16> to vector<128x256xbf16>
    %cst_109 = arith.constant dense<0.000000e+00> : vector<8x256xf32>
    %213 = tpu.matmul %210, %212, %cst_109 {dimension_numbers = #tpu.dot_dimension_numbers<[1], [0], [0], [1], [0, 0, 1, 1], [], []>} : vector<8x128xbf16>, vector<128x256xbf16>, vector<8x256xf32> -> vector<8x256xf32>
    %c1_110 = arith.constant 1 : index
    %c0_111 = arith.constant 0 : index
    %c0_112 = arith.constant 0 : index
    %214 = vector.load %arg12[%c1_110, %c0_111, %c0_112] : memref<4x1x256xf32, #tpu.memory_space<vmem>>, vector<1x1x256xf32>
    %215 = vector.shape_cast %214 : vector<1x1x256xf32> to vector<1x256xf32>
    %216 = vector.broadcast %215 : vector<1x256xf32> to vector<8x256xf32>
    %217 = arith.addf %213, %216 : vector<8x256xf32>
    %cst_113 = arith.constant 0.000000e+00 : f32
    %218 = vector.broadcast %cst_113 : f32 to vector<8x256xf32>
    %219 = arith.maximumf %217, %218 : vector<8x256xf32>
    %220 = arith.truncf %219 : vector<8x256xf32> to vector<8x256xbf16>
    %c1_114 = arith.constant 1 : index
    %c0_115 = arith.constant 0 : index
    %c0_116 = arith.constant 0 : index
    %221 = vector.load %arg13[%c1_114, %c0_115, %c0_116] : memref<4x256x128xbf16, #tpu.memory_space<vmem>>, vector<1x256x128xbf16>
    %222 = vector.shape_cast %221 : vector<1x256x128xbf16> to vector<256x128xbf16>
    %cst_117 = arith.constant dense<0.000000e+00> : vector<8x128xf32>
    %223 = tpu.matmul %220, %222, %cst_117 {dimension_numbers = #tpu.dot_dimension_numbers<[1], [0], [0], [1], [0, 0, 1, 1], [], []>} : vector<8x256xbf16>, vector<256x128xbf16>, vector<8x128xf32> -> vector<8x128xf32>
    %224 = arith.addf %209, %223 : vector<8x128xf32>
    %c1_118 = arith.constant 1 : index
    %c0_119 = arith.constant 0 : index
    %c0_120 = arith.constant 0 : index
    %225 = vector.load %arg14[%c1_118, %c0_119, %c0_120] : memref<4x1x128xf32, #tpu.memory_space<vmem>>, vector<1x1x128xf32>
    %226 = vector.shape_cast %225 : vector<1x1x128xf32> to vector<1x128xf32>
    %227 = vector.broadcast %226 : vector<1x128xf32> to vector<8x128xf32>
    %228 = arith.addf %224, %227 : vector<8x128xf32>
    %229 = arith.truncf %228 : vector<8x128xf32> to vector<8x128xbf16>
    %c2_121 = arith.constant 2 : index
    %c0_122 = arith.constant 0 : index
    %c0_123 = arith.constant 0 : index
    %230 = vector.load %arg9[%c2_121, %c0_122, %c0_123] : memref<4x128x384xbf16, #tpu.memory_space<vmem>>, vector<1x128x384xbf16>
    %231 = vector.shape_cast %230 : vector<1x128x384xbf16> to vector<128x384xbf16>
    %cst_124 = arith.constant dense<0.000000e+00> : vector<8x384xf32>
    %232 = tpu.matmul %229, %231, %cst_124 {dimension_numbers = #tpu.dot_dimension_numbers<[1], [0], [0], [1], [0, 0, 1, 1], [], []>} : vector<8x128xbf16>, vector<128x384xbf16>, vector<8x384xf32> -> vector<8x384xf32>
    %233 = arith.truncf %232 : vector<8x384xf32> to vector<8x384xbf16>
    %234 = vector.extract_strided_slice %233 {offsets = [0, 0], sizes = [8, 32], strides = [1, 1]} : vector<8x384xbf16> to vector<8x32xbf16>
    %235 = vector.extract_strided_slice %233 {offsets = [0, 128], sizes = [8, 32], strides = [1, 1]} : vector<8x384xbf16> to vector<8x32xbf16>
    %236 = vector.extract_strided_slice %233 {offsets = [0, 256], sizes = [8, 32], strides = [1, 1]} : vector<8x384xbf16> to vector<8x32xbf16>
    %cst_125 = arith.constant dense<0.000000e+00> : vector<8x8xf32>
    %237 = tpu.matmul %234, %235, %cst_125 {dimension_numbers = #tpu.dot_dimension_numbers<[1], [1], [0], [0], [0, 0, 1, 0], [], []>} : vector<8x32xbf16>, vector<8x32xbf16>, vector<8x8xf32> -> vector<8x8xf32>
    %c0_126 = arith.constant 0 : index
    %c0_127 = arith.constant 0 : index
    %c0_128 = arith.constant 0 : index
    %c0_129 = arith.constant 0 : index
    %238 = vector.load %arg4[%c0_126, %c0_127, %c0_128, %c0_129] : memref<1x4x8x8xf32, #tpu.memory_space<vmem>>, vector<1x1x8x8xf32>
    %239 = vector.shape_cast %238 : vector<1x1x8x8xf32> to vector<8x8xf32>
    %240 = arith.addf %237, %239 : vector<8x8xf32>
    %cst_130 = arith.constant dense<0xFF800000> : vector<8xf32>
    %241 = vector.multi_reduction <maximumf>, %240, %cst_130 [1] : vector<8x8xf32> to vector<8xf32>
    %242 = vector.shape_cast %241 : vector<8xf32> to vector<8x1xf32>
    %243 = vector.broadcast %242 : vector<8x1xf32> to vector<8x8xf32>
    %244 = arith.subf %240, %243 : vector<8x8xf32>
    %245 = math.exp %244 : vector<8x8xf32>
    %cst_131 = arith.constant dense<0.000000e+00> : vector<8xf32>
    %246 = vector.multi_reduction <add>, %245, %cst_131 [1] : vector<8x8xf32> to vector<8xf32>
    %247 = vector.shape_cast %246 : vector<8xf32> to vector<8x1xf32>
    %248 = tpu.reciprocal %247 {approx = true} : vector<8x1xf32> -> vector<8x1xf32>
    %249 = vector.broadcast %248 : vector<8x1xf32> to vector<8x8xf32>
    %250 = arith.mulf %245, %249 : vector<8x8xf32>
    %251 = arith.truncf %250 : vector<8x8xf32> to vector<8x8xbf16>
    %cst_132 = arith.constant dense<0.000000e+00> : vector<8x32xf32>
    %252 = tpu.matmul %251, %236, %cst_132 {dimension_numbers = #tpu.dot_dimension_numbers<[1], [0], [0], [1], [0, 0, 1, 1], [], []>} : vector<8x8xbf16>, vector<8x32xbf16>, vector<8x32xf32> -> vector<8x32xf32>
    %253 = vector.extract_strided_slice %233 {offsets = [0, 32], sizes = [8, 32], strides = [1, 1]} : vector<8x384xbf16> to vector<8x32xbf16>
    %254 = vector.extract_strided_slice %233 {offsets = [0, 160], sizes = [8, 32], strides = [1, 1]} : vector<8x384xbf16> to vector<8x32xbf16>
    %255 = vector.extract_strided_slice %233 {offsets = [0, 288], sizes = [8, 32], strides = [1, 1]} : vector<8x384xbf16> to vector<8x32xbf16>
    %cst_133 = arith.constant dense<0.000000e+00> : vector<8x8xf32>
    %256 = tpu.matmul %253, %254, %cst_133 {dimension_numbers = #tpu.dot_dimension_numbers<[1], [1], [0], [0], [0, 0, 1, 0], [], []>} : vector<8x32xbf16>, vector<8x32xbf16>, vector<8x8xf32> -> vector<8x8xf32>
    %c0_134 = arith.constant 0 : index
    %c1_135 = arith.constant 1 : index
    %c0_136 = arith.constant 0 : index
    %c0_137 = arith.constant 0 : index
    %257 = vector.load %arg4[%c0_134, %c1_135, %c0_136, %c0_137] : memref<1x4x8x8xf32, #tpu.memory_space<vmem>>, vector<1x1x8x8xf32>
    %258 = vector.shape_cast %257 : vector<1x1x8x8xf32> to vector<8x8xf32>
    %259 = arith.addf %256, %258 : vector<8x8xf32>
    %cst_138 = arith.constant dense<0xFF800000> : vector<8xf32>
    %260 = vector.multi_reduction <maximumf>, %259, %cst_138 [1] : vector<8x8xf32> to vector<8xf32>
    %261 = vector.shape_cast %260 : vector<8xf32> to vector<8x1xf32>
    %262 = vector.broadcast %261 : vector<8x1xf32> to vector<8x8xf32>
    %263 = arith.subf %259, %262 : vector<8x8xf32>
    %264 = math.exp %263 : vector<8x8xf32>
    %cst_139 = arith.constant dense<0.000000e+00> : vector<8xf32>
    %265 = vector.multi_reduction <add>, %264, %cst_139 [1] : vector<8x8xf32> to vector<8xf32>
    %266 = vector.shape_cast %265 : vector<8xf32> to vector<8x1xf32>
    %267 = tpu.reciprocal %266 {approx = true} : vector<8x1xf32> -> vector<8x1xf32>
    %268 = vector.broadcast %267 : vector<8x1xf32> to vector<8x8xf32>
    %269 = arith.mulf %264, %268 : vector<8x8xf32>
    %270 = arith.truncf %269 : vector<8x8xf32> to vector<8x8xbf16>
    %cst_140 = arith.constant dense<0.000000e+00> : vector<8x32xf32>
    %271 = tpu.matmul %270, %255, %cst_140 {dimension_numbers = #tpu.dot_dimension_numbers<[1], [0], [0], [1], [0, 0, 1, 1], [], []>} : vector<8x8xbf16>, vector<8x32xbf16>, vector<8x32xf32> -> vector<8x32xf32>
    %272 = vector.extract_strided_slice %233 {offsets = [0, 64], sizes = [8, 32], strides = [1, 1]} : vector<8x384xbf16> to vector<8x32xbf16>
    %273 = vector.extract_strided_slice %233 {offsets = [0, 192], sizes = [8, 32], strides = [1, 1]} : vector<8x384xbf16> to vector<8x32xbf16>
    %274 = vector.extract_strided_slice %233 {offsets = [0, 320], sizes = [8, 32], strides = [1, 1]} : vector<8x384xbf16> to vector<8x32xbf16>
    %cst_141 = arith.constant dense<0.000000e+00> : vector<8x8xf32>
    %275 = tpu.matmul %272, %273, %cst_141 {dimension_numbers = #tpu.dot_dimension_numbers<[1], [1], [0], [0], [0, 0, 1, 0], [], []>} : vector<8x32xbf16>, vector<8x32xbf16>, vector<8x8xf32> -> vector<8x8xf32>
    %c0_142 = arith.constant 0 : index
    %c2_143 = arith.constant 2 : index
    %c0_144 = arith.constant 0 : index
    %c0_145 = arith.constant 0 : index
    %276 = vector.load %arg4[%c0_142, %c2_143, %c0_144, %c0_145] : memref<1x4x8x8xf32, #tpu.memory_space<vmem>>, vector<1x1x8x8xf32>
    %277 = vector.shape_cast %276 : vector<1x1x8x8xf32> to vector<8x8xf32>
    %278 = arith.addf %275, %277 : vector<8x8xf32>
    %cst_146 = arith.constant dense<0xFF800000> : vector<8xf32>
    %279 = vector.multi_reduction <maximumf>, %278, %cst_146 [1] : vector<8x8xf32> to vector<8xf32>
    %280 = vector.shape_cast %279 : vector<8xf32> to vector<8x1xf32>
    %281 = vector.broadcast %280 : vector<8x1xf32> to vector<8x8xf32>
    %282 = arith.subf %278, %281 : vector<8x8xf32>
    %283 = math.exp %282 : vector<8x8xf32>
    %cst_147 = arith.constant dense<0.000000e+00> : vector<8xf32>
    %284 = vector.multi_reduction <add>, %283, %cst_147 [1] : vector<8x8xf32> to vector<8xf32>
    %285 = vector.shape_cast %284 : vector<8xf32> to vector<8x1xf32>
    %286 = tpu.reciprocal %285 {approx = true} : vector<8x1xf32> -> vector<8x1xf32>
    %287 = vector.broadcast %286 : vector<8x1xf32> to vector<8x8xf32>
    %288 = arith.mulf %283, %287 : vector<8x8xf32>
    %289 = arith.truncf %288 : vector<8x8xf32> to vector<8x8xbf16>
    %cst_148 = arith.constant dense<0.000000e+00> : vector<8x32xf32>
    %290 = tpu.matmul %289, %274, %cst_148 {dimension_numbers = #tpu.dot_dimension_numbers<[1], [0], [0], [1], [0, 0, 1, 1], [], []>} : vector<8x8xbf16>, vector<8x32xbf16>, vector<8x32xf32> -> vector<8x32xf32>
    %291 = vector.extract_strided_slice %233 {offsets = [0, 96], sizes = [8, 32], strides = [1, 1]} : vector<8x384xbf16> to vector<8x32xbf16>
    %292 = vector.extract_strided_slice %233 {offsets = [0, 224], sizes = [8, 32], strides = [1, 1]} : vector<8x384xbf16> to vector<8x32xbf16>
    %293 = vector.extract_strided_slice %233 {offsets = [0, 352], sizes = [8, 32], strides = [1, 1]} : vector<8x384xbf16> to vector<8x32xbf16>
    %cst_149 = arith.constant dense<0.000000e+00> : vector<8x8xf32>
    %294 = tpu.matmul %291, %292, %cst_149 {dimension_numbers = #tpu.dot_dimension_numbers<[1], [1], [0], [0], [0, 0, 1, 0], [], []>} : vector<8x32xbf16>, vector<8x32xbf16>, vector<8x8xf32> -> vector<8x8xf32>
    %c0_150 = arith.constant 0 : index
    %c3_151 = arith.constant 3 : index
    %c0_152 = arith.constant 0 : index
    %c0_153 = arith.constant 0 : index
    %295 = vector.load %arg4[%c0_150, %c3_151, %c0_152, %c0_153] : memref<1x4x8x8xf32, #tpu.memory_space<vmem>>, vector<1x1x8x8xf32>
    %296 = vector.shape_cast %295 : vector<1x1x8x8xf32> to vector<8x8xf32>
    %297 = arith.addf %294, %296 : vector<8x8xf32>
    %cst_154 = arith.constant dense<0xFF800000> : vector<8xf32>
    %298 = vector.multi_reduction <maximumf>, %297, %cst_154 [1] : vector<8x8xf32> to vector<8xf32>
    %299 = vector.shape_cast %298 : vector<8xf32> to vector<8x1xf32>
    %300 = vector.broadcast %299 : vector<8x1xf32> to vector<8x8xf32>
    %301 = arith.subf %297, %300 : vector<8x8xf32>
    %302 = math.exp %301 : vector<8x8xf32>
    %cst_155 = arith.constant dense<0.000000e+00> : vector<8xf32>
    %303 = vector.multi_reduction <add>, %302, %cst_155 [1] : vector<8x8xf32> to vector<8xf32>
    %304 = vector.shape_cast %303 : vector<8xf32> to vector<8x1xf32>
    %305 = tpu.reciprocal %304 {approx = true} : vector<8x1xf32> -> vector<8x1xf32>
    %306 = vector.broadcast %305 : vector<8x1xf32> to vector<8x8xf32>
    %307 = arith.mulf %302, %306 : vector<8x8xf32>
    %308 = arith.truncf %307 : vector<8x8xf32> to vector<8x8xbf16>
    %cst_156 = arith.constant dense<0.000000e+00> : vector<8x32xf32>
    %309 = tpu.matmul %308, %293, %cst_156 {dimension_numbers = #tpu.dot_dimension_numbers<[1], [0], [0], [1], [0, 0, 1, 1], [], []>} : vector<8x8xbf16>, vector<8x32xbf16>, vector<8x32xf32> -> vector<8x32xf32>
    %310 = tpu.concatenate %252, %271, %290, %309 in 1 : vector<8x32xf32>, vector<8x32xf32>, vector<8x32xf32>, vector<8x32xf32> -> vector<8x128xf32>
    %311 = arith.truncf %310 : vector<8x128xf32> to vector<8x128xbf16>
    %c2_157 = arith.constant 2 : index
    %c0_158 = arith.constant 0 : index
    %c0_159 = arith.constant 0 : index
    %312 = vector.load %arg10[%c2_157, %c0_158, %c0_159] : memref<4x128x128xbf16, #tpu.memory_space<vmem>>, vector<1x128x128xbf16>
    %313 = vector.shape_cast %312 : vector<1x128x128xbf16> to vector<128x128xbf16>
    %cst_160 = arith.constant dense<0.000000e+00> : vector<8x128xf32>
    %314 = tpu.matmul %311, %313, %cst_160 {dimension_numbers = #tpu.dot_dimension_numbers<[1], [0], [0], [1], [0, 0, 1, 1], [], []>} : vector<8x128xbf16>, vector<128x128xbf16>, vector<8x128xf32> -> vector<8x128xf32>
    %315 = arith.addf %228, %314 : vector<8x128xf32>
    %316 = arith.truncf %315 : vector<8x128xf32> to vector<8x128xbf16>
    %c2_161 = arith.constant 2 : index
    %c0_162 = arith.constant 0 : index
    %c0_163 = arith.constant 0 : index
    %317 = vector.load %arg11[%c2_161, %c0_162, %c0_163] : memref<4x128x256xbf16, #tpu.memory_space<vmem>>, vector<1x128x256xbf16>
    %318 = vector.shape_cast %317 : vector<1x128x256xbf16> to vector<128x256xbf16>
    %cst_164 = arith.constant dense<0.000000e+00> : vector<8x256xf32>
    %319 = tpu.matmul %316, %318, %cst_164 {dimension_numbers = #tpu.dot_dimension_numbers<[1], [0], [0], [1], [0, 0, 1, 1], [], []>} : vector<8x128xbf16>, vector<128x256xbf16>, vector<8x256xf32> -> vector<8x256xf32>
    %c2_165 = arith.constant 2 : index
    %c0_166 = arith.constant 0 : index
    %c0_167 = arith.constant 0 : index
    %320 = vector.load %arg12[%c2_165, %c0_166, %c0_167] : memref<4x1x256xf32, #tpu.memory_space<vmem>>, vector<1x1x256xf32>
    %321 = vector.shape_cast %320 : vector<1x1x256xf32> to vector<1x256xf32>
    %322 = vector.broadcast %321 : vector<1x256xf32> to vector<8x256xf32>
    %323 = arith.addf %319, %322 : vector<8x256xf32>
    %cst_168 = arith.constant 0.000000e+00 : f32
    %324 = vector.broadcast %cst_168 : f32 to vector<8x256xf32>
    %325 = arith.maximumf %323, %324 : vector<8x256xf32>
    %326 = arith.truncf %325 : vector<8x256xf32> to vector<8x256xbf16>
    %c2_169 = arith.constant 2 : index
    %c0_170 = arith.constant 0 : index
    %c0_171 = arith.constant 0 : index
    %327 = vector.load %arg13[%c2_169, %c0_170, %c0_171] : memref<4x256x128xbf16, #tpu.memory_space<vmem>>, vector<1x256x128xbf16>
    %328 = vector.shape_cast %327 : vector<1x256x128xbf16> to vector<256x128xbf16>
    %cst_172 = arith.constant dense<0.000000e+00> : vector<8x128xf32>
    %329 = tpu.matmul %326, %328, %cst_172 {dimension_numbers = #tpu.dot_dimension_numbers<[1], [0], [0], [1], [0, 0, 1, 1], [], []>} : vector<8x256xbf16>, vector<256x128xbf16>, vector<8x128xf32> -> vector<8x128xf32>
    %330 = arith.addf %315, %329 : vector<8x128xf32>
    %c2_173 = arith.constant 2 : index
    %c0_174 = arith.constant 0 : index
    %c0_175 = arith.constant 0 : index
    %331 = vector.load %arg14[%c2_173, %c0_174, %c0_175] : memref<4x1x128xf32, #tpu.memory_space<vmem>>, vector<1x1x128xf32>
    %332 = vector.shape_cast %331 : vector<1x1x128xf32> to vector<1x128xf32>
    %333 = vector.broadcast %332 : vector<1x128xf32> to vector<8x128xf32>
    %334 = arith.addf %330, %333 : vector<8x128xf32>
    %335 = arith.truncf %334 : vector<8x128xf32> to vector<8x128xbf16>
    %c3_176 = arith.constant 3 : index
    %c0_177 = arith.constant 0 : index
    %c0_178 = arith.constant 0 : index
    %336 = vector.load %arg9[%c3_176, %c0_177, %c0_178] : memref<4x128x384xbf16, #tpu.memory_space<vmem>>, vector<1x128x384xbf16>
    %337 = vector.shape_cast %336 : vector<1x128x384xbf16> to vector<128x384xbf16>
    %cst_179 = arith.constant dense<0.000000e+00> : vector<8x384xf32>
    %338 = tpu.matmul %335, %337, %cst_179 {dimension_numbers = #tpu.dot_dimension_numbers<[1], [0], [0], [1], [0, 0, 1, 1], [], []>} : vector<8x128xbf16>, vector<128x384xbf16>, vector<8x384xf32> -> vector<8x384xf32>
    %339 = arith.truncf %338 : vector<8x384xf32> to vector<8x384xbf16>
    %340 = vector.extract_strided_slice %339 {offsets = [0, 0], sizes = [8, 32], strides = [1, 1]} : vector<8x384xbf16> to vector<8x32xbf16>
    %341 = vector.extract_strided_slice %339 {offsets = [0, 128], sizes = [8, 32], strides = [1, 1]} : vector<8x384xbf16> to vector<8x32xbf16>
    %342 = vector.extract_strided_slice %339 {offsets = [0, 256], sizes = [8, 32], strides = [1, 1]} : vector<8x384xbf16> to vector<8x32xbf16>
    %cst_180 = arith.constant dense<0.000000e+00> : vector<8x8xf32>
    %343 = tpu.matmul %340, %341, %cst_180 {dimension_numbers = #tpu.dot_dimension_numbers<[1], [1], [0], [0], [0, 0, 1, 0], [], []>} : vector<8x32xbf16>, vector<8x32xbf16>, vector<8x8xf32> -> vector<8x8xf32>
    %c0_181 = arith.constant 0 : index
    %c0_182 = arith.constant 0 : index
    %c0_183 = arith.constant 0 : index
    %c0_184 = arith.constant 0 : index
    %344 = vector.load %arg4[%c0_181, %c0_182, %c0_183, %c0_184] : memref<1x4x8x8xf32, #tpu.memory_space<vmem>>, vector<1x1x8x8xf32>
    %345 = vector.shape_cast %344 : vector<1x1x8x8xf32> to vector<8x8xf32>
    %346 = arith.addf %343, %345 : vector<8x8xf32>
    %cst_185 = arith.constant dense<0xFF800000> : vector<8xf32>
    %347 = vector.multi_reduction <maximumf>, %346, %cst_185 [1] : vector<8x8xf32> to vector<8xf32>
    %348 = vector.shape_cast %347 : vector<8xf32> to vector<8x1xf32>
    %349 = vector.broadcast %348 : vector<8x1xf32> to vector<8x8xf32>
    %350 = arith.subf %346, %349 : vector<8x8xf32>
    %351 = math.exp %350 : vector<8x8xf32>
    %cst_186 = arith.constant dense<0.000000e+00> : vector<8xf32>
    %352 = vector.multi_reduction <add>, %351, %cst_186 [1] : vector<8x8xf32> to vector<8xf32>
    %353 = vector.shape_cast %352 : vector<8xf32> to vector<8x1xf32>
    %354 = tpu.reciprocal %353 {approx = true} : vector<8x1xf32> -> vector<8x1xf32>
    %355 = vector.broadcast %354 : vector<8x1xf32> to vector<8x8xf32>
    %356 = arith.mulf %351, %355 : vector<8x8xf32>
    %357 = arith.truncf %356 : vector<8x8xf32> to vector<8x8xbf16>
    %cst_187 = arith.constant dense<0.000000e+00> : vector<8x32xf32>
    %358 = tpu.matmul %357, %342, %cst_187 {dimension_numbers = #tpu.dot_dimension_numbers<[1], [0], [0], [1], [0, 0, 1, 1], [], []>} : vector<8x8xbf16>, vector<8x32xbf16>, vector<8x32xf32> -> vector<8x32xf32>
    %359 = vector.extract_strided_slice %339 {offsets = [0, 32], sizes = [8, 32], strides = [1, 1]} : vector<8x384xbf16> to vector<8x32xbf16>
    %360 = vector.extract_strided_slice %339 {offsets = [0, 160], sizes = [8, 32], strides = [1, 1]} : vector<8x384xbf16> to vector<8x32xbf16>
    %361 = vector.extract_strided_slice %339 {offsets = [0, 288], sizes = [8, 32], strides = [1, 1]} : vector<8x384xbf16> to vector<8x32xbf16>
    %cst_188 = arith.constant dense<0.000000e+00> : vector<8x8xf32>
    %362 = tpu.matmul %359, %360, %cst_188 {dimension_numbers = #tpu.dot_dimension_numbers<[1], [1], [0], [0], [0, 0, 1, 0], [], []>} : vector<8x32xbf16>, vector<8x32xbf16>, vector<8x8xf32> -> vector<8x8xf32>
    %c0_189 = arith.constant 0 : index
    %c1_190 = arith.constant 1 : index
    %c0_191 = arith.constant 0 : index
    %c0_192 = arith.constant 0 : index
    %363 = vector.load %arg4[%c0_189, %c1_190, %c0_191, %c0_192] : memref<1x4x8x8xf32, #tpu.memory_space<vmem>>, vector<1x1x8x8xf32>
    %364 = vector.shape_cast %363 : vector<1x1x8x8xf32> to vector<8x8xf32>
    %365 = arith.addf %362, %364 : vector<8x8xf32>
    %cst_193 = arith.constant dense<0xFF800000> : vector<8xf32>
    %366 = vector.multi_reduction <maximumf>, %365, %cst_193 [1] : vector<8x8xf32> to vector<8xf32>
    %367 = vector.shape_cast %366 : vector<8xf32> to vector<8x1xf32>
    %368 = vector.broadcast %367 : vector<8x1xf32> to vector<8x8xf32>
    %369 = arith.subf %365, %368 : vector<8x8xf32>
    %370 = math.exp %369 : vector<8x8xf32>
    %cst_194 = arith.constant dense<0.000000e+00> : vector<8xf32>
    %371 = vector.multi_reduction <add>, %370, %cst_194 [1] : vector<8x8xf32> to vector<8xf32>
    %372 = vector.shape_cast %371 : vector<8xf32> to vector<8x1xf32>
    %373 = tpu.reciprocal %372 {approx = true} : vector<8x1xf32> -> vector<8x1xf32>
    %374 = vector.broadcast %373 : vector<8x1xf32> to vector<8x8xf32>
    %375 = arith.mulf %370, %374 : vector<8x8xf32>
    %376 = arith.truncf %375 : vector<8x8xf32> to vector<8x8xbf16>
    %cst_195 = arith.constant dense<0.000000e+00> : vector<8x32xf32>
    %377 = tpu.matmul %376, %361, %cst_195 {dimension_numbers = #tpu.dot_dimension_numbers<[1], [0], [0], [1], [0, 0, 1, 1], [], []>} : vector<8x8xbf16>, vector<8x32xbf16>, vector<8x32xf32> -> vector<8x32xf32>
    %378 = vector.extract_strided_slice %339 {offsets = [0, 64], sizes = [8, 32], strides = [1, 1]} : vector<8x384xbf16> to vector<8x32xbf16>
    %379 = vector.extract_strided_slice %339 {offsets = [0, 192], sizes = [8, 32], strides = [1, 1]} : vector<8x384xbf16> to vector<8x32xbf16>
    %380 = vector.extract_strided_slice %339 {offsets = [0, 320], sizes = [8, 32], strides = [1, 1]} : vector<8x384xbf16> to vector<8x32xbf16>
    %cst_196 = arith.constant dense<0.000000e+00> : vector<8x8xf32>
    %381 = tpu.matmul %378, %379, %cst_196 {dimension_numbers = #tpu.dot_dimension_numbers<[1], [1], [0], [0], [0, 0, 1, 0], [], []>} : vector<8x32xbf16>, vector<8x32xbf16>, vector<8x8xf32> -> vector<8x8xf32>
    %c0_197 = arith.constant 0 : index
    %c2_198 = arith.constant 2 : index
    %c0_199 = arith.constant 0 : index
    %c0_200 = arith.constant 0 : index
    %382 = vector.load %arg4[%c0_197, %c2_198, %c0_199, %c0_200] : memref<1x4x8x8xf32, #tpu.memory_space<vmem>>, vector<1x1x8x8xf32>
    %383 = vector.shape_cast %382 : vector<1x1x8x8xf32> to vector<8x8xf32>
    %384 = arith.addf %381, %383 : vector<8x8xf32>
    %cst_201 = arith.constant dense<0xFF800000> : vector<8xf32>
    %385 = vector.multi_reduction <maximumf>, %384, %cst_201 [1] : vector<8x8xf32> to vector<8xf32>
    %386 = vector.shape_cast %385 : vector<8xf32> to vector<8x1xf32>
    %387 = vector.broadcast %386 : vector<8x1xf32> to vector<8x8xf32>
    %388 = arith.subf %384, %387 : vector<8x8xf32>
    %389 = math.exp %388 : vector<8x8xf32>
    %cst_202 = arith.constant dense<0.000000e+00> : vector<8xf32>
    %390 = vector.multi_reduction <add>, %389, %cst_202 [1] : vector<8x8xf32> to vector<8xf32>
    %391 = vector.shape_cast %390 : vector<8xf32> to vector<8x1xf32>
    %392 = tpu.reciprocal %391 {approx = true} : vector<8x1xf32> -> vector<8x1xf32>
    %393 = vector.broadcast %392 : vector<8x1xf32> to vector<8x8xf32>
    %394 = arith.mulf %389, %393 : vector<8x8xf32>
    %395 = arith.truncf %394 : vector<8x8xf32> to vector<8x8xbf16>
    %cst_203 = arith.constant dense<0.000000e+00> : vector<8x32xf32>
    %396 = tpu.matmul %395, %380, %cst_203 {dimension_numbers = #tpu.dot_dimension_numbers<[1], [0], [0], [1], [0, 0, 1, 1], [], []>} : vector<8x8xbf16>, vector<8x32xbf16>, vector<8x32xf32> -> vector<8x32xf32>
    %397 = vector.extract_strided_slice %339 {offsets = [0, 96], sizes = [8, 32], strides = [1, 1]} : vector<8x384xbf16> to vector<8x32xbf16>
    %398 = vector.extract_strided_slice %339 {offsets = [0, 224], sizes = [8, 32], strides = [1, 1]} : vector<8x384xbf16> to vector<8x32xbf16>
    %399 = vector.extract_strided_slice %339 {offsets = [0, 352], sizes = [8, 32], strides = [1, 1]} : vector<8x384xbf16> to vector<8x32xbf16>
    %cst_204 = arith.constant dense<0.000000e+00> : vector<8x8xf32>
    %400 = tpu.matmul %397, %398, %cst_204 {dimension_numbers = #tpu.dot_dimension_numbers<[1], [1], [0], [0], [0, 0, 1, 0], [], []>} : vector<8x32xbf16>, vector<8x32xbf16>, vector<8x8xf32> -> vector<8x8xf32>
    %c0_205 = arith.constant 0 : index
    %c3_206 = arith.constant 3 : index
    %c0_207 = arith.constant 0 : index
    %c0_208 = arith.constant 0 : index
    %401 = vector.load %arg4[%c0_205, %c3_206, %c0_207, %c0_208] : memref<1x4x8x8xf32, #tpu.memory_space<vmem>>, vector<1x1x8x8xf32>
    %402 = vector.shape_cast %401 : vector<1x1x8x8xf32> to vector<8x8xf32>
    %403 = arith.addf %400, %402 : vector<8x8xf32>
    %cst_209 = arith.constant dense<0xFF800000> : vector<8xf32>
    %404 = vector.multi_reduction <maximumf>, %403, %cst_209 [1] : vector<8x8xf32> to vector<8xf32>
    %405 = vector.shape_cast %404 : vector<8xf32> to vector<8x1xf32>
    %406 = vector.broadcast %405 : vector<8x1xf32> to vector<8x8xf32>
    %407 = arith.subf %403, %406 : vector<8x8xf32>
    %408 = math.exp %407 : vector<8x8xf32>
    %cst_210 = arith.constant dense<0.000000e+00> : vector<8xf32>
    %409 = vector.multi_reduction <add>, %408, %cst_210 [1] : vector<8x8xf32> to vector<8xf32>
    %410 = vector.shape_cast %409 : vector<8xf32> to vector<8x1xf32>
    %411 = tpu.reciprocal %410 {approx = true} : vector<8x1xf32> -> vector<8x1xf32>
    %412 = vector.broadcast %411 : vector<8x1xf32> to vector<8x8xf32>
    %413 = arith.mulf %408, %412 : vector<8x8xf32>
    %414 = arith.truncf %413 : vector<8x8xf32> to vector<8x8xbf16>
    %cst_211 = arith.constant dense<0.000000e+00> : vector<8x32xf32>
    %415 = tpu.matmul %414, %399, %cst_211 {dimension_numbers = #tpu.dot_dimension_numbers<[1], [0], [0], [1], [0, 0, 1, 1], [], []>} : vector<8x8xbf16>, vector<8x32xbf16>, vector<8x32xf32> -> vector<8x32xf32>
    %416 = tpu.concatenate %358, %377, %396, %415 in 1 : vector<8x32xf32>, vector<8x32xf32>, vector<8x32xf32>, vector<8x32xf32> -> vector<8x128xf32>
    %417 = arith.truncf %416 : vector<8x128xf32> to vector<8x128xbf16>
    %c3_212 = arith.constant 3 : index
    %c0_213 = arith.constant 0 : index
    %c0_214 = arith.constant 0 : index
    %418 = vector.load %arg10[%c3_212, %c0_213, %c0_214] : memref<4x128x128xbf16, #tpu.memory_space<vmem>>, vector<1x128x128xbf16>
    %419 = vector.shape_cast %418 : vector<1x128x128xbf16> to vector<128x128xbf16>
    %cst_215 = arith.constant dense<0.000000e+00> : vector<8x128xf32>
    %420 = tpu.matmul %417, %419, %cst_215 {dimension_numbers = #tpu.dot_dimension_numbers<[1], [0], [0], [1], [0, 0, 1, 1], [], []>} : vector<8x128xbf16>, vector<128x128xbf16>, vector<8x128xf32> -> vector<8x128xf32>
    %421 = arith.addf %334, %420 : vector<8x128xf32>
    %422 = arith.truncf %421 : vector<8x128xf32> to vector<8x128xbf16>
    %c3_216 = arith.constant 3 : index
    %c0_217 = arith.constant 0 : index
    %c0_218 = arith.constant 0 : index
    %423 = vector.load %arg11[%c3_216, %c0_217, %c0_218] : memref<4x128x256xbf16, #tpu.memory_space<vmem>>, vector<1x128x256xbf16>
    %424 = vector.shape_cast %423 : vector<1x128x256xbf16> to vector<128x256xbf16>
    %cst_219 = arith.constant dense<0.000000e+00> : vector<8x256xf32>
    %425 = tpu.matmul %422, %424, %cst_219 {dimension_numbers = #tpu.dot_dimension_numbers<[1], [0], [0], [1], [0, 0, 1, 1], [], []>} : vector<8x128xbf16>, vector<128x256xbf16>, vector<8x256xf32> -> vector<8x256xf32>
    %c3_220 = arith.constant 3 : index
    %c0_221 = arith.constant 0 : index
    %c0_222 = arith.constant 0 : index
    %426 = vector.load %arg12[%c3_220, %c0_221, %c0_222] : memref<4x1x256xf32, #tpu.memory_space<vmem>>, vector<1x1x256xf32>
    %427 = vector.shape_cast %426 : vector<1x1x256xf32> to vector<1x256xf32>
    %428 = vector.broadcast %427 : vector<1x256xf32> to vector<8x256xf32>
    %429 = arith.addf %425, %428 : vector<8x256xf32>
    %cst_223 = arith.constant 0.000000e+00 : f32
    %430 = vector.broadcast %cst_223 : f32 to vector<8x256xf32>
    %431 = arith.maximumf %429, %430 : vector<8x256xf32>
    %432 = arith.truncf %431 : vector<8x256xf32> to vector<8x256xbf16>
    %c3_224 = arith.constant 3 : index
    %c0_225 = arith.constant 0 : index
    %c0_226 = arith.constant 0 : index
    %433 = vector.load %arg13[%c3_224, %c0_225, %c0_226] : memref<4x256x128xbf16, #tpu.memory_space<vmem>>, vector<1x256x128xbf16>
    %434 = vector.shape_cast %433 : vector<1x256x128xbf16> to vector<256x128xbf16>
    %cst_227 = arith.constant dense<0.000000e+00> : vector<8x128xf32>
    %435 = tpu.matmul %432, %434, %cst_227 {dimension_numbers = #tpu.dot_dimension_numbers<[1], [0], [0], [1], [0, 0, 1, 1], [], []>} : vector<8x256xbf16>, vector<256x128xbf16>, vector<8x128xf32> -> vector<8x128xf32>
    %436 = arith.addf %421, %435 : vector<8x128xf32>
    %c3_228 = arith.constant 3 : index
    %c0_229 = arith.constant 0 : index
    %c0_230 = arith.constant 0 : index
    %437 = vector.load %arg14[%c3_228, %c0_229, %c0_230] : memref<4x1x128xf32, #tpu.memory_space<vmem>>, vector<1x1x128xf32>
    %438 = vector.shape_cast %437 : vector<1x1x128xf32> to vector<1x128xf32>
    %439 = vector.broadcast %438 : vector<1x128xf32> to vector<8x128xf32>
    %440 = arith.addf %436, %439 : vector<8x128xf32>
    %441 = arith.truncf %440 : vector<8x128xf32> to vector<8x128xbf16>
    %c0_231 = arith.constant 0 : index
    %c0_232 = arith.constant 0 : index
    %442 = vector.load %arg15[%c0_231, %c0_232] : memref<128x4xbf16, #tpu.memory_space<vmem>>, vector<128x4xbf16>
    %cst_233 = arith.constant dense<0.000000e+00> : vector<8x4xf32>
    %443 = tpu.matmul %441, %442, %cst_233 {dimension_numbers = #tpu.dot_dimension_numbers<[1], [0], [0], [1], [0, 0, 1, 1], [], []>} : vector<8x128xbf16>, vector<128x4xbf16>, vector<8x4xf32> -> vector<8x4xf32>
    %c0_234 = arith.constant 0 : index
    %c0_235 = arith.constant 0 : index
    %444 = vector.load %arg16[%c0_234, %c0_235] : memref<1x4xf32, #tpu.memory_space<vmem>>, vector<1x4xf32>
    %445 = vector.broadcast %444 : vector<1x4xf32> to vector<8x4xf32>
    %446 = arith.addf %443, %445 : vector<8x4xf32>
    %c0_236 = arith.constant 0 : index
    %c0_237 = arith.constant 0 : index
    %c0_238 = arith.constant 0 : index
    %447 = vector.load %arg17[%c0_236, %c0_237, %c0_238] : memref<1x8x4xf32, #tpu.memory_space<vmem>>, vector<1x8x4xf32>
    %448 = vector.shape_cast %447 : vector<1x8x4xf32> to vector<8x4xf32>
    %449 = vector.shape_cast %446 : vector<8x4xf32> to vector<1x8x4xf32>
    tpu.vector_store %arg17[%c0_236, %c0_237, %c0_238], %449 {strides = array<i32>} : memref<1x8x4xf32, #tpu.memory_space<vmem>>, vector<1x8x4xf32>,
    return
  }
  func.func @transform_0(%arg0: i32) -> (i32, i32, i32) {
    %c0_i32 = arith.constant 0 : i32
    %c0_i32_0 = arith.constant 0 : i32
    %c0_i32_1 = arith.constant 0 : i32
    return %arg0, %c0_i32, %c0_i32_0 : i32, i32, i32
  }
  func.func @transform_1(%arg0: i32) -> (i32, i32, i32) {
    %c0_i32 = arith.constant 0 : i32
    %c0_i32_0 = arith.constant 0 : i32
    %c0_i32_1 = arith.constant 0 : i32
    return %arg0, %c0_i32, %c0_i32_0 : i32, i32, i32
  }
  func.func @transform_2(%arg0: i32) -> (i32, i32, i32, i32) {
    %c0_i32 = arith.constant 0 : i32
    %c0_i32_0 = arith.constant 0 : i32
    %c0_i32_1 = arith.constant 0 : i32
    %c0_i32_2 = arith.constant 0 : i32
    return %arg0, %c0_i32, %c0_i32_0, %c0_i32_1 : i32, i32, i32, i32
  }
  func.func @transform_3(%arg0: i32) -> (i32, i32, i32, i32) {
    %c0_i32 = arith.constant 0 : i32
    %c0_i32_0 = arith.constant 0 : i32
    %c0_i32_1 = arith.constant 0 : i32
    %c0_i32_2 = arith.constant 0 : i32
    return %arg0, %c0_i32, %c0_i32_0, %c0_i32_1 : i32, i32, i32, i32
  }
  func.func @transform_4(%arg0: i32) -> (i32, i32) {
    %c0_i32 = arith.constant 0 : i32
    %c0_i32_0 = arith.constant 0 : i32
    %c0_i32_1 = arith.constant 0 : i32
    return %c0_i32, %c0_i32_0 : i32, i32
  }
  func.func @transform_5(%arg0: i32) -> (i32, i32) {
    %c0_i32 = arith.constant 0 : i32
    %c0_i32_0 = arith.constant 0 : i32
    %c0_i32_1 = arith.constant 0 : i32
    return %c0_i32, %c0_i32_0 : i32, i32
  }
  func.func @transform_6(%arg0: i32) -> (i32, i32) {
    %c0_i32 = arith.constant 0 : i32
    %c0_i32_0 = arith.constant 0 : i32
    %c0_i32_1 = arith.constant 0 : i32
    return %c0_i32, %c0_i32_0 : i32, i32
  }
  func.func @transform_7(%arg0: i32) -> (i32, i32) {
    %c0_i32 = arith.constant 0 : i32
    %c0_i32_0 = arith.constant 0 : i32
    %c0_i32_1 = arith.constant 0 : i32
    return %c0_i32, %c0_i32_0 : i32, i32
  }
  func.func @transform_8(%arg0: i32) -> (i32, i32, i32) {
    %c0_i32 = arith.constant 0 : i32
    %c0_i32_0 = arith.constant 0 : i32
    %c0_i32_1 = arith.constant 0 : i32
    %c0_i32_2 = arith.constant 0 : i32
    return %c0_i32, %c0_i32_0, %c0_i32_1 : i32, i32, i32
  }
  func.func @transform_9(%arg0: i32) -> (i32, i32, i32) {
    %c0_i32 = arith.constant 0 : i32
    %c0_i32_0 = arith.constant 0 : i32
    %c0_i32_1 = arith.constant 0 : i32
    %c0_i32_2 = arith.constant 0 : i32
    return %c0_i32, %c0_i32_0, %c0_i32_1 : i32, i32, i32
  }
  func.func @transform_10(%arg0: i32) -> (i32, i32, i32) {
    %c0_i32 = arith.constant 0 : i32
    %c0_i32_0 = arith.constant 0 : i32
    %c0_i32_1 = arith.constant 0 : i32
    %c0_i32_2 = arith.constant 0 : i32
    return %c0_i32, %c0_i32_0, %c0_i32_1 : i32, i32, i32
  }
  func.func @transform_11(%arg0: i32) -> (i32, i32, i32) {
    %c0_i32 = arith.constant 0 : i32
    %c0_i32_0 = arith.constant 0 : i32
    %c0_i32_1 = arith.constant 0 : i32
    %c0_i32_2 = arith.constant 0 : i32
    return %c0_i32, %c0_i32_0, %c0_i32_1 : i32, i32, i32
  }
  func.func @transform_12(%arg0: i32) -> (i32, i32, i32) {
    %c0_i32 = arith.constant 0 : i32
    %c0_i32_0 = arith.constant 0 : i32
    %c0_i32_1 = arith.constant 0 : i32
    %c0_i32_2 = arith.constant 0 : i32
    return %c0_i32, %c0_i32_0, %c0_i32_1 : i32, i32, i32
  }
  func.func @transform_13(%arg0: i32) -> (i32, i32, i32) {
    %c0_i32 = arith.constant 0 : i32
    %c0_i32_0 = arith.constant 0 : i32
    %c0_i32_1 = arith.constant 0 : i32
    %c0_i32_2 = arith.constant 0 : i32
    return %c0_i32, %c0_i32_0, %c0_i32_1 : i32, i32, i32
  }
  func.func @transform_14(%arg0: i32) -> (i32, i32) {
    %c0_i32 = arith.constant 0 : i32
    %c0_i32_0 = arith.constant 0 : i32
    %c0_i32_1 = arith.constant 0 : i32
    return %c0_i32, %c0_i32_0 : i32, i32
  }
  func.func @transform_15(%arg0: i32) -> (i32, i32) {
    %c0_i32 = arith.constant 0 : i32
    %c0_i32_0 = arith.constant 0 : i32
    %c0_i32_1 = arith.constant 0 : i32
    return %c0_i32, %c0_i32_0 : i32, i32
  }
  func.func @transform_16(%arg0: i32) -> (i32, i32, i32) {
    %c0_i32 = arith.constant 0 : i32
    %c0_i32_0 = arith.constant 0 : i32
    %c0_i32_1 = arith.constant 0 : i32
    return %arg0, %c0_i32, %c0_i32_0 : i32, i32, i32
  }
}

</mosaic_0001>

<llo_original>
// kernel: _lambda_.1
$region0: #{_lambda_.1}
  #allocation0 [shape = 'u32[]', space=smem, size = 0x4, offset = 0x4, fixed_abs, tag = 'smem constant byte address 0x4 - core index']
  #allocation1 [shape = 'u32[72,128]{1,0:T(1,128)}', space=vmem, size = 0x9000, scoped, tag = 'internal scratch']
  %s0 = inlined_call_operand.vmem [shape: f32[2,8,8], index: 0, kind: input, shape index: {}]
  %s1 = inlined_call_operand.vmem [shape: f32[2,1,4], index: 1, kind: input, shape index: {}]
  %s2 = inlined_call_operand.vmem [shape: f32[2,4,8,8], index: 2, kind: input, shape index: {}]
  %s3 = inlined_call_operand.vmem [shape: f32[2,4,8,8], index: 3, kind: input, shape index: {}]
  %s4 = inlined_call_operand.vmem [shape: bf16[8,128], index: 4, kind: input, shape index: {}]
  %s5 = inlined_call_operand.vmem [shape: f32[1,128], index: 5, kind: input, shape index: {}]
  %s6 = inlined_call_operand.vmem [shape: bf16[4,128], index: 6, kind: input, shape index: {}]
  %s7 = inlined_call_operand.vmem [shape: f32[1,128], index: 7, kind: input, shape index: {}]
  %s8 = inlined_call_operand.vmem [shape: bf16[4,128,384], index: 8, kind: input, shape index: {}]
  %s9 = inlined_call_operand.vmem [shape: bf16[4,128,128], index: 9, kind: input, shape index: {}]
  %s10 = inlined_call_operand.vmem [shape: bf16[4,128,256], index: 10, kind: input, shape index: {}]
  %s11 = inlined_call_operand.vmem [shape: f32[4,1,256], index: 11, kind: input, shape index: {}]
  %s12 = inlined_call_operand.vmem [shape: bf16[4,256,128], index: 12, kind: input, shape index: {}]
  %s13 = inlined_call_operand.vmem [shape: f32[4,1,128], index: 13, kind: input, shape index: {}]
  %s14 = inlined_call_operand.vmem [shape: bf16[128,4], index: 14, kind: input, shape index: {}]
  %s15 = inlined_call_operand.vmem [shape: f32[1,4], index: 15, kind: input, shape index: {}]
  %s16 = inlined_call_operand.vmem [shape: f32[2,8,4], index: 16, kind: output, shape index: {}]
  %s17 = sld [smem:[#allocation0]]
  $region97: #{_lambda_.1} parent=0
    _
  %s19 = ssub.s32 1, %s17
  %s20 = scalar_select 0, %s19, %s17
  loop: start=0, step=1, limit=4
  $region2: #{_lambda_.1} parent=0 // loop_pre_header
    _
  $region3: #{_lambda_.1} parent=0 // loop_header
    %s22 = sphi 0, %s26
    %p23 = scmp.ge.s32.totalorder %s22, 4
    %s32 = sphi 0, %s34
    %s35 = sphi 0, %s32
    %s36 = sphi 0, %s35
    %s52 = sphi 0, %s36
    %s58 = sphi 0, %s60
    %s61 = sphi 0, %s58
    %s62 = sphi 0, %s61
    %s78 = sphi 0, %s62
    %s84 = sphi 0, %s86
    %s87 = sphi 0, %s84
    %s88 = sphi 0, %s87
    %s104 = sphi 0, %s88
    %s110 = sphi 0, %s112
    %s113 = sphi 0, %s110
    %s114 = sphi 0, %s113
    %s130 = sphi 0, %s114
    %s134 = sphi 0, %s134
    %s136 = sphi 0, %s134
    %s137 = sphi 0, %s136
    %s151 = sphi 0, %s137
    %s155 = sphi 0, %s155
    %s157 = sphi 0, %s155
    %s158 = sphi 0, %s157
    %s172 = sphi 0, %s158
    %s176 = sphi 0, %s176
    %s178 = sphi 0, %s176
    %s179 = sphi 0, %s178
    %s193 = sphi 0, %s179
    %s197 = sphi 0, %s197
    %s199 = sphi 0, %s197
    %s200 = sphi 0, %s199
    %s214 = sphi 0, %s200
    %s218 = sphi 0, %s218
    %s220 = sphi 0, %s218
    %s221 = sphi 0, %s220
    %s235 = sphi 0, %s221
    %s239 = sphi 0, %s239
    %s241 = sphi 0, %s239
    %s242 = sphi 0, %s241
    %s256 = sphi 0, %s242
    %s260 = sphi 0, %s260
    %s262 = sphi 0, %s260
    %s263 = sphi 0, %s262
    %s277 = sphi 0, %s263
    %s281 = sphi 0, %s281
    %s283 = sphi 0, %s281
    %s284 = sphi 0, %s283
    %s298 = sphi 0, %s284
    %s302 = sphi 0, %s302
    %s304 = sphi 0, %s302
    %s305 = sphi 0, %s304
    %s319 = sphi 0, %s305
    %s323 = sphi 0, %s323
    %s325 = sphi 0, %s323
    %s326 = sphi 0, %s325
    %s340 = sphi 0, %s326
    %s344 = sphi 0, %s344
    %s346 = sphi 0, %s344
    %s347 = sphi 0, %s346
    %s361 = sphi 0, %s347
    %s365 = sphi 0, %s365
    %s367 = sphi 0, %s365
    %s368 = sphi 0, %s367
    %s382 = sphi 0, %s368
    %s388 = sphi 0, %s390
    %s391 = sphi 0, %s388
    %s392 = sphi 0, %s391
    %s408 = sphi 0, %s392
  $region4: #{_lambda_.1} parent=0 // loop_header_branch
    %25 = sbr.rel (%p23) target = $region8
  $region5: #{_lambda_.1} parent=0 // loop_body
    %s27 = ssub.s32 %s22, 1
    %s28 = ssub.s32 %s22, 2
    %s29 = sadd.s32 %s22, 1
    %s30 = ssub.s32 %s22, %s29
    %p31 = scmp.eq.s32.totalorder %s30, 0
    %s33 = sadd.s32 %s32, 1
    %s34 = scalar_select %p31, %s32, %s33
    %p37 = pneg %p31
    %p38 = scmp.eq.s32.totalorder %s22, 1
    %p39 = por %p37, %p38
    %p40 = scmp.ne.s32.totalorder %s32, %s35
    %p41 = scmp.eq.s32.totalorder %s22, 0
    %p42 = por %p40, %p41
    %p43 = scmp.ne.s32.totalorder %s32, %s35
    %p44 = scmp.eq.s32.totalorder %s27, 1
    %p45 = por %p43, %p44
    %p46 = scmp.ne.s32.totalorder %s35, %s36
    %p47 = scmp.eq.s32.totalorder %s27, 0
    %p48 = por %p46, %p47
    %p49 = scmp.ne.s32.totalorder %s35, %s36
    %p50 = scmp.eq.s32.totalorder %s28, 1
    %p51 = por %p49, %p50
    %p53 = scmp.ne.s32.totalorder %s36, %s52
    %p54 = scmp.eq.s32.totalorder %s28, 0
    %p55 = por %p53, %p54
    %s56 = ssub.s32 %s22, %s29
    %p57 = scmp.eq.s32.totalorder %s56, 0
    %s59 = sadd.s32 %s58, 1
    %s60 = scalar_select %p57, %s58, %s59
    %p63 = pneg %p57
    %p64 = scmp.eq.s32.totalorder %s22, 1
    %p65 = por %p63, %p64
    %p66 = scmp.ne.s32.totalorder %s58, %s61
    %p67 = scmp.eq.s32.totalorder %s22, 0
    %p68 = por %p66, %p67
    %p69 = scmp.ne.s32.totalorder %s58, %s61
    %p70 = scmp.eq.s32.totalorder %s27, 1
    %p71 = por %p69, %p70
    %p72 = scmp.ne.s32.totalorder %s61, %s62
    %p73 = scmp.eq.s32.totalorder %s27, 0
    %p74 = por %p72, %p73
    %p75 = scmp.ne.s32.totalorder %s61, %s62
    %p76 = scmp.eq.s32.totalorder %s28, 1
    %p77 = por %p75, %p76
    %p79 = scmp.ne.s32.totalorder %s62, %s78
    %p80 = scmp.eq.s32.totalorder %s28, 0
    %p81 = por %p79, %p80
    %s82 = ssub.s32 %s22, %s29
    %p83 = scmp.eq.s32.totalorder %s82, 0
    %s85 = sadd.s32 %s84, 1
    %s86 = scalar_select %p83, %s84, %s85
    %p89 = pneg %p83
    %p90 = scmp.eq.s32.totalorder %s22, 1
    %p91 = por %p89, %p90
    %p92 = scmp.ne.s32.totalorder %s84, %s87
    %p93 = scmp.eq.s32.totalorder %s22, 0
    %p94 = por %p92, %p93
    %p95 = scmp.ne.s32.totalorder %s84, %s87
    %p96 = scmp.eq.s32.totalorder %s27, 1
    %p97 = por %p95, %p96
    %p98 = scmp.ne.s32.totalorder %s87, %s88
    %p99 = scmp.eq.s32.totalorder %s27, 0
    %p100 = por %p98, %p99
    %p101 = scmp.ne.s32.totalorder %s87, %s88
    %p102 = scmp.eq.s32.totalorder %s28, 1
    %p103 = por %p101, %p102
    %p105 = scmp.ne.s32.totalorder %s88, %s104
    %p106 = scmp.eq.s32.totalorder %s28, 0
    %p107 = por %p105, %p106
    %s108 = ssub.s32 %s22, %s29
    %p109 = scmp.eq.s32.totalorder %s108, 0
    %s111 = sadd.s32 %s110, 1
    %s112 = scalar_select %p109, %s110, %s111
    %p115 = pneg %p109
    %p116 = scmp.eq.s32.totalorder %s22, 1
    %p117 = por %p115, %p116
    %p118 = scmp.ne.s32.totalorder %s110, %s113
    %p119 = scmp.eq.s32.totalorder %s22, 0
    %p120 = por %p118, %p119
    %p121 = scmp.ne.s32.totalorder %s110, %s113
    %p122 = scmp.eq.s32.totalorder %s27, 1
    %p123 = por %p121, %p122
    %p124 = scmp.ne.s32.totalorder %s113, %s114
    %p125 = scmp.eq.s32.totalorder %s27, 0
    %p126 = por %p124, %p125
    %p127 = scmp.ne.s32.totalorder %s113, %s114
    %p128 = scmp.eq.s32.totalorder %s28, 1
    %p129 = por %p127, %p128
    %p131 = scmp.ne.s32.totalorder %s114, %s130
    %p132 = scmp.eq.s32.totalorder %s28, 0
    %p133 = por %p131, %p132
    %s135 = sadd.s32 %s134, 1
    %p138 = scmp.eq.s32.totalorder %s22, 1
    %p139 = scmp.ne.s32.totalorder %s134, %s136
    %p140 = scmp.eq.s32.totalorder %s22, 0
    %p141 = por %p139, %p140
    %p142 = scmp.ne.s32.totalorder %s134, %s136
    %p143 = scmp.eq.s32.totalorder %s27, 1
    %p144 = por %p142, %p143
    %p145 = scmp.ne.s32.totalorder %s136, %s137
    %p146 = scmp.eq.s32.totalorder %s27, 0
    %p147 = por %p145, %p146
    %p148 = scmp.ne.s32.totalorder %s136, %s137
    %p149 = scmp.eq.s32.totalorder %s28, 1
    %p150 = por %p148, %p149
    %p152 = scmp.ne.s32.totalorder %s137, %s151
    %p153 = scmp.eq.s32.totalorder %s28, 0
    %p154 = por %p152, %p153
    %s156 = sadd.s32 %s155, 1
    %p159 = scmp.eq.s32.totalorder %s22, 1
    %p160 = scmp.ne.s32.totalorder %s155, %s157
    %p161 = scmp.eq.s32.totalorder %s22, 0
    %p162 = por %p160, %p161
    %p163 = scmp.ne.s32.totalorder %s155, %s157
    %p164 = scmp.eq.s32.totalorder %s27, 1
    %p165 = por %p163, %p164
    %p166 = scmp.ne.s32.totalorder %s157, %s158
    %p167 = scmp.eq.s32.totalorder %s27, 0
    %p168 = por %p166, %p167
    %p169 = scmp.ne.s32.totalorder %s157, %s158
    %p170 = scmp.eq.s32.totalorder %s28, 1
    %p171 = por %p169, %p170
    %p173 = scmp.ne.s32.totalorder %s158, %s172
    %p174 = scmp.eq.s32.totalorder %s28, 0
    %p175 = por %p173, %p174
    %s177 = sadd.s32 %s176, 1
    %p180 = scmp.eq.s32.totalorder %s22, 1
    %p181 = scmp.ne.s32.totalorder %s176, %s178
    %p182 = scmp.eq.s32.totalorder %s22, 0
    %p183 = por %p181, %p182
    %p184 = scmp.ne.s32.totalorder %s176, %s178
    %p185 = scmp.eq.s32.totalorder %s27, 1
    %p186 = por %p184, %p185
    %p187 = scmp.ne.s32.totalorder %s178, %s179
    %p188 = scmp.eq.s32.totalorder %s27, 0
    %p189 = por %p187, %p188
    %p190 = scmp.ne.s32.totalorder %s178, %s179
    %p191 = scmp.eq.s32.totalorder %s28, 1
    %p192 = por %p190, %p191
    %p194 = scmp.ne.s32.totalorder %s179, %s193
    %p195 = scmp.eq.s32.totalorder %s28, 0
    %p196 = por %p194, %p195
    %s198 = sadd.s32 %s197, 1
    %p201 = scmp.eq.s32.totalorder %s22, 1
    %p202 = scmp.ne.s32.totalorder %s197, %s199
    %p203 = scmp.eq.s32.totalorder %s22, 0
    %p204 = por %p202, %p203
    %p205 = scmp.ne.s32.totalorder %s197, %s199
    %p206 = scmp.eq.s32.totalorder %s27, 1
    %p207 = por %p205, %p206
    %p208 = scmp.ne.s32.totalorder %s199, %s200
    %p209 = scmp.eq.s32.totalorder %s27, 0
    %p210 = por %p208, %p209
    %p211 = scmp.ne.s32.totalorder %s199, %s200
    %p212 = scmp.eq.s32.totalorder %s28, 1
    %p213 = por %p211, %p212
    %p215 = scmp.ne.s32.totalorder %s200, %s214
    %p216 = scmp.eq.s32.totalorder %s28, 0
    %p217 = por %p215, %p216
    %s219 = sadd.s32 %s218, 1
    %p222 = scmp.eq.s32.totalorder %s22, 1
    %p223 = scmp.ne.s32.totalorder %s218, %s220
    %p224 = scmp.eq.s32.totalorder %s22, 0
    %p225 = por %p223, %p224
    %p226 = scmp.ne.s32.totalorder %s218, %s220
    %p227 = scmp.eq.s32.totalorder %s27, 1
    %p228 = por %p226, %p227
    %p229 = scmp.ne.s32.totalorder %s220, %s221
    %p230 = scmp.eq.s32.totalorder %s27, 0
    %p231 = por %p229, %p230
    %p232 = scmp.ne.s32.totalorder %s220, %s221
    %p233 = scmp.eq.s32.totalorder %s28, 1
    %p234 = por %p232, %p233
    %p236 = scmp.ne.s32.totalorder %s221, %s235
    %p237 = scmp.eq.s32.totalorder %s28, 0
    %p238 = por %p236, %p237
    %s240 = sadd.s32 %s239, 1
    %p243 = scmp.eq.s32.totalorder %s22, 1
    %p244 = scmp.ne.s32.totalorder %s239, %s241
    %p245 = scmp.eq.s32.totalorder %s22, 0
    %p246 = por %p244, %p245
    %p247 = scmp.ne.s32.totalorder %s239, %s241
    %p248 = scmp.eq.s32.totalorder %s27, 1
    %p249 = por %p247, %p248
    %p250 = scmp.ne.s32.totalorder %s241, %s242
    %p251 = scmp.eq.s32.totalorder %s27, 0
    %p252 = por %p250, %p251
    %p253 = scmp.ne.s32.totalorder %s241, %s242
    %p254 = scmp.eq.s32.totalorder %s28, 1
    %p255 = por %p253, %p254
    %p257 = scmp.ne.s32.totalorder %s242, %s256
    %p258 = scmp.eq.s32.totalorder %s28, 0
    %p259 = por %p257, %p258
    %s261 = sadd.s32 %s260, 1
    %p264 = scmp.eq.s32.totalorder %s22, 1
    %p265 = scmp.ne.s32.totalorder %s260, %s262
    %p266 = scmp.eq.s32.totalorder %s22, 0
    %p267 = por %p265, %p266
    %p268 = scmp.ne.s32.totalorder %s260, %s262
    %p269 = scmp.eq.s32.totalorder %s27, 1
    %p270 = por %p268, %p269
    %p271 = scmp.ne.s32.totalorder %s262, %s263
    %p272 = scmp.eq.s32.totalorder %s27, 0
    %p273 = por %p271, %p272
    %p274 = scmp.ne.s32.totalorder %s262, %s263
    %p275 = scmp.eq.s32.totalorder %s28, 1
    %p276 = por %p274, %p275
    %p278 = scmp.ne.s32.totalorder %s263, %s277
    %p279 = scmp.eq.s32.totalorder %s28, 0
    %p280 = por %p278, %p279
    %s282 = sadd.s32 %s281, 1
    %p285 = scmp.eq.s32.totalorder %s22, 1
    %p286 = scmp.ne.s32.totalorder %s281, %s283
    %p287 = scmp.eq.s32.totalorder %s22, 0
    %p288 = por %p286, %p287
    %p289 = scmp.ne.s32.totalorder %s281, %s283
    %p290 = scmp.eq.s32.totalorder %s27, 1
    %p291 = por %p289, %p290
    %p292 = scmp.ne.s32.totalorder %s283, %s284
    %p293 = scmp.eq.s32.totalorder %s27, 0
    %p294 = por %p292, %p293
    %p295 = scmp.ne.s32.totalorder %s283, %s284
    %p296 = scmp.eq.s32.totalorder %s28, 1
    %p297 = por %p295, %p296
    %p299 = scmp.ne.s32.totalorder %s284, %s298
    %p300 = scmp.eq.s32.totalorder %s28, 0
    %p301 = por %p299, %p300
    %s303 = sadd.s32 %s302, 1
    %p306 = scmp.eq.s32.totalorder %s22, 1
    %p307 = scmp.ne.s32.totalorder %s302, %s304
    %p308 = scmp.eq.s32.totalorder %s22, 0
    %p309 = por %p307, %p308
    %p310 = scmp.ne.s32.totalorder %s302, %s304
    %p311 = scmp.eq.s32.totalorder %s27, 1
    %p312 = por %p310, %p311
    %p313 = scmp.ne.s32.totalorder %s304, %s305
    %p314 = scmp.eq.s32.totalorder %s27, 0
    %p315 = por %p313, %p314
    %p316 = scmp.ne.s32.totalorder %s304, %s305
    %p317 = scmp.eq.s32.totalorder %s28, 1
    %p318 = por %p316, %p317
    %p320 = scmp.ne.s32.totalorder %s305, %s319
    %p321 = scmp.eq.s32.totalorder %s28, 0
    %p322 = por %p320, %p321
    %s324 = sadd.s32 %s323, 1
    %p327 = scmp.eq.s32.totalorder %s22, 1
    %p328 = scmp.ne.s32.totalorder %s323, %s325
    %p329 = scmp.eq.s32.totalorder %s22, 0
    %p330 = por %p328, %p329
    %p331 = scmp.ne.s32.totalorder %s323, %s325
    %p332 = scmp.eq.s32.totalorder %s27, 1
    %p333 = por %p331, %p332
    %p334 = scmp.ne.s32.totalorder %s325, %s326
    %p335 = scmp.eq.s32.totalorder %s27, 0
    %p336 = por %p334, %p335
    %p337 = scmp.ne.s32.totalorder %s325, %s326
    %p338 = scmp.eq.s32.totalorder %s28, 1
    %p339 = por %p337, %p338
    %p341 = scmp.ne.s32.totalorder %s326, %s340
    %p342 = scmp.eq.s32.totalorder %s28, 0
    %p343 = por %p341, %p342
    %s345 = sadd.s32 %s344, 1
    %p348 = scmp.eq.s32.totalorder %s22, 1
    %p349 = scmp.ne.s32.totalorder %s344, %s346
    %p350 = scmp.eq.s32.totalorder %s22, 0
    %p351 = por %p349, %p350
    %p352 = scmp.ne.s32.totalorder %s344, %s346
    %p353 = scmp.eq.s32.totalorder %s27, 1
    %p354 = por %p352, %p353
    %p355 = scmp.ne.s32.totalorder %s346, %s347
    %p356 = scmp.eq.s32.totalorder %s27, 0
    %p357 = por %p355, %p356
    %p358 = scmp.ne.s32.totalorder %s346, %s347
    %p359 = scmp.eq.s32.totalorder %s28, 1
    %p360 = por %p358, %p359
    %p362 = scmp.ne.s32.totalorder %s347, %s361
    %p363 = scmp.eq.s32.totalorder %s28, 0
    %p364 = por %p362, %p363
    %s366 = sadd.s32 %s365, 1
    %p369 = scmp.eq.s32.totalorder %s22, 1
    %p370 = scmp.ne.s32.totalorder %s365, %s367
    %p371 = scmp.eq.s32.totalorder %s22, 0
    %p372 = por %p370, %p371
    %p373 = scmp.ne.s32.totalorder %s365, %s367
    %p374 = scmp.eq.s32.totalorder %s27, 1
    %p375 = por %p373, %p374
    %p376 = scmp.ne.s32.totalorder %s367, %s368
    %p377 = scmp.eq.s32.totalorder %s27, 0
    %p378 = por %p376, %p377
    %p379 = scmp.ne.s32.totalorder %s367, %s368
    %p380 = scmp.eq.s32.totalorder %s28, 1
    %p381 = por %p379, %p380
    %p383 = scmp.ne.s32.totalorder %s368, %s382
    %p384 = scmp.eq.s32.totalorder %s28, 0
    %p385 = por %p383, %p384
    %s386 = ssub.s32 %s22, %s29
    %p387 = scmp.eq.s32.totalorder %s386, 0
    %s389 = sadd.s32 %s388, 1
    %s390 = scalar_select %p387, %s388, %s389
    %p393 = pneg %p387
    %p394 = scmp.eq.s32.totalorder %s22, 1
    %p395 = por %p393, %p394
    %p396 = scmp.ne.s32.totalorder %s388, %s391
    %p397 = scmp.eq.s32.totalorder %s22, 0
    %p398 = por %p396, %p397
    %p399 = scmp.ne.s32.totalorder %s388, %s391
    %p400 = scmp.eq.s32.totalorder %s27, 1
    %p401 = por %p399, %p400
    %p402 = scmp.ne.s32.totalorder %s391, %s392
    %p403 = scmp.eq.s32.totalorder %s27, 0
    %p404 = por %p402, %p403
    %p405 = scmp.ne.s32.totalorder %s391, %s392
    %p406 = scmp.eq.s32.totalorder %s28, 1
    %p407 = por %p405, %p406
    %p409 = scmp.ne.s32.totalorder %s392, %s408
    %p410 = scmp.eq.s32.totalorder %s28, 0
    %p411 = por %p409, %p410
    %p412 = scmp.le.s32.totalorder 1, %s22
    %p413 = scmp.lt.s32.totalorder %s22, 3
    %p414 = pnand %p412, %p413
    %p415 = pneg %p414
    // Predicated region
    $region9: #{_lambda_.1} parent=5 // pred_check
      _
    $region10: #{_lambda_.1} parent=5 // pred_check_branch
      %417 = sbr.rel (%p414) target = $region12
    $region11: #{_lambda_.1} parent=5 // pred_region
      %s418 = ssub.s32 %s22, 1
      // Predicated region
      $region13: #{_lambda_.1} parent=11 // pred_check
        %p419 = pneg %p147
      $region14: #{_lambda_.1} parent=11 // pred_check_branch
        %421 = sbr.rel (%p419) target = $region16
      $region15: #{_lambda_.1} parent=11 // pred_region
        _
      $region16: #{_lambda_.1} parent=11 // pred_fallthru
        _
      // Predicated region
      $region17: #{_lambda_.1} parent=11 // pred_check
        %p422 = pneg %p168
      $region18: #{_lambda_.1} parent=11 // pred_check_branch
        %424 = sbr.rel (%p422) target = $region20
      $region19: #{_lambda_.1} parent=11 // pred_region
        _
      $region20: #{_lambda_.1} parent=11 // pred_fallthru
        _
      // Predicated region
      $region21: #{_lambda_.1} parent=11 // pred_check
        %p425 = pneg %p189
      $region22: #{_lambda_.1} parent=11 // pred_check_branch
        %427 = sbr.rel (%p425) target = $region24
      $region23: #{_lambda_.1} parent=11 // pred_region
        _
      $region24: #{_lambda_.1} parent=11 // pred_fallthru
        _
      // Predicated region
      $region25: #{_lambda_.1} parent=11 // pred_check
        %p428 = pneg %p210
      $region26: #{_lambda_.1} parent=11 // pred_check_branch
        %430 = sbr.rel (%p428) target = $region28
      $region27: #{_lambda_.1} parent=11 // pred_region
        _
      $region28: #{_lambda_.1} parent=11 // pred_fallthru
        _
      // Predicated region
      $region29: #{_lambda_.1} parent=11 // pred_check
        %p431 = pneg %p231
      $region30: #{_lambda_.1} parent=11 // pred_check_branch
        %433 = sbr.rel (%p431) target = $region32
      $region31: #{_lambda_.1} parent=11 // pred_region
        _
      $region32: #{_lambda_.1} parent=11 // pred_fallthru
        _
      // Predicated region
      $region33: #{_lambda_.1} parent=11 // pred_check
        %p434 = pneg %p252
      $region34: #{_lambda_.1} parent=11 // pred_check_branch
        %436 = sbr.rel (%p434) target = $region36
      $region35: #{_lambda_.1} parent=11 // pred_region
        _
      $region36: #{_lambda_.1} parent=11 // pred_fallthru
        _
      // Predicated region
      $region37: #{_lambda_.1} parent=11 // pred_check
        %p437 = pneg %p273
      $region38: #{_lambda_.1} parent=11 // pred_check_branch
        %439 = sbr.rel (%p437) target = $region40
      $region39: #{_lambda_.1} parent=11 // pred_region
        _
      $region40: #{_lambda_.1} parent=11 // pred_fallthru
        _
      // Predicated region
      $region41: #{_lambda_.1} parent=11 // pred_check
        %p440 = pneg %p294
      $region42: #{_lambda_.1} parent=11 // pred_check_branch
        %442 = sbr.rel (%p440) target = $region44
      $region43: #{_lambda_.1} parent=11 // pred_region
        _
      $region44: #{_lambda_.1} parent=11 // pred_fallthru
        _
      // Predicated region
      $region45: #{_lambda_.1} parent=11 // pred_check
        %p443 = pneg %p315
      $region46: #{_lambda_.1} parent=11 // pred_check_branch
        %445 = sbr.rel (%p443) target = $region48
      $region47: #{_lambda_.1} parent=11 // pred_region
        _
      $region48: #{_lambda_.1} parent=11 // pred_fallthru
        _
      // Predicated region
      $region49: #{_lambda_.1} parent=11 // pred_check
        %p446 = pneg %p336
      $region50: #{_lambda_.1} parent=11 // pred_check_branch
        %448 = sbr.rel (%p446) target = $region52
      $region51: #{_lambda_.1} parent=11 // pred_region
        _
      $region52: #{_lambda_.1} parent=11 // pred_fallthru
        _
      // Predicated region
      $region53: #{_lambda_.1} parent=11 // pred_check
        %p449 = pneg %p357
      $region54: #{_lambda_.1} parent=11 // pred_check_branch
        %451 = sbr.rel (%p449) target = $region56
      $region55: #{_lambda_.1} parent=11 // pred_region
        _
      $region56: #{_lambda_.1} parent=11 // pred_fallthru
        _
      // Predicated region
      $region57: #{_lambda_.1} parent=11 // pred_check
        %p452 = pneg %p378
      $region58: #{_lambda_.1} parent=11 // pred_check_branch
        %454 = sbr.rel (%p452) target = $region60
      $region59: #{_lambda_.1} parent=11 // pred_region
        _
      $region60: #{_lambda_.1} parent=11 // pred_fallthru
        _
    $region12: #{_lambda_.1} parent=5 // pred_fallthru
      _
    %p455 = scmp.lt.s32.totalorder %s22, 2
    // Predicated region
    $region61: #{_lambda_.1} parent=5 // pred_check
      %p456 = pneg %p455
    $region62: #{_lambda_.1} parent=5 // pred_check_branch
      %458 = sbr.rel (%p456) target = $region64
    $region63: #{_lambda_.1} parent=5 // pred_region
      // Predicated region
      $region65: #{_lambda_.1} parent=63 // pred_check
        %p459 = pneg %p42
      $region66: #{_lambda_.1} parent=63 // pred_check_branch
        %461 = sbr.rel (%p459) target = $region68
      $region67: #{_lambda_.1} parent=63 // pred_region
        %p462 = scmp.lt.s32.totalorder %s22, 1
        %s463 = scalar_select %p462, %s22, 1
        %s464 = smul.addr %s463, 8
        %s465 = scalar_lea.vmem %s0, %s464
      $region68: #{_lambda_.1} parent=63 // pred_fallthru
        _
      // Predicated region
      $region69: #{_lambda_.1} parent=63 // pred_check
        %p466 = pneg %p68
      $region70: #{_lambda_.1} parent=63 // pred_check_branch
        %468 = sbr.rel (%p466) target = $region72
      $region71: #{_lambda_.1} parent=63 // pred_region
        %p469 = scmp.lt.s32.totalorder %s22, 1
        %s470 = scalar_select %p469, %s22, 1
        %s471 = scalar_lea.vmem %s1, %s470
      $region72: #{_lambda_.1} parent=63 // pred_fallthru
        _
      // Predicated region
      $region73: #{_lambda_.1} parent=63 // pred_check
        %p472 = pneg %p94
      $region74: #{_lambda_.1} parent=63 // pred_check_branch
        %474 = sbr.rel (%p472) target = $region76
      $region75: #{_lambda_.1} parent=63 // pred_region
        %p475 = scmp.lt.s32.totalorder %s22, 1
        %s476 = scalar_select %p475, %s22, 1
        %s477 = smul.addr %s476, 4
        %s478 = smul.addr %s477, 8
        %s479 = scalar_lea.vmem %s2, %s478
      $region76: #{_lambda_.1} parent=63 // pred_fallthru
        _
      // Predicated region
      $region77: #{_lambda_.1} parent=63 // pred_check
        %p480 = pneg %p120
      $region78: #{_lambda_.1} parent=63 // pred_check_branch
        %482 = sbr.rel (%p480) target = $region80
      $region79: #{_lambda_.1} parent=63 // pred_region
        %p483 = scmp.lt.s32.totalorder %s22, 1
        %s484 = scalar_select %p483, %s22, 1
        %s485 = smul.addr %s484, 4
        %s486 = smul.addr %s485, 8
        %s487 = scalar_lea.vmem %s3, %s486
      $region80: #{_lambda_.1} parent=63 // pred_fallthru
        _
    $region64: #{_lambda_.1} parent=5 // pred_fallthru
      _
    %p488 = scmp.le.s32.totalorder 1, %s22
    %p489 = scmp.lt.s32.totalorder %s22, 3
    %p490 = pnand %p488, %p489
    %p491 = pneg %p490
    // Predicated region
    $region81: #{_lambda_.1} parent=5 // pred_check
      _
    $region82: #{_lambda_.1} parent=5 // pred_check_branch
      %493 = sbr.rel (%p490) target = $region84
    $region83: #{_lambda_.1} parent=5 // pred_region
      %s494 = ssub.s32 %s22, 1
      %p495 = scmp.lt.s32.totalorder %s27, 1
      %s496 = scalar_select %p495, %s27, 1
      %s497 = smul.addr %s496, 8
      %s498 = scalar_lea.vmem %s0, %s497
      %p499 = pneg %p48
      %p500 = pneg %p45
      %p501 = scmp.lt.s32.totalorder %s27, 1
      %s502 = scalar_select %p501, %s27, 1
      %s503 = scalar_lea.vmem %s1, %s502
      %p504 = pneg %p74
      %p505 = pneg %p71
      %p506 = scmp.lt.s32.totalorder %s27, 1
      %s507 = scalar_select %p506, %s27, 1
      %s508 = smul.addr %s507, 4
      %s509 = smul.addr %s508, 8
      %s510 = scalar_lea.vmem %s2, %s509
      %p511 = pneg %p100
      %p512 = pneg %p97
      %p513 = scmp.lt.s32.totalorder %s27, 1
      %s514 = scalar_select %p513, %s27, 1
      %s515 = smul.addr %s514, 4
      %s516 = smul.addr %s515, 8
      %s517 = scalar_lea.vmem %s3, %s516
      %p518 = pneg %p126
      %p519 = pneg %p123
      %p520 = pneg %p147
      %p521 = pneg %p144
      %p522 = pneg %p168
      %p523 = pneg %p165
      %p524 = pneg %p189
      %p525 = pneg %p186
      %p526 = pneg %p210
      %p527 = pneg %p207
      %p528 = pneg %p231
      %p529 = pneg %p228
      %p530 = pneg %p252
      %p531 = pneg %p249
      %p532 = pneg %p273
      %p533 = pneg %p270
      %p534 = pneg %p294
      %p535 = pneg %p291
      %p536 = pneg %p315
      %p537 = pneg %p312
      %p538 = pneg %p336
      %p539 = pneg %p333
      %p540 = pneg %p357
      %p541 = pneg %p354
      %p542 = pneg %p378
      %p543 = pneg %p375
      %p544 = pneg %p404
      %p545 = pneg %p401
      %p546 = scmp.lt.s32.totalorder %s27, 1
      %s547 = scalar_select %p546, %s27, 1
      %s548 = smul.addr %s547, 8
      %s549 = scalar_lea.vmem %s16, %s548
      %p550 = scmp.lt.s32.totalorder %s27, 1
      %s551 = scalar_select %p550, %s27, 1
      %s552 = smul.addr %s551, 8
      %s553 = scalar_lea.vmem %s0, %s552
      %p554 = scmp.lt.s32.totalorder %s27, 1
      %s555 = scalar_select %p554, %s27, 1
      %s556 = scalar_lea.vmem %s1, %s555
      %p557 = scmp.lt.s32.totalorder %s27, 1
      %s558 = scalar_select %p557, %s27, 1
      %s559 = smul.addr %s558, 4
      %s560 = smul.addr %s559, 8
      %s561 = scalar_lea.vmem %s2, %s560
      %p562 = scmp.lt.s32.totalorder %s27, 1
      %s563 = scalar_select %p562, %s27, 1
      %s564 = smul.addr %s563, 4
      %s565 = smul.addr %s564, 8
      %s566 = scalar_lea.vmem %s3, %s565
      %p567 = scmp.lt.s32.totalorder %s27, 1
      %s568 = scalar_select %p567, %s27, 1
      %s569 = smul.addr %s568, 8
      %s570 = scalar_lea.vmem %s16, %s569
      %v572 = vld [vmem:[%s553] sm:$0xff]
      %v573 = vpack.c.bf16 %v572, %v572
      %v574 = vld [vmem:[%s4] sm:$0xf]
      %v575 = vld [vmem:[%s5] sm:$0x1]
      %v577 = vperm.slane %v575, 0
      %vm579 = vcmask 64512
      %v581 = vsel %vm579, %v573, 0
      %vm583 = vcmask 1043456
      %v585 = vsel %vm583, %v574, 0
      %587 = vmatpush.bf16.msra.mxu0 0
      %588 = vmatpush.bf16.msra.mxu0 0
      %589 = vmatpush.bf16.msra.mxu0 0
      %590 = vmatpush.bf16.msra.mxu0 0
      %591 = vmatpush.bf16.msra.mxu0 0
      %592 = vmatpush.bf16.msra.mxu0 0
      %593 = vmatpush.bf16.msra.mxu0 0
      %594 = vmatpush.bf16.msra.mxu0 %v585
      %595 = vmatmul.bf16.gmra.mxu0 %v581
      %v596 = vpop.f32.mrf.mxu0
      %v597 = vadd.f32 %v577, %v596
      %v598 = vpop.f32.mrf.mxu0
      %599 = vdwg.mxu0
      %v600 = vld [vmem:[%s556] sm:$0x1]
      %v601 = vpack.c.bf16 %v600, %v600
      %v602 = vld [vmem:[%s6] sm:$0x3]
      %v603 = vld [vmem:[%s7] sm:$0x1]
      %vm604 = vcmask 31744
      %v606 = vsel %vm604, %v601, 0
      %vm608 = vcmask 1041408
      %v610 = vsel %vm608, %v602, 0
      %612 = vmatpush.bf16.msra.mxu0 0
      %613 = vmatpush.bf16.msra.mxu0 0
      %614 = vmatpush.bf16.msra.mxu0 0
      %615 = vmatpush.bf16.msra.mxu0 0
      %616 = vmatpush.bf16.msra.mxu0 0
      %617 = vmatpush.bf16.msra.mxu0 0
      %618 = vmatpush.bf16.msra.mxu0 0
      %619 = vmatpush.bf16.msra.mxu0 %v610
      %620 = vmatmul.bf16.gmra.mxu0 %v606
      %v621 = vpop.f32.mrf.mxu0
      %v622 = vadd.f32 %v603, %v621
      %v623 = vpop.f32.mrf.mxu0
      %624 = vdwg.mxu0
      %v625 = vperm.slane %v622, 0
      %v626 = vadd.f32 %v597, %v625
      %v627 = vpack.c.bf16 %v626, %v626
      %v628 = vld [vmem:[%s8] sm:$0xff]
      %v629 = vld [vmem:[%s8 + $0x8] sm:$0xf]
      %v630 = vld [vmem:[%s8 + $0xc] sm:$0xff]
      %v631 = vld [vmem:[%s8 + $0x14] sm:$0xf]
      %v632 = vld [vmem:[%s8 + $0x18] sm:$0xff]
      %v633 = vld [vmem:[%s8 + $0x20] sm:$0xf]
      %v634 = vld [vmem:[%s8 + $0x24] sm:$0xff]
      %v635 = vld [vmem:[%s8 + $0x2c] sm:$0xf]
      %v636 = vld [vmem:[%s8 + $0x30] sm:$0xff]
      %v637 = vld [vmem:[%s8 + $0x38] sm:$0xf]
      %v638 = vld [vmem:[%s8 + $0x3c] sm:$0xff]
      %v639 = vld [vmem:[%s8 + $0x44] sm:$0xf]
      %v640 = vld [vmem:[%s8 + $0x48] sm:$0xff]
      %v641 = vld [vmem:[%s8 + $0x50] sm:$0xf]
      %v642 = vld [vmem:[%s8 + $0x54] sm:$0xff]
      %v643 = vld [vmem:[%s8 + $0x5c] sm:$0xf]
      %v644 = vld [vmem:[%s8 + $0x60] sm:$0xff]
      %v645 = vld [vmem:[%s8 + $0x68] sm:$0xf]
      %v646 = vld [vmem:[%s8 + $0x6c] sm:$0xff]
      %v647 = vld [vmem:[%s8 + $0x74] sm:$0xf]
      %v648 = vld [vmem:[%s8 + $0x78] sm:$0xff]
      %v649 = vld [vmem:[%s8 + $0x80] sm:$0xf]
      %v650 = vld [vmem:[%s8 + $0x84] sm:$0xff]
      %v651 = vld [vmem:[%s8 + $0x8c] sm:$0xf]
      %v652 = vld [vmem:[%s8 + $0x90] sm:$0xff]
      %v653 = vld [vmem:[%s8 + $0x98] sm:$0xf]
      %v654 = vld [vmem:[%s8 + $0x9c] sm:$0xff]
      %v655 = vld [vmem:[%s8 + $0xa4] sm:$0xf]
      %v656 = vld [vmem:[%s8 + $0xa8] sm:$0xff]
      %v657 = vld [vmem:[%s8 + $0xb0] sm:$0xf]
      %v658 = vld [vmem:[%s8 + $0xb4] sm:$0xff]
      %v659 = vld [vmem:[%s8 + $0xbc] sm:$0xf]
      %v692 = vunpack.c.l.b16 %v628
      %v693 = vunpack.c.h.b16 %v628
      %v694 = vunpack.c.l.b16 %v629
      %v695 = vunpack.c.l.b16 %v630
      %v696 = vunpack.c.h.b16 %v630
      %v697 = vunpack.c.l.b16 %v631
      %v698 = vunpack.c.l.b16 %v632
      %v699 = vunpack.c.h.b16 %v632
      %v700 = vunpack.c.l.b16 %v633
      %v701 = vunpack.c.l.b16 %v634
      %v702 = vunpack.c.h.b16 %v634
      %v703 = vunpack.c.l.b16 %v635
      %v704 = vunpack.c.l.b16 %v636
      %v705 = vunpack.c.h.b16 %v636
      %v706 = vunpack.c.l.b16 %v637
      %v707 = vunpack.c.l.b16 %v638
      %v708 = vunpack.c.h.b16 %v638
      %v709 = vunpack.c.l.b16 %v639
      %v710 = vunpack.c.l.b16 %v640
      %v711 = vunpack.c.h.b16 %v640
      %v712 = vunpack.c.l.b16 %v641
      %v713 = vunpack.c.l.b16 %v642
      %v714 = vunpack.c.h.b16 %v642
      %v715 = vunpack.c.l.b16 %v643
      %v716 = vunpack.c.l.b16 %v644
      %v717 = vunpack.c.h.b16 %v644
      %v718 = vunpack.c.l.b16 %v645
      %v719 = vunpack.c.l.b16 %v646
      %v720 = vunpack.c.h.b16 %v646
      %v721 = vunpack.c.l.b16 %v647
      %v722 = vunpack.c.l.b16 %v648
      %v723 = vunpack.c.h.b16 %v648
      %v724 = vunpack.c.l.b16 %v649
      %v725 = vunpack.c.l.b16 %v650
      %v726 = vunpack.c.h.b16 %v650
      %v727 = vunpack.c.l.b16 %v651
      %v728 = vunpack.c.l.b16 %v652
      %v729 = vunpack.c.h.b16 %v652
      %v730 = vunpack.c.l.b16 %v653
      %v731 = vunpack.c.l.b16 %v654
      %v732 = vunpack.c.h.b16 %v654
      %v733 = vunpack.c.l.b16 %v655
      %v734 = vunpack.c.l.b16 %v656
      %v735 = vunpack.c.h.b16 %v656
      %v736 = vunpack.c.l.b16 %v657
      %v737 = vunpack.c.l.b16 %v658
      %v738 = vunpack.c.h.b16 %v658
      %v739 = vunpack.c.l.b16 %v659
      %v740 = vpack.c.b16 %v695, %v692
      %v741 = vpack.c.b16 %v696, %v693
      %v742 = vpack.c.b16 %v697, %v694
      %v743 = vpack.c.b16 %v701, %v698
      %v744 = vpack.c.b16 %v702, %v699
      %v745 = vpack.c.b16 %v703, %v700
      %v746 = vpack.c.b16 %v707, %v704
      %v747 = vpack.c.b16 %v708, %v705
      %v748 = vpack.c.b16 %v709, %v706
      %v749 = vpack.c.b16 %v713, %v710
      %v750 = vpack.c.b16 %v714, %v711
      %v751 = vpack.c.b16 %v715, %v712
      %v752 = vpack.c.b16 %v719, %v716
      %v753 = vpack.c.b16 %v720, %v717
      %v754 = vpack.c.b16 %v721, %v718
      %v755 = vpack.c.b16 %v725, %v722
      %v756 = vpack.c.b16 %v726, %v723
      %v757 = vpack.c.b16 %v727, %v724
      %v758 = vpack.c.b16 %v731, %v728
      %v759 = vpack.c.b16 %v732, %v729
      %v760 = vpack.c.b16 %v733, %v730
      %v761 = vpack.c.b16 %v737, %v734
      %v762 = vpack.c.b16 %v738, %v735
      %v763 = vpack.c.b16 %v739, %v736
      %788 = vmatpush.bf16.msra.mxu0 %v761
      %789 = vmatpush.bf16.msra.mxu0 %v758
      %790 = vmatpush.bf16.msra.mxu0 %v755
      %791 = vmatpush.bf16.msra.mxu0 %v752
      %792 = vmatpush.bf16.msra.mxu0 %v749
      %793 = vmatpush.bf16.msra.mxu0 %v746
      %794 = vmatpush.bf16.msra.mxu0 %v743
      %795 = vmatpush.bf16.msra.mxu0 %v740
      %796 = vmatmul.bf16.gmra.mxu0 %v627
      %v797 = vpop.f32.mrf.mxu0
      %v798 = vadd.f32 0.0, %v797
      %v799 = vpop.f32.mrf.mxu0
      %800 = vdwg.mxu0
      %801 = vmatpush.bf16.msra.mxu0 %v762
      %802 = vmatpush.bf16.msra.mxu0 %v759
      %803 = vmatpush.bf16.msra.mxu0 %v756
      %804 = vmatpush.bf16.msra.mxu0 %v753
      %805 = vmatpush.bf16.msra.mxu0 %v750
      %806 = vmatpush.bf16.msra.mxu0 %v747
      %807 = vmatpush.bf16.msra.mxu0 %v744
      %808 = vmatpush.bf16.msra.mxu0 %v741
      %809 = vmatmul.bf16.gmra.mxu0 %v627
      %v810 = vpop.f32.mrf.mxu0
      %v811 = vadd.f32 0.0, %v810
      %v812 = vpop.f32.mrf.mxu0
      %813 = vdwg.mxu0
      %814 = vmatpush.bf16.msra.mxu0 %v763
      %815 = vmatpush.bf16.msra.mxu0 %v760
      %816 = vmatpush.bf16.msra.mxu0 %v757
      %817 = vmatpush.bf16.msra.mxu0 %v754
      %818 = vmatpush.bf16.msra.mxu0 %v751
      %819 = vmatpush.bf16.msra.mxu0 %v748
      %820 = vmatpush.bf16.msra.mxu0 %v745
      %821 = vmatpush.bf16.msra.mxu0 %v742
      %822 = vmatmul.bf16.gmra.mxu0 %v627
      %v823 = vpop.f32.mrf.mxu0
      %v824 = vadd.f32 0.0, %v823
      %v825 = vpop.f32.mrf.mxu0
      %826 = vdwg.mxu0
      %v827 = vpack.c.bf16 %v811, %v798
      %v828 = vpack.c.bf16 %v824, %v824
      %v829 = vld [vmem:[%s561] sm:$0xff]
      %v831 = vunpack.c.h.b16 %v827
      %v832 = vpack.c.b16 %v831, %v831
      %vm833 = vcmask 261120
      %v835 = vsel %vm833, %v827, 0
      %v838 = vsel %vm833, %v832, 0
      %840 = vmatpush.bf16.xpose.msra.mxu0 0
      %841 = vmatpush.bf16.xpose.msra.mxu0 0
      %842 = vmatpush.bf16.xpose.msra.mxu0 0
      %843 = vmatpush.bf16.xpose.msra.mxu0 0
      %844 = vmatpush.bf16.xpose.msra.mxu0 0
      %845 = vmatpush.bf16.xpose.msra.mxu0 0
      %846 = vmatpush.bf16.xpose.msra.mxu0 0
      %847 = vmatpush.bf16.xpose.msra.mxu0 %v838
      %848 = vmatmul.bf16.gmra.mxu0 %v835
      %v849 = vpop.f32.mrf.mxu0
      %v850 = vadd.f32 %v829, %v849
      %v851 = vpop.f32.mrf.mxu0
      %852 = vdwg.mxu0
      %v853 = vsel %vm579, %v850, -inf
      %854 = vmax.xlane.f32.xlu0 %v853
      %v855 = vpop.xlane.xlu0 %854
      %v856 = vsub.f32 %v850, %v855
      %v857 = vmul.f32 %v856, 1.442695
      %v858 = vpow.pop %v857
      %v859 = vsel %vm579, %v858, 0.0
      %860 = vadd.xlane.f32.xlu0 %v859
      %v861 = vpop.xlane.xlu0 %860
      %v862 = vrcp.pop %v861
      %v863 = vmul.f32 %v858, %v862
      %v864 = vpack.c.bf16 %v863, %v863
      %v866 = vsel %vm579, %v864, 0
      %v869 = vsel %vm583, %v828, 0
      %871 = vmatpush.bf16.msra.mxu0 0
      %872 = vmatpush.bf16.msra.mxu0 0
      %873 = vmatpush.bf16.msra.mxu0 0
      %874 = vmatpush.bf16.msra.mxu0 0
      %875 = vmatpush.bf16.msra.mxu0 0
      %876 = vmatpush.bf16.msra.mxu0 0
      %877 = vmatpush.bf16.msra.mxu0 0
      %878 = vmatpush.bf16.msra.mxu0 %v869
      %879 = vmatmul.bf16.gmra.mxu0 %v866
      %v880 = vpop.f32.mrf.mxu0
      %v881 = vadd.f32 0.0, %v880
      %v882 = vpop.f32.mrf.mxu0
      %883 = vdwg.mxu0
      %s884 = scalar_lea.vmem %s561, 8
      %v885 = vld [vmem:[%s884] sm:$0xff]
      %v886 = vunpack.c.l.b16 %v827
      %v887 = vpack.c.b16 %v886, %v886
      %888 = vrot.lane.b32.xlu0 %v887, 96
      %v889 = vpop.permute.xlu0 %888
      %890 = vrot.lane.b32.xlu0 %v832, 96
      %v891 = vpop.permute.xlu0 %890
      %v893 = vsel %vm833, %v889, 0
      %v896 = vsel %vm833, %v891, 0
      %898 = vmatpush.bf16.xpose.msra.mxu0 0
      %899 = vmatpush.bf16.xpose.msra.mxu0 0
      %900 = vmatpush.bf16.xpose.msra.mxu0 0
      %901 = vmatpush.bf16.xpose.msra.mxu0 0
      %902 = vmatpush.bf16.xpose.msra.mxu0 0
      %903 = vmatpush.bf16.xpose.msra.mxu0 0
      %904 = vmatpush.bf16.xpose.msra.mxu0 0
      %905 = vmatpush.bf16.xpose.msra.mxu0 %v896
      %906 = vmatmul.bf16.gmra.mxu0 %v893
      %v907 = vpop.f32.mrf.mxu0
      %v908 = vadd.f32 %v885, %v907
      %v909 = vpop.f32.mrf.mxu0
      %910 = vdwg.mxu0
      %v911 = vsel %vm579, %v908, -inf
      %912 = vmax.xlane.f32.xlu0 %v911
      %v913 = vpop.xlane.xlu0 %912
      %v914 = vsub.f32 %v908, %v913
      %v915 = vmul.f32 %v914, 1.442695
      %v916 = vpow.pop %v915
      %v917 = vsel %vm579, %v916, 0.0
      %918 = vadd.xlane.f32.xlu0 %v917
      %v919 = vpop.xlane.xlu0 %918
      %v920 = vrcp.pop %v919
      %v921 = vmul.f32 %v916, %v920
      %v922 = vpack.c.bf16 %v921, %v921
      %v924 = vunpack.c.l.b16 %v828
      %v925 = vpack.c.b16 %v924, %v924
      %926 = vrot.lane.b32.xlu0 %v925, 96
      %v927 = vpop.permute.xlu0 %926
      %v929 = vsel %vm579, %v922, 0
      %v932 = vsel %vm583, %v927, 0
      %934 = vmatpush.bf16.msra.mxu0 0
      %935 = vmatpush.bf16.msra.mxu0 0
      %936 = vmatpush.bf16.msra.mxu0 0
      %937 = vmatpush.bf16.msra.mxu0 0
      %938 = vmatpush.bf16.msra.mxu0 0
      %939 = vmatpush.bf16.msra.mxu0 0
      %940 = vmatpush.bf16.msra.mxu0 0
      %941 = vmatpush.bf16.msra.mxu0 %v932
      %942 = vmatmul.bf16.gmra.mxu0 %v929
      %v943 = vpop.f32.mrf.mxu0
      %v944 = vadd.f32 0.0, %v943
      %v945 = vpop.f32.mrf.mxu0
      %946 = vdwg.mxu0
      %s947 = scalar_lea.vmem %s561, 16
      %v948 = vld [vmem:[%s947] sm:$0xff]
      %949 = vrot.lane.b32.xlu0 %v887, 64
      %v950 = vpop.permute.xlu0 %949
      %951 = vrot.lane.b32.xlu0 %v832, 64
      %v952 = vpop.permute.xlu0 %951
      %v954 = vsel %vm833, %v950, 0
      %v957 = vsel %vm833, %v952, 0
      %959 = vmatpush.bf16.xpose.msra.mxu0 0
      %960 = vmatpush.bf16.xpose.msra.mxu0 0
      %961 = vmatpush.bf16.xpose.msra.mxu0 0
      %962 = vmatpush.bf16.xpose.msra.mxu0 0
      %963 = vmatpush.bf16.xpose.msra.mxu0 0
      %964 = vmatpush.bf16.xpose.msra.mxu0 0
      %965 = vmatpush.bf16.xpose.msra.mxu0 0
      %966 = vmatpush.bf16.xpose.msra.mxu0 %v957
      %967 = vmatmul.bf16.gmra.mxu0 %v954
      %v968 = vpop.f32.mrf.mxu0
      %v969 = vadd.f32 %v948, %v968
      %v970 = vpop.f32.mrf.mxu0
      %971 = vdwg.mxu0
      %v972 = vsel %vm579, %v969, -inf
      %973 = vmax.xlane.f32.xlu0 %v972
      %v974 = vpop.xlane.xlu0 %973
      %v975 = vsub.f32 %v969, %v974
      %v976 = vmul.f32 %v975, 1.442695
      %v977 = vpow.pop %v976
      %v978 = vsel %vm579, %v977, 0.0
      %979 = vadd.xlane.f32.xlu0 %v978
      %v980 = vpop.xlane.xlu0 %979
      %v981 = vrcp.pop %v980
      %v982 = vmul.f32 %v977, %v981
      %v983 = vpack.c.bf16 %v982, %v982
      %984 = vrot.lane.b32.xlu0 %v925, 64
      %v985 = vpop.permute.xlu0 %984
      %v987 = vsel %vm579, %v983, 0
      %v990 = vsel %vm583, %v985, 0
      %992 = vmatpush.bf16.msra.mxu0 0
      %993 = vmatpush.bf16.msra.mxu0 0
      %994 = vmatpush.bf16.msra.mxu0 0
      %995 = vmatpush.bf16.msra.mxu0 0
      %996 = vmatpush.bf16.msra.mxu0 0
      %997 = vmatpush.bf16.msra.mxu0 0
      %998 = vmatpush.bf16.msra.mxu0 0
      %999 = vmatpush.bf16.msra.mxu0 %v990
      %1000 = vmatmul.bf16.gmra.mxu0 %v987
      %v1001 = vpop.f32.mrf.mxu0
      %v1002 = vadd.f32 0.0, %v1001
      %v1003 = vpop.f32.mrf.mxu0
      %1004 = vdwg.mxu0
      %s1005 = scalar_lea.vmem %s561, 24
      %v1006 = vld [vmem:[%s1005] sm:$0xff]
      %1007 = vrot.lane.b32.xlu0 %v887, 32
      %v1008 = vpop.permute.xlu0 %1007
      %1009 = vrot.lane.b32.xlu0 %v832, 32
      %v1010 = vpop.permute.xlu0 %1009
      %v1012 = vsel %vm833, %v1008, 0
      %v1015 = vsel %vm833, %v1010, 0
      %1017 = vmatpush.bf16.xpose.msra.mxu0 0
      %1018 = vmatpush.bf16.xpose.msra.mxu0 0
      %1019 = vmatpush.bf16.xpose.msra.mxu0 0
      %1020 = vmatpush.bf16.xpose.msra.mxu0 0
      %1021 = vmatpush.bf16.xpose.msra.mxu0 0
      %1022 = vmatpush.bf16.xpose.msra.mxu0 0
      %1023 = vmatpush.bf16.xpose.msra.mxu0 0
      %1024 = vmatpush.bf16.xpose.msra.mxu0 %v1015
      %1025 = vmatmul.bf16.gmra.mxu0 %v1012
      %v1026 = vpop.f32.mrf.mxu0
      %v1027 = vadd.f32 %v1006, %v1026
      %v1028 = vpop.f32.mrf.mxu0
      %1029 = vdwg.mxu0
      %v1030 = vsel %vm579, %v1027, -inf
      %1031 = vmax.xlane.f32.xlu0 %v1030
      %v1032 = vpop.xlane.xlu0 %1031
      %v1033 = vsub.f32 %v1027, %v1032
      %v1034 = vmul.f32 %v1033, 1.442695
      %v1035 = vpow.pop %v1034
      %v1036 = vsel %vm579, %v1035, 0.0
      %1037 = vadd.xlane.f32.xlu0 %v1036
      %v1038 = vpop.xlane.xlu0 %1037
      %v1039 = vrcp.pop %v1038
      %v1040 = vmul.f32 %v1035, %v1039
      %v1041 = vpack.c.bf16 %v1040, %v1040
      %1042 = vrot.lane.b32.xlu0 %v925, 32
      %v1043 = vpop.permute.xlu0 %1042
      %v1045 = vsel %vm579, %v1041, 0
      %v1048 = vsel %vm583, %v1043, 0
      %1050 = vmatpush.bf16.msra.mxu0 0
      %1051 = vmatpush.bf16.msra.mxu0 0
      %1052 = vmatpush.bf16.msra.mxu0 0
      %1053 = vmatpush.bf16.msra.mxu0 0
      %1054 = vmatpush.bf16.msra.mxu0 0
      %1055 = vmatpush.bf16.msra.mxu0 0
      %1056 = vmatpush.bf16.msra.mxu0 0
      %1057 = vmatpush.bf16.msra.mxu0 %v1048
      %1058 = vmatmul.bf16.gmra.mxu0 %v1045
      %v1059 = vpop.f32.mrf.mxu0
      %v1060 = vadd.f32 0.0, %v1059
      %v1061 = vpop.f32.mrf.mxu0
      %1062 = vdwg.mxu0
      %1064 = vrot.lane.b32.xlu0 %v944, 32
      %v1065 = vpop.permute.xlu0 %1064
      %1068 = vrot.lane.b32.xlu0 %v1002, 64
      %v1069 = vpop.permute.xlu0 %1068
      %1072 = vrot.lane.b32.xlu0 %v1060, 96
      %v1073 = vpop.permute.xlu0 %1072
      %v1075 = vsel %vm833, %v881, %v1065
      %vm1076 = vcmask 523264
      %v1077 = vsel %vm1076, %v1075, %v1069
      %vm1078 = vcmask 785408
      %v1079 = vsel %vm1078, %v1077, %v1073
      %v1080 = vpack.c.bf16 %v1079, %v1079
      %v1081 = vld [vmem:[%s9] sm:$0xf]
      %v1082 = vld [vmem:[%s9 + $0x4] sm:$0xf]
      %v1083 = vld [vmem:[%s9 + $0x8] sm:$0xf]
      %v1084 = vld [vmem:[%s9 + $0xc] sm:$0xf]
      %v1085 = vld [vmem:[%s9 + $0x10] sm:$0xf]
      %v1086 = vld [vmem:[%s9 + $0x14] sm:$0xf]
      %v1087 = vld [vmem:[%s9 + $0x18] sm:$0xf]
      %v1088 = vld [vmem:[%s9 + $0x1c] sm:$0xf]
      %v1089 = vld [vmem:[%s9 + $0x20] sm:$0xf]
      %v1090 = vld [vmem:[%s9 + $0x24] sm:$0xf]
      %v1091 = vld [vmem:[%s9 + $0x28] sm:$0xf]
      %v1092 = vld [vmem:[%s9 + $0x2c] sm:$0xf]
      %v1093 = vld [vmem:[%s9 + $0x30] sm:$0xf]
      %v1094 = vld [vmem:[%s9 + $0x34] sm:$0xf]
      %v1095 = vld [vmem:[%s9 + $0x38] sm:$0xf]
      %v1096 = vld [vmem:[%s9 + $0x3c] sm:$0xf]
      %v1113 = vunpack.c.l.b16 %v1081
      %v1114 = vunpack.c.l.b16 %v1082
      %v1115 = vunpack.c.l.b16 %v1083
      %v1116 = vunpack.c.l.b16 %v1084
      %v1117 = vunpack.c.l.b16 %v1085
      %v1118 = vunpack.c.l.b16 %v1086
      %v1119 = vunpack.c.l.b16 %v1087
      %v1120 = vunpack.c.l.b16 %v1088
      %v1121 = vunpack.c.l.b16 %v1089
      %v1122 = vunpack.c.l.b16 %v1090
      %v1123 = vunpack.c.l.b16 %v1091
      %v1124 = vunpack.c.l.b16 %v1092
      %v1125 = vunpack.c.l.b16 %v1093
      %v1126 = vunpack.c.l.b16 %v1094
      %v1127 = vunpack.c.l.b16 %v1095
      %v1128 = vunpack.c.l.b16 %v1096
      %v1129 = vpack.c.b16 %v1114, %v1113
      %v1130 = vpack.c.b16 %v1116, %v1115
      %v1131 = vpack.c.b16 %v1118, %v1117
      %v1132 = vpack.c.b16 %v1120, %v1119
      %v1133 = vpack.c.b16 %v1122, %v1121
      %v1134 = vpack.c.b16 %v1124, %v1123
      %v1135 = vpack.c.b16 %v1126, %v1125
      %v1136 = vpack.c.b16 %v1128, %v1127
      %1145 = vmatpush.bf16.msra.mxu0 %v1136
      %1146 = vmatpush.bf16.msra.mxu0 %v1135
      %1147 = vmatpush.bf16.msra.mxu0 %v1134
      %1148 = vmatpush.bf16.msra.mxu0 %v1133
      %1149 = vmatpush.bf16.msra.mxu0 %v1132
      %1150 = vmatpush.bf16.msra.mxu0 %v1131
      %1151 = vmatpush.bf16.msra.mxu0 %v1130
      %1152 = vmatpush.bf16.msra.mxu0 %v1129
      %1153 = vmatmul.bf16.gmra.mxu0 %v1080
      %v1154 = vpop.f32.mrf.mxu0
      %v1155 = vadd.f32 0.0, %v1154
      %v1156 = vpop.f32.mrf.mxu0
      %1157 = vdwg.mxu0
      %v1158 = vadd.f32 %v626, %v1155
      %v1159 = vpack.c.bf16 %v1158, %v1158
      %v1160 = vld [vmem:[%s10] sm:$0xff]
      %v1161 = vld [vmem:[%s10 + $0x8] sm:$0xff]
      %v1162 = vld [vmem:[%s10 + $0x10] sm:$0xff]
      %v1163 = vld [vmem:[%s10 + $0x18] sm:$0xff]
      %v1164 = vld [vmem:[%s10 + $0x20] sm:$0xff]
      %v1165 = vld [vmem:[%s10 + $0x28] sm:$0xff]
      %v1166 = vld [vmem:[%s10 + $0x30] sm:$0xff]
      %v1167 = vld [vmem:[%s10 + $0x38] sm:$0xff]
      %v1168 = vld [vmem:[%s10 + $0x40] sm:$0xff]
      %v1169 = vld [vmem:[%s10 + $0x48] sm:$0xff]
      %v1170 = vld [vmem:[%s10 + $0x50] sm:$0xff]
      %v1171 = vld [vmem:[%s10 + $0x58] sm:$0xff]
      %v1172 = vld [vmem:[%s10 + $0x60] sm:$0xff]
      %v1173 = vld [vmem:[%s10 + $0x68] sm:$0xff]
      %v1174 = vld [vmem:[%s10 + $0x70] sm:$0xff]
      %v1175 = vld [vmem:[%s10 + $0x78] sm:$0xff]
      %v1176 = vld [vmem:[%s11] sm:$0x3]
      %v1178 = vperm.slane %v1176, 0
      %v1179 = vperm.slane %v1176, 1
      %v1198 = vunpack.c.l.b16 %v1160
      %v1199 = vunpack.c.h.b16 %v1160
      %v1200 = vunpack.c.l.b16 %v1161
      %v1201 = vunpack.c.h.b16 %v1161
      %v1202 = vunpack.c.l.b16 %v1162
      %v1203 = vunpack.c.h.b16 %v1162
      %v1204 = vunpack.c.l.b16 %v1163
      %v1205 = vunpack.c.h.b16 %v1163
      %v1206 = vunpack.c.l.b16 %v1164
      %v1207 = vunpack.c.h.b16 %v1164
      %v1208 = vunpack.c.l.b16 %v1165
      %v1209 = vunpack.c.h.b16 %v1165
      %v1210 = vunpack.c.l.b16 %v1166
      %v1211 = vunpack.c.h.b16 %v1166
      %v1212 = vunpack.c.l.b16 %v1167
      %v1213 = vunpack.c.h.b16 %v1167
      %v1214 = vunpack.c.l.b16 %v1168
      %v1215 = vunpack.c.h.b16 %v1168
      %v1216 = vunpack.c.l.b16 %v1169
      %v1217 = vunpack.c.h.b16 %v1169
      %v1218 = vunpack.c.l.b16 %v1170
      %v1219 = vunpack.c.h.b16 %v1170
      %v1220 = vunpack.c.l.b16 %v1171
      %v1221 = vunpack.c.h.b16 %v1171
      %v1222 = vunpack.c.l.b16 %v1172
      %v1223 = vunpack.c.h.b16 %v1172
      %v1224 = vunpack.c.l.b16 %v1173
      %v1225 = vunpack.c.h.b16 %v1173
      %v1226 = vunpack.c.l.b16 %v1174
      %v1227 = vunpack.c.h.b16 %v1174
      %v1228 = vunpack.c.l.b16 %v1175
      %v1229 = vunpack.c.h.b16 %v1175
      %v1230 = vpack.c.b16 %v1200, %v1198
      %v1231 = vpack.c.b16 %v1201, %v1199
      %v1232 = vpack.c.b16 %v1204, %v1202
      %v1233 = vpack.c.b16 %v1205, %v1203
      %v1234 = vpack.c.b16 %v1208, %v1206
      %v1235 = vpack.c.b16 %v1209, %v1207
      %v1236 = vpack.c.b16 %v1212, %v1210
      %v1237 = vpack.c.b16 %v1213, %v1211
      %v1238 = vpack.c.b16 %v1216, %v1214
      %v1239 = vpack.c.b16 %v1217, %v1215
      %v1240 = vpack.c.b16 %v1220, %v1218
      %v1241 = vpack.c.b16 %v1221, %v1219
      %v1242 = vpack.c.b16 %v1224, %v1222
      %v1243 = vpack.c.b16 %v1225, %v1223
      %v1244 = vpack.c.b16 %v1228, %v1226
      %v1245 = vpack.c.b16 %v1229, %v1227
      %1262 = vmatpush.bf16.msra.mxu0 %v1244
      %1263 = vmatpush.bf16.msra.mxu0 %v1242
      %1264 = vmatpush.bf16.msra.mxu0 %v1240
      %1265 = vmatpush.bf16.msra.mxu0 %v1238
      %1266 = vmatpush.bf16.msra.mxu0 %v1236
      %1267 = vmatpush.bf16.msra.mxu0 %v1234
      %1268 = vmatpush.bf16.msra.mxu0 %v1232
      %1269 = vmatpush.bf16.msra.mxu0 %v1230
      %1270 = vmatmul.bf16.gmra.mxu0 %v1159
      %v1271 = vpop.f32.mrf.mxu0
      %v1272 = vadd.f32 %v1178, %v1271
      %v1273 = vpop.f32.mrf.mxu0
      %1274 = vdwg.mxu0
      %1275 = vmatpush.bf16.msra.mxu0 %v1245
      %1276 = vmatpush.bf16.msra.mxu0 %v1243
      %1277 = vmatpush.bf16.msra.mxu0 %v1241
      %1278 = vmatpush.bf16.msra.mxu0 %v1239
      %1279 = vmatpush.bf16.msra.mxu0 %v1237
      %1280 = vmatpush.bf16.msra.mxu0 %v1235
      %1281 = vmatpush.bf16.msra.mxu0 %v1233
      %1282 = vmatpush.bf16.msra.mxu0 %v1231
      %1283 = vmatmul.bf16.gmra.mxu0 %v1159
      %v1284 = vpop.f32.mrf.mxu0
      %v1285 = vadd.f32 %v1179, %v1284
      %v1286 = vpop.f32.mrf.mxu0
      %1287 = vdwg.mxu0
      %v1288 = vmax.f32 %v1272, 0.0
      %v1289 = vmax.f32 %v1285, 0.0
      %v1290 = vpack.c.bf16 %v1288, %v1288
      %v1291 = vpack.c.bf16 %v1289, %v1289
      %v1292 = vld [vmem:[%s12] sm:$0xf]
      %v1293 = vld [vmem:[%s12 + $0x4] sm:$0xf]
      %v1294 = vld [vmem:[%s12 + $0x8] sm:$0xf]
      %v1295 = vld [vmem:[%s12 + $0xc] sm:$0xf]
      %v1296 = vld [vmem:[%s12 + $0x10] sm:$0xf]
      %v1297 = vld [vmem:[%s12 + $0x14] sm:$0xf]
      %v1298 = vld [vmem:[%s12 + $0x18] sm:$0xf]
      %v1299 = vld [vmem:[%s12 + $0x1c] sm:$0xf]
      %v1300 = vld [vmem:[%s12 + $0x20] sm:$0xf]
      %v1301 = vld [vmem:[%s12 + $0x24] sm:$0xf]
      %v1302 = vld [vmem:[%s12 + $0x28] sm:$0xf]
      %v1303 = vld [vmem:[%s12 + $0x2c] sm:$0xf]
      %v1304 = vld [vmem:[%s12 + $0x30] sm:$0xf]
      %v1305 = vld [vmem:[%s12 + $0x34] sm:$0xf]
      %v1306 = vld [vmem:[%s12 + $0x38] sm:$0xf]
      %v1307 = vld [vmem:[%s12 + $0x3c] sm:$0xf]
      %v1308 = vld [vmem:[%s12 + $0x40] sm:$0xf]
      %v1309 = vld [vmem:[%s12 + $0x44] sm:$0xf]
      %v1310 = vld [vmem:[%s12 + $0x48] sm:$0xf]
      %v1311 = vld [vmem:[%s12 + $0x4c] sm:$0xf]
      %v1312 = vld [vmem:[%s12 + $0x50] sm:$0xf]
      %v1313 = vld [vmem:[%s12 + $0x54] sm:$0xf]
      %v1314 = vld [vmem:[%s12 + $0x58] sm:$0xf]
      %v1315 = vld [vmem:[%s12 + $0x5c] sm:$0xf]
      %v1316 = vld [vmem:[%s12 + $0x60] sm:$0xf]
      %v1317 = vld [vmem:[%s12 + $0x64] sm:$0xf]
      %v1318 = vld [vmem:[%s12 + $0x68] sm:$0xf]
      %v1319 = vld [vmem:[%s12 + $0x6c] sm:$0xf]
      %v1320 = vld [vmem:[%s12 + $0x70] sm:$0xf]
      %v1321 = vld [vmem:[%s12 + $0x74] sm:$0xf]
      %v1322 = vld [vmem:[%s12 + $0x78] sm:$0xf]
      %v1323 = vld [vmem:[%s12 + $0x7c] sm:$0xf]
      %v1356 = vunpack.c.l.b16 %v1292
      %v1357 = vunpack.c.l.b16 %v1293
      %v1358 = vunpack.c.l.b16 %v1294
      %v1359 = vunpack.c.l.b16 %v1295
      %v1360 = vunpack.c.l.b16 %v1296
      %v1361 = vunpack.c.l.b16 %v1297
      %v1362 = vunpack.c.l.b16 %v1298
      %v1363 = vunpack.c.l.b16 %v1299
      %v1364 = vunpack.c.l.b16 %v1300
      %v1365 = vunpack.c.l.b16 %v1301
      %v1366 = vunpack.c.l.b16 %v1302
      %v1367 = vunpack.c.l.b16 %v1303
      %v1368 = vunpack.c.l.b16 %v1304
      %v1369 = vunpack.c.l.b16 %v1305
      %v1370 = vunpack.c.l.b16 %v1306
      %v1371 = vunpack.c.l.b16 %v1307
      %v1372 = vunpack.c.l.b16 %v1308
      %v1373 = vunpack.c.l.b16 %v1309
      %v1374 = vunpack.c.l.b16 %v1310
      %v1375 = vunpack.c.l.b16 %v1311
      %v1376 = vunpack.c.l.b16 %v1312
      %v1377 = vunpack.c.l.b16 %v1313
      %v1378 = vunpack.c.l.b16 %v1314
      %v1379 = vunpack.c.l.b16 %v1315
      %v1380 = vunpack.c.l.b16 %v1316
      %v1381 = vunpack.c.l.b16 %v1317
      %v1382 = vunpack.c.l.b16 %v1318
      %v1383 = vunpack.c.l.b16 %v1319
      %v1384 = vunpack.c.l.b16 %v1320
      %v1385 = vunpack.c.l.b16 %v1321
      %v1386 = vunpack.c.l.b16 %v1322
      %v1387 = vunpack.c.l.b16 %v1323
      %v1388 = vpack.c.b16 %v1357, %v1356
      %v1389 = vpack.c.b16 %v1359, %v1358
      %v1390 = vpack.c.b16 %v1361, %v1360
      %v1391 = vpack.c.b16 %v1363, %v1362
      %v1392 = vpack.c.b16 %v1365, %v1364
      %v1393 = vpack.c.b16 %v1367, %v1366
      %v1394 = vpack.c.b16 %v1369, %v1368
      %v1395 = vpack.c.b16 %v1371, %v1370
      %v1396 = vpack.c.b16 %v1373, %v1372
      %v1397 = vpack.c.b16 %v1375, %v1374
      %v1398 = vpack.c.b16 %v1377, %v1376
      %v1399 = vpack.c.b16 %v1379, %v1378
      %v1400 = vpack.c.b16 %v1381, %v1380
      %v1401 = vpack.c.b16 %v1383, %v1382
      %v1402 = vpack.c.b16 %v1385, %v1384
      %v1403 = vpack.c.b16 %v1387, %v1386
      %1420 = vmatpush.bf16.msra.mxu0 %v1395
      %1421 = vmatpush.bf16.msra.mxu0 %v1394
      %1422 = vmatpush.bf16.msra.mxu0 %v1393
      %1423 = vmatpush.bf16.msra.mxu0 %v1392
      %1424 = vmatpush.bf16.msra.mxu0 %v1391
      %1425 = vmatpush.bf16.msra.mxu0 %v1390
      %1426 = vmatpush.bf16.msra.mxu0 %v1389
      %1427 = vmatpush.bf16.msra.mxu0 %v1388
      %1428 = vmatmul.bf16.gmra.mxu0 %v1290
      %v1429 = vpop.f32.mrf.mxu0
      %v1430 = vadd.f32 0.0, %v1429
      %v1431 = vpop.f32.mrf.mxu0
      %1432 = vdwg.mxu0
      %1433 = vmatpush.bf16.msra.mxu0 %v1403
      %1434 = vmatpush.bf16.msra.mxu0 %v1402
      %1435 = vmatpush.bf16.msra.mxu0 %v1401
      %1436 = vmatpush.bf16.msra.mxu0 %v1400
      %1437 = vmatpush.bf16.msra.mxu0 %v1399
      %1438 = vmatpush.bf16.msra.mxu0 %v1398
      %1439 = vmatpush.bf16.msra.mxu0 %v1397
      %1440 = vmatpush.bf16.msra.mxu0 %v1396
      %1441 = vmatmul.bf16.gmra.mxu0 %v1291
      %v1442 = vpop.f32.mrf.mxu0
      %v1443 = vadd.f32 %v1430, %v1442
      %v1444 = vpop.f32.mrf.mxu0
      %1445 = vdwg.mxu0
      %v1446 = vadd.f32 %v1158, %v1443
      %v1447 = vld [vmem:[%s13] sm:$0x1]
      %v1449 = vperm.slane %v1447, 0
      %v1451 = vadd.f32 %v1446, %v1449
      %v1452 = vpack.c.bf16 %v1451, %v1451
      %s1453 = scalar_lea.vmem %s8, 192
      %v1454 = vld [vmem:[%s1453] sm:$0xff]
      %v1455 = vld [vmem:[%s1453 + $0x8] sm:$0xf]
      %v1456 = vld [vmem:[%s1453 + $0xc] sm:$0xff]
      %v1457 = vld [vmem:[%s1453 + $0x14] sm:$0xf]
      %v1458 = vld [vmem:[%s1453 + $0x18] sm:$0xff]
      %v1459 = vld [vmem:[%s1453 + $0x20] sm:$0xf]
      %v1460 = vld [vmem:[%s1453 + $0x24] sm:$0xff]
      %v1461 = vld [vmem:[%s1453 + $0x2c] sm:$0xf]
      %v1462 = vld [vmem:[%s1453 + $0x30] sm:$0xff]
      %v1463 = vld [vmem:[%s1453 + $0x38] sm:$0xf]
      %v1464 = vld [vmem:[%s1453 + $0x3c] sm:$0xff]
      %v1465 = vld [vmem:[%s1453 + $0x44] sm:$0xf]
      %v1466 = vld [vmem:[%s1453 + $0x48] sm:$0xff]
      %v1467 = vld [vmem:[%s1453 + $0x50] sm:$0xf]
      %v1468 = vld [vmem:[%s1453 + $0x54] sm:$0xff]
      %v1469 = vld [vmem:[%s1453 + $0x5c] sm:$0xf]
      %v1470 = vld [vmem:[%s1453 + $0x60] sm:$0xff]
      %v1471 = vld [vmem:[%s1453 + $0x68] sm:$0xf]
      %v1472 = vld [vmem:[%s1453 + $0x6c] sm:$0xff]
      %v1473 = vld [vmem:[%s1453 + $0x74] sm:$0xf]
      %v1474 = vld [vmem:[%s1453 + $0x78] sm:$0xff]
      %v1475 = vld [vmem:[%s1453 + $0x80] sm:$0xf]
      %v1476 = vld [vmem:[%s1453 + $0x84] sm:$0xff]
      %v1477 = vld [vmem:[%s1453 + $0x8c] sm:$0xf]
      %v1478 = vld [vmem:[%s1453 + $0x90] sm:$0xff]
      %v1479 = vld [vmem:[%s1453 + $0x98] sm:$0xf]
      %v1480 = vld [vmem:[%s1453 + $0x9c] sm:$0xff]
      %v1481 = vld [vmem:[%s1453 + $0xa4] sm:$0xf]
      %v1482 = vld [vmem:[%s1453 + $0xa8] sm:$0xff]
      %v1483 = vld [vmem:[%s1453 + $0xb0] sm:$0xf]
      %v1484 = vld [vmem:[%s1453 + $0xb4] sm:$0xff]
      %v1485 = vld [vmem:[%s1453 + $0xbc] sm:$0xf]
      %v1518 = vunpack.c.l.b16 %v1454
      %v1519 = vunpack.c.h.b16 %v1454
      %v1520 = vunpack.c.l.b16 %v1455
      %v1521 = vunpack.c.l.b16 %v1456
      %v1522 = vunpack.c.h.b16 %v1456
      %v1523 = vunpack.c.l.b16 %v1457
      %v1524 = vunpack.c.l.b16 %v1458
      %v1525 = vunpack.c.h.b16 %v1458
      %v1526 = vunpack.c.l.b16 %v1459
      %v1527 = vunpack.c.l.b16 %v1460
      %v1528 = vunpack.c.h.b16 %v1460
      %v1529 = vunpack.c.l.b16 %v1461
      %v1530 = vunpack.c.l.b16 %v1462
      %v1531 = vunpack.c.h.b16 %v1462
      %v1532 = vunpack.c.l.b16 %v1463
      %v1533 = vunpack.c.l.b16 %v1464
      %v1534 = vunpack.c.h.b16 %v1464
      %v1535 = vunpack.c.l.b16 %v1465
      %v1536 = vunpack.c.l.b16 %v1466
      %v1537 = vunpack.c.h.b16 %v1466
      %v1538 = vunpack.c.l.b16 %v1467
      %v1539 = vunpack.c.l.b16 %v1468
      %v1540 = vunpack.c.h.b16 %v1468
      %v1541 = vunpack.c.l.b16 %v1469
      %v1542 = vunpack.c.l.b16 %v1470
      %v1543 = vunpack.c.h.b16 %v1470
      %v1544 = vunpack.c.l.b16 %v1471
      %v1545 = vunpack.c.l.b16 %v1472
      %v1546 = vunpack.c.h.b16 %v1472
      %v1547 = vunpack.c.l.b16 %v1473
      %v1548 = vunpack.c.l.b16 %v1474
      %v1549 = vunpack.c.h.b16 %v1474
      %v1550 = vunpack.c.l.b16 %v1475
      %v1551 = vunpack.c.l.b16 %v1476
      %v1552 = vunpack.c.h.b16 %v1476
      %v1553 = vunpack.c.l.b16 %v1477
      %v1554 = vunpack.c.l.b16 %v1478
      %v1555 = vunpack.c.h.b16 %v1478
      %v1556 = vunpack.c.l.b16 %v1479
      %v1557 = vunpack.c.l.b16 %v1480
      %v1558 = vunpack.c.h.b16 %v1480
      %v1559 = vunpack.c.l.b16 %v1481
      %v1560 = vunpack.c.l.b16 %v1482
      %v1561 = vunpack.c.h.b16 %v1482
      %v1562 = vunpack.c.l.b16 %v1483
      %v1563 = vunpack.c.l.b16 %v1484
      %v1564 = vunpack.c.h.b16 %v1484
      %v1565 = vunpack.c.l.b16 %v1485
      %v1566 = vpack.c.b16 %v1521, %v1518
      %v1567 = vpack.c.b16 %v1522, %v1519
      %v1568 = vpack.c.b16 %v1523, %v1520
      %v1569 = vpack.c.b16 %v1527, %v1524
      %v1570 = vpack.c.b16 %v1528, %v1525
      %v1571 = vpack.c.b16 %v1529, %v1526
      %v1572 = vpack.c.b16 %v1533, %v1530
      %v1573 = vpack.c.b16 %v1534, %v1531
      %v1574 = vpack.c.b16 %v1535, %v1532
      %v1575 = vpack.c.b16 %v1539, %v1536
      %v1576 = vpack.c.b16 %v1540, %v1537
      %v1577 = vpack.c.b16 %v1541, %v1538
      %v1578 = vpack.c.b16 %v1545, %v1542
      %v1579 = vpack.c.b16 %v1546, %v1543
      %v1580 = vpack.c.b16 %v1547, %v1544
      %v1581 = vpack.c.b16 %v1551, %v1548
      %v1582 = vpack.c.b16 %v1552, %v1549
      %v1583 = vpack.c.b16 %v1553, %v1550
      %v1584 = vpack.c.b16 %v1557, %v1554
      %v1585 = vpack.c.b16 %v1558, %v1555
      %v1586 = vpack.c.b16 %v1559, %v1556
      %v1587 = vpack.c.b16 %v1563, %v1560
      %v1588 = vpack.c.b16 %v1564, %v1561
      %v1589 = vpack.c.b16 %v1565, %v1562
      %1614 = vmatpush.bf16.msra.mxu0 %v1587
      %1615 = vmatpush.bf16.msra.mxu0 %v1584
      %1616 = vmatpush.bf16.msra.mxu0 %v1581
      %1617 = vmatpush.bf16.msra.mxu0 %v1578
      %1618 = vmatpush.bf16.msra.mxu0 %v1575
      %1619 = vmatpush.bf16.msra.mxu0 %v1572
      %1620 = vmatpush.bf16.msra.mxu0 %v1569
      %1621 = vmatpush.bf16.msra.mxu0 %v1566
      %1622 = vmatmul.bf16.gmra.mxu0 %v1452
      %v1623 = vpop.f32.mrf.mxu0
      %v1624 = vadd.f32 0.0, %v1623
      %v1625 = vpop.f32.mrf.mxu0
      %1626 = vdwg.mxu0
      %1627 = vmatpush.bf16.msra.mxu0 %v1588
      %1628 = vmatpush.bf16.msra.mxu0 %v1585
      %1629 = vmatpush.bf16.msra.mxu0 %v1582
      %1630 = vmatpush.bf16.msra.mxu0 %v1579
      %1631 = vmatpush.bf16.msra.mxu0 %v1576
      %1632 = vmatpush.bf16.msra.mxu0 %v1573
      %1633 = vmatpush.bf16.msra.mxu0 %v1570
      %1634 = vmatpush.bf16.msra.mxu0 %v1567
      %1635 = vmatmul.bf16.gmra.mxu0 %v1452
      %v1636 = vpop.f32.mrf.mxu0
      %v1637 = vadd.f32 0.0, %v1636
      %v1638 = vpop.f32.mrf.mxu0
      %1639 = vdwg.mxu0
      %1640 = vmatpush.bf16.msra.mxu0 %v1589
      %1641 = vmatpush.bf16.msra.mxu0 %v1586
      %1642 = vmatpush.bf16.msra.mxu0 %v1583
      %1643 = vmatpush.bf16.msra.mxu0 %v1580
      %1644 = vmatpush.bf16.msra.mxu0 %v1577
      %1645 = vmatpush.bf16.msra.mxu0 %v1574
      %1646 = vmatpush.bf16.msra.mxu0 %v1571
      %1647 = vmatpush.bf16.msra.mxu0 %v1568
      %1648 = vmatmul.bf16.gmra.mxu0 %v1452
      %v1649 = vpop.f32.mrf.mxu0
      %v1650 = vadd.f32 0.0, %v1649
      %v1651 = vpop.f32.mrf.mxu0
      %1652 = vdwg.mxu0
      %v1653 = vpack.c.bf16 %v1637, %v1624
      %v1654 = vpack.c.bf16 %v1650, %v1650
      %v1656 = vunpack.c.h.b16 %v1653
      %v1657 = vpack.c.b16 %v1656, %v1656
      %v1659 = vsel %vm833, %v1653, 0
      %v1662 = vsel %vm833, %v1657, 0
      %1664 = vmatpush.bf16.xpose.msra.mxu0 0
      %1665 = vmatpush.bf16.xpose.msra.mxu0 0
      %1666 = vmatpush.bf16.xpose.msra.mxu0 0
      %1667 = vmatpush.bf16.xpose.msra.mxu0 0
      %1668 = vmatpush.bf16.xpose.msra.mxu0 0
      %1669 = vmatpush.bf16.xpose.msra.mxu0 0
      %1670 = vmatpush.bf16.xpose.msra.mxu0 0
      %1671 = vmatpush.bf16.xpose.msra.mxu0 %v1662
      %1672 = vmatmul.bf16.gmra.mxu0 %v1659
      %v1673 = vpop.f32.mrf.mxu0
      %v1674 = vadd.f32 %v829, %v1673
      %v1675 = vpop.f32.mrf.mxu0
      %1676 = vdwg.mxu0
      %v1677 = vsel %vm579, %v1674, -inf
      %1678 = vmax.xlane.f32.xlu0 %v1677
      %v1679 = vpop.xlane.xlu0 %1678
      %v1680 = vsub.f32 %v1674, %v1679
      %v1681 = vmul.f32 %v1680, 1.442695
      %v1682 = vpow.pop %v1681
      %v1683 = vsel %vm579, %v1682, 0.0
      %1684 = vadd.xlane.f32.xlu0 %v1683
      %v1685 = vpop.xlane.xlu0 %1684
      %v1686 = vrcp.pop %v1685
      %v1687 = vmul.f32 %v1682, %v1686
      %v1688 = vpack.c.bf16 %v1687, %v1687
      %v1690 = vsel %vm579, %v1688, 0
      %v1693 = vsel %vm583, %v1654, 0
      %1695 = vmatpush.bf16.msra.mxu0 0
      %1696 = vmatpush.bf16.msra.mxu0 0
      %1697 = vmatpush.bf16.msra.mxu0 0
      %1698 = vmatpush.bf16.msra.mxu0 0
      %1699 = vmatpush.bf16.msra.mxu0 0
      %1700 = vmatpush.bf16.msra.mxu0 0
      %1701 = vmatpush.bf16.msra.mxu0 0
      %1702 = vmatpush.bf16.msra.mxu0 %v1693
      %1703 = vmatmul.bf16.gmra.mxu0 %v1690
      %v1704 = vpop.f32.mrf.mxu0
      %v1705 = vadd.f32 0.0, %v1704
      %v1706 = vpop.f32.mrf.mxu0
      %1707 = vdwg.mxu0
      %v1708 = vunpack.c.l.b16 %v1653
      %v1709 = vpack.c.b16 %v1708, %v1708
      %1710 = vrot.lane.b32.xlu0 %v1709, 96
      %v1711 = vpop.permute.xlu0 %1710
      %1712 = vrot.lane.b32.xlu0 %v1657, 96
      %v1713 = vpop.permute.xlu0 %1712
      %v1715 = vsel %vm833, %v1711, 0
      %v1718 = vsel %vm833, %v1713, 0
      %1720 = vmatpush.bf16.xpose.msra.mxu0 0
      %1721 = vmatpush.bf16.xpose.msra.mxu0 0
      %1722 = vmatpush.bf16.xpose.msra.mxu0 0
      %1723 = vmatpush.bf16.xpose.msra.mxu0 0
      %1724 = vmatpush.bf16.xpose.msra.mxu0 0
      %1725 = vmatpush.bf16.xpose.msra.mxu0 0
      %1726 = vmatpush.bf16.xpose.msra.mxu0 0
      %1727 = vmatpush.bf16.xpose.msra.mxu0 %v1718
      %1728 = vmatmul.bf16.gmra.mxu0 %v1715
      %v1729 = vpop.f32.mrf.mxu0
      %v1730 = vadd.f32 %v885, %v1729
      %v1731 = vpop.f32.mrf.mxu0
      %1732 = vdwg.mxu0
      %v1733 = vsel %vm579, %v1730, -inf
      %1734 = vmax.xlane.f32.xlu0 %v1733
      %v1735 = vpop.xlane.xlu0 %1734
      %v1736 = vsub.f32 %v1730, %v1735
      %v1737 = vmul.f32 %v1736, 1.442695
      %v1738 = vpow.pop %v1737
      %v1739 = vsel %vm579, %v1738, 0.0
      %1740 = vadd.xlane.f32.xlu0 %v1739
      %v1741 = vpop.xlane.xlu0 %1740
      %v1742 = vrcp.pop %v1741
      %v1743 = vmul.f32 %v1738, %v1742
      %v1744 = vpack.c.bf16 %v1743, %v1743
      %v1746 = vunpack.c.l.b16 %v1654
      %v1747 = vpack.c.b16 %v1746, %v1746
      %1748 = vrot.lane.b32.xlu0 %v1747, 96
      %v1749 = vpop.permute.xlu0 %1748
      %v1751 = vsel %vm579, %v1744, 0
      %v1754 = vsel %vm583, %v1749, 0
      %1756 = vmatpush.bf16.msra.mxu0 0
      %1757 = vmatpush.bf16.msra.mxu0 0
      %1758 = vmatpush.bf16.msra.mxu0 0
      %1759 = vmatpush.bf16.msra.mxu0 0
      %1760 = vmatpush.bf16.msra.mxu0 0
      %1761 = vmatpush.bf16.msra.mxu0 0
      %1762 = vmatpush.bf16.msra.mxu0 0
      %1763 = vmatpush.bf16.msra.mxu0 %v1754
      %1764 = vmatmul.bf16.gmra.mxu0 %v1751
      %v1765 = vpop.f32.mrf.mxu0
      %v1766 = vadd.f32 0.0, %v1765
      %v1767 = vpop.f32.mrf.mxu0
      %1768 = vdwg.mxu0
      %1769 = vrot.lane.b32.xlu0 %v1709, 64
      %v1770 = vpop.permute.xlu0 %1769
      %1771 = vrot.lane.b32.xlu0 %v1657, 64
      %v1772 = vpop.permute.xlu0 %1771
      %v1774 = vsel %vm833, %v1770, 0
      %v1777 = vsel %vm833, %v1772, 0
      %1779 = vmatpush.bf16.xpose.msra.mxu0 0
      %1780 = vmatpush.bf16.xpose.msra.mxu0 0
      %1781 = vmatpush.bf16.xpose.msra.mxu0 0
      %1782 = vmatpush.bf16.xpose.msra.mxu0 0
      %1783 = vmatpush.bf16.xpose.msra.mxu0 0
      %1784 = vmatpush.bf16.xpose.msra.mxu0 0
      %1785 = vmatpush.bf16.xpose.msra.mxu0 0
      %1786 = vmatpush.bf16.xpose.msra.mxu0 %v1777
      %1787 = vmatmul.bf16.gmra.mxu0 %v1774
      %v1788 = vpop.f32.mrf.mxu0
      %v1789 = vadd.f32 %v948, %v1788
      %v1790 = vpop.f32.mrf.mxu0
      %1791 = vdwg.mxu0
      %v1792 = vsel %vm579, %v1789, -inf
      %1793 = vmax.xlane.f32.xlu0 %v1792
      %v1794 = vpop.xlane.xlu0 %1793
      %v1795 = vsub.f32 %v1789, %v1794
      %v1796 = vmul.f32 %v1795, 1.442695
      %v1797 = vpow.pop %v1796
      %v1798 = vsel %vm579, %v1797, 0.0
      %1799 = vadd.xlane.f32.xlu0 %v1798
      %v1800 = vpop.xlane.xlu0 %1799
      %v1801 = vrcp.pop %v1800
      %v1802 = vmul.f32 %v1797, %v1801
      %v1803 = vpack.c.bf16 %v1802, %v1802
      %1804 = vrot.lane.b32.xlu0 %v1747, 64
      %v1805 = vpop.permute.xlu0 %1804
      %v1807 = vsel %vm579, %v1803, 0
      %v1810 = vsel %vm583, %v1805, 0
      %1812 = vmatpush.bf16.msra.mxu0 0
      %1813 = vmatpush.bf16.msra.mxu0 0
      %1814 = vmatpush.bf16.msra.mxu0 0
      %1815 = vmatpush.bf16.msra.mxu0 0
      %1816 = vmatpush.bf16.msra.mxu0 0
      %1817 = vmatpush.bf16.msra.mxu0 0
      %1818 = vmatpush.bf16.msra.mxu0 0
      %1819 = vmatpush.bf16.msra.mxu0 %v1810
      %1820 = vmatmul.bf16.gmra.mxu0 %v1807
      %v1821 = vpop.f32.mrf.mxu0
      %v1822 = vadd.f32 0.0, %v1821
      %v1823 = vpop.f32.mrf.mxu0
      %1824 = vdwg.mxu0
      %1825 = vrot.lane.b32.xlu0 %v1709, 32
      %v1826 = vpop.permute.xlu0 %1825
      %1827 = vrot.lane.b32.xlu0 %v1657, 32
      %v1828 = vpop.permute.xlu0 %1827
      %v1830 = vsel %vm833, %v1826, 0
      %v1833 = vsel %vm833, %v1828, 0
      %1835 = vmatpush.bf16.xpose.msra.mxu0 0
      %1836 = vmatpush.bf16.xpose.msra.mxu0 0
      %1837 = vmatpush.bf16.xpose.msra.mxu0 0
      %1838 = vmatpush.bf16.xpose.msra.mxu0 0
      %1839 = vmatpush.bf16.xpose.msra.mxu0 0
      %1840 = vmatpush.bf16.xpose.msra.mxu0 0
      %1841 = vmatpush.bf16.xpose.msra.mxu0 0
      %1842 = vmatpush.bf16.xpose.msra.mxu0 %v1833
      %1843 = vmatmul.bf16.gmra.mxu0 %v1830
      %v1844 = vpop.f32.mrf.mxu0
      %v1845 = vadd.f32 %v1006, %v1844
      %v1846 = vpop.f32.mrf.mxu0
      %1847 = vdwg.mxu0
      %v1848 = vsel %vm579, %v1845, -inf
      %1849 = vmax.xlane.f32.xlu0 %v1848
      %v1850 = vpop.xlane.xlu0 %1849
      %v1851 = vsub.f32 %v1845, %v1850
      %v1852 = vmul.f32 %v1851, 1.442695
      %v1853 = vpow.pop %v1852
      %v1854 = vsel %vm579, %v1853, 0.0
      %1855 = vadd.xlane.f32.xlu0 %v1854
      %v1856 = vpop.xlane.xlu0 %1855
      %v1857 = vrcp.pop %v1856
      %v1858 = vmul.f32 %v1853, %v1857
      %v1859 = vpack.c.bf16 %v1858, %v1858
      %1860 = vrot.lane.b32.xlu0 %v1747, 32
      %v1861 = vpop.permute.xlu0 %1860
      %v1863 = vsel %vm579, %v1859, 0
      %v1866 = vsel %vm583, %v1861, 0
      %1868 = vmatpush.bf16.msra.mxu0 0
      %1869 = vmatpush.bf16.msra.mxu0 0
      %1870 = vmatpush.bf16.msra.mxu0 0
      %1871 = vmatpush.bf16.msra.mxu0 0
      %1872 = vmatpush.bf16.msra.mxu0 0
      %1873 = vmatpush.bf16.msra.mxu0 0
      %1874 = vmatpush.bf16.msra.mxu0 0
      %1875 = vmatpush.bf16.msra.mxu0 %v1866
      %1876 = vmatmul.bf16.gmra.mxu0 %v1863
      %v1877 = vpop.f32.mrf.mxu0
      %v1878 = vadd.f32 0.0, %v1877
      %v1879 = vpop.f32.mrf.mxu0
      %1880 = vdwg.mxu0
      %1882 = vrot.lane.b32.xlu0 %v1766, 32
      %v1883 = vpop.permute.xlu0 %1882
      %1886 = vrot.lane.b32.xlu0 %v1822, 64
      %v1887 = vpop.permute.xlu0 %1886
      %1890 = vrot.lane.b32.xlu0 %v1878, 96
      %v1891 = vpop.permute.xlu0 %1890
      %v1893 = vsel %vm833, %v1705, %v1883
      %v1894 = vsel %vm1076, %v1893, %v1887
      %v1895 = vsel %vm1078, %v1894, %v1891
      %v1896 = vpack.c.bf16 %v1895, %v1895
      %s1897 = scalar_lea.vmem %s9, 64
      %v1898 = vld [vmem:[%s1897] sm:$0xf]
      %v1899 = vld [vmem:[%s1897 + $0x4] sm:$0xf]
      %v1900 = vld [vmem:[%s1897 + $0x8] sm:$0xf]
      %v1901 = vld [vmem:[%s1897 + $0xc] sm:$0xf]
      %v1902 = vld [vmem:[%s1897 + $0x10] sm:$0xf]
      %v1903 = vld [vmem:[%s1897 + $0x14] sm:$0xf]
      %v1904 = vld [vmem:[%s1897 + $0x18] sm:$0xf]
      %v1905 = vld [vmem:[%s1897 + $0x1c] sm:$0xf]
      %v1906 = vld [vmem:[%s1897 + $0x20] sm:$0xf]
      %v1907 = vld [vmem:[%s1897 + $0x24] sm:$0xf]
      %v1908 = vld [vmem:[%s1897 + $0x28] sm:$0xf]
      %v1909 = vld [vmem:[%s1897 + $0x2c] sm:$0xf]
      %v1910 = vld [vmem:[%s1897 + $0x30] sm:$0xf]
      %v1911 = vld [vmem:[%s1897 + $0x34] sm:$0xf]
      %v1912 = vld [vmem:[%s1897 + $0x38] sm:$0xf]
      %v1913 = vld [vmem:[%s1897 + $0x3c] sm:$0xf]
      %v1930 = vunpack.c.l.b16 %v1898
      %v1931 = vunpack.c.l.b16 %v1899
      %v1932 = vunpack.c.l.b16 %v1900
      %v1933 = vunpack.c.l.b16 %v1901
      %v1934 = vunpack.c.l.b16 %v1902
      %v1935 = vunpack.c.l.b16 %v1903
      %v1936 = vunpack.c.l.b16 %v1904
      %v1937 = vunpack.c.l.b16 %v1905
      %v1938 = vunpack.c.l.b16 %v1906
      %v1939 = vunpack.c.l.b16 %v1907
      %v1940 = vunpack.c.l.b16 %v1908
      %v1941 = vunpack.c.l.b16 %v1909
      %v1942 = vunpack.c.l.b16 %v1910
      %v1943 = vunpack.c.l.b16 %v1911
      %v1944 = vunpack.c.l.b16 %v1912
      %v1945 = vunpack.c.l.b16 %v1913
      %v1946 = vpack.c.b16 %v1931, %v1930
      %v1947 = vpack.c.b16 %v1933, %v1932
      %v1948 = vpack.c.b16 %v1935, %v1934
      %v1949 = vpack.c.b16 %v1937, %v1936
      %v1950 = vpack.c.b16 %v1939, %v1938
      %v1951 = vpack.c.b16 %v1941, %v1940
      %v1952 = vpack.c.b16 %v1943, %v1942
      %v1953 = vpack.c.b16 %v1945, %v1944
      %1962 = vmatpush.bf16.msra.mxu0 %v1953
      %1963 = vmatpush.bf16.msra.mxu0 %v1952
      %1964 = vmatpush.bf16.msra.mxu0 %v1951
      %1965 = vmatpush.bf16.msra.mxu0 %v1950
      %1966 = vmatpush.bf16.msra.mxu0 %v1949
      %1967 = vmatpush.bf16.msra.mxu0 %v1948
      %1968 = vmatpush.bf16.msra.mxu0 %v1947
      %1969 = vmatpush.bf16.msra.mxu0 %v1946
      %1970 = vmatmul.bf16.gmra.mxu0 %v1896
      %v1971 = vpop.f32.mrf.mxu0
      %v1972 = vadd.f32 0.0, %v1971
      %v1973 = vpop.f32.mrf.mxu0
      %1974 = vdwg.mxu0
      %v1975 = vadd.f32 %v1451, %v1972
      %v1976 = vpack.c.bf16 %v1975, %v1975
      %s1977 = scalar_lea.vmem %s10, 128
      %v1978 = vld [vmem:[%s1977] sm:$0xff]
      %v1979 = vld [vmem:[%s1977 + $0x8] sm:$0xff]
      %v1980 = vld [vmem:[%s1977 + $0x10] sm:$0xff]
      %v1981 = vld [vmem:[%s1977 + $0x18] sm:$0xff]
      %v1982 = vld [vmem:[%s1977 + $0x20] sm:$0xff]
      %v1983 = vld [vmem:[%s1977 + $0x28] sm:$0xff]
      %v1984 = vld [vmem:[%s1977 + $0x30] sm:$0xff]
      %v1985 = vld [vmem:[%s1977 + $0x38] sm:$0xff]
      %v1986 = vld [vmem:[%s1977 + $0x40] sm:$0xff]
      %v1987 = vld [vmem:[%s1977 + $0x48] sm:$0xff]
      %v1988 = vld [vmem:[%s1977 + $0x50] sm:$0xff]
      %v1989 = vld [vmem:[%s1977 + $0x58] sm:$0xff]
      %v1990 = vld [vmem:[%s1977 + $0x60] sm:$0xff]
      %v1991 = vld [vmem:[%s1977 + $0x68] sm:$0xff]
      %v1992 = vld [vmem:[%s1977 + $0x70] sm:$0xff]
      %v1993 = vld [vmem:[%s1977 + $0x78] sm:$0xff]
      %s1994 = scalar_lea.vmem %s11, 2
      %v1995 = vld [vmem:[%s1994] sm:$0x3]
      %v1997 = vperm.slane %v1995, 0
      %v1998 = vperm.slane %v1995, 1
      %v2017 = vunpack.c.l.b16 %v1978
      %v2018 = vunpack.c.h.b16 %v1978
      %v2019 = vunpack.c.l.b16 %v1979
      %v2020 = vunpack.c.h.b16 %v1979
      %v2021 = vunpack.c.l.b16 %v1980
      %v2022 = vunpack.c.h.b16 %v1980
      %v2023 = vunpack.c.l.b16 %v1981
      %v2024 = vunpack.c.h.b16 %v1981
      %v2025 = vunpack.c.l.b16 %v1982
      %v2026 = vunpack.c.h.b16 %v1982
      %v2027 = vunpack.c.l.b16 %v1983
      %v2028 = vunpack.c.h.b16 %v1983
      %v2029 = vunpack.c.l.b16 %v1984
      %v2030 = vunpack.c.h.b16 %v1984
      %v2031 = vunpack.c.l.b16 %v1985
      %v2032 = vunpack.c.h.b16 %v1985
      %v2033 = vunpack.c.l.b16 %v1986
      %v2034 = vunpack.c.h.b16 %v1986
      %v2035 = vunpack.c.l.b16 %v1987
      %v2036 = vunpack.c.h.b16 %v1987
      %v2037 = vunpack.c.l.b16 %v1988
      %v2038 = vunpack.c.h.b16 %v1988
      %v2039 = vunpack.c.l.b16 %v1989
      %v2040 = vunpack.c.h.b16 %v1989
      %v2041 = vunpack.c.l.b16 %v1990
      %v2042 = vunpack.c.h.b16 %v1990
      %v2043 = vunpack.c.l.b16 %v1991
      %v2044 = vunpack.c.h.b16 %v1991
      %v2045 = vunpack.c.l.b16 %v1992
      %v2046 = vunpack.c.h.b16 %v1992
      %v2047 = vunpack.c.l.b16 %v1993
      %v2048 = vunpack.c.h.b16 %v1993
      %v2049 = vpack.c.b16 %v2019, %v2017
      %v2050 = vpack.c.b16 %v2020, %v2018
      %v2051 = vpack.c.b16 %v2023, %v2021
      %v2052 = vpack.c.b16 %v2024, %v2022
      %v2053 = vpack.c.b16 %v2027, %v2025
      %v2054 = vpack.c.b16 %v2028, %v2026
      %v2055 = vpack.c.b16 %v2031, %v2029
      %v2056 = vpack.c.b16 %v2032, %v2030
      %v2057 = vpack.c.b16 %v2035, %v2033
      %v2058 = vpack.c.b16 %v2036, %v2034
      %v2059 = vpack.c.b16 %v2039, %v2037
      %v2060 = vpack.c.b16 %v2040, %v2038
      %v2061 = vpack.c.b16 %v2043, %v2041
      %v2062 = vpack.c.b16 %v2044, %v2042
      %v2063 = vpack.c.b16 %v2047, %v2045
      %v2064 = vpack.c.b16 %v2048, %v2046
      %2081 = vmatpush.bf16.msra.mxu0 %v2063
      %2082 = vmatpush.bf16.msra.mxu0 %v2061
      %2083 = vmatpush.bf16.msra.mxu0 %v2059
      %2084 = vmatpush.bf16.msra.mxu0 %v2057
      %2085 = vmatpush.bf16.msra.mxu0 %v2055
      %2086 = vmatpush.bf16.msra.mxu0 %v2053
      %2087 = vmatpush.bf16.msra.mxu0 %v2051
      %2088 = vmatpush.bf16.msra.mxu0 %v2049
      %2089 = vmatmul.bf16.gmra.mxu0 %v1976
      %v2090 = vpop.f32.mrf.mxu0
      %v2091 = vadd.f32 %v1997, %v2090
      %v2092 = vpop.f32.mrf.mxu0
      %2093 = vdwg.mxu0
      %2094 = vmatpush.bf16.msra.mxu0 %v2064
      %2095 = vmatpush.bf16.msra.mxu0 %v2062
      %2096 = vmatpush.bf16.msra.mxu0 %v2060
      %2097 = vmatpush.bf16.msra.mxu0 %v2058
      %2098 = vmatpush.bf16.msra.mxu0 %v2056
      %2099 = vmatpush.bf16.msra.mxu0 %v2054
      %2100 = vmatpush.bf16.msra.mxu0 %v2052
      %2101 = vmatpush.bf16.msra.mxu0 %v2050
      %2102 = vmatmul.bf16.gmra.mxu0 %v1976
      %v2103 = vpop.f32.mrf.mxu0
      %v2104 = vadd.f32 %v1998, %v2103
      %v2105 = vpop.f32.mrf.mxu0
      %2106 = vdwg.mxu0
      %v2107 = vmax.f32 %v2091, 0.0
      %v2108 = vmax.f32 %v2104, 0.0
      %v2109 = vpack.c.bf16 %v2107, %v2107
      %v2110 = vpack.c.bf16 %v2108, %v2108
      %s2111 = scalar_lea.vmem %s12, 128
      %v2112 = vld [vmem:[%s2111] sm:$0xf]
      %v2113 = vld [vmem:[%s2111 + $0x4] sm:$0xf]
      %v2114 = vld [vmem:[%s2111 + $0x8] sm:$0xf]
      %v2115 = vld [vmem:[%s2111 + $0xc] sm:$0xf]
      %v2116 = vld [vmem:[%s2111 + $0x10] sm:$0xf]
      %v2117 = vld [vmem:[%s2111 + $0x14] sm:$0xf]
      %v2118 = vld [vmem:[%s2111 + $0x18] sm:$0xf]
      %v2119 = vld [vmem:[%s2111 + $0x1c] sm:$0xf]
      %v2120 = vld [vmem:[%s2111 + $0x20] sm:$0xf]
      %v2121 = vld [vmem:[%s2111 + $0x24] sm:$0xf]
      %v2122 = vld [vmem:[%s2111 + $0x28] sm:$0xf]
      %v2123 = vld [vmem:[%s2111 + $0x2c] sm:$0xf]
      %v2124 = vld [vmem:[%s2111 + $0x30] sm:$0xf]
      %v2125 = vld [vmem:[%s2111 + $0x34] sm:$0xf]
      %v2126 = vld [vmem:[%s2111 + $0x38] sm:$0xf]
      %v2127 = vld [vmem:[%s2111 + $0x3c] sm:$0xf]
      %v2128 = vld [vmem:[%s2111 + $0x40] sm:$0xf]
      %v2129 = vld [vmem:[%s2111 + $0x44] sm:$0xf]
      %v2130 = vld [vmem:[%s2111 + $0x48] sm:$0xf]
      %v2131 = vld [vmem:[%s2111 + $0x4c] sm:$0xf]
      %v2132 = vld [vmem:[%s2111 + $0x50] sm:$0xf]
      %v2133 = vld [vmem:[%s2111 + $0x54] sm:$0xf]
      %v2134 = vld [vmem:[%s2111 + $0x58] sm:$0xf]
      %v2135 = vld [vmem:[%s2111 + $0x5c] sm:$0xf]
      %v2136 = vld [vmem:[%s2111 + $0x60] sm:$0xf]
      %v2137 = vld [vmem:[%s2111 + $0x64] sm:$0xf]
      %v2138 = vld [vmem:[%s2111 + $0x68] sm:$0xf]
      %v2139 = vld [vmem:[%s2111 + $0x6c] sm:$0xf]
      %v2140 = vld [vmem:[%s2111 + $0x70] sm:$0xf]
      %v2141 = vld [vmem:[%s2111 + $0x74] sm:$0xf]
      %v2142 = vld [vmem:[%s2111 + $0x78] sm:$0xf]
      %v2143 = vld [vmem:[%s2111 + $0x7c] sm:$0xf]
      %v2176 = vunpack.c.l.b16 %v2112
      %v2177 = vunpack.c.l.b16 %v2113
      %v2178 = vunpack.c.l.b16 %v2114
      %v2179 = vunpack.c.l.b16 %v2115
      %v2180 = vunpack.c.l.b16 %v2116
      %v2181 = vunpack.c.l.b16 %v2117
      %v2182 = vunpack.c.l.b16 %v2118
      %v2183 = vunpack.c.l.b16 %v2119
      %v2184 = vunpack.c.l.b16 %v2120
      %v2185 = vunpack.c.l.b16 %v2121
      %v2186 = vunpack.c.l.b16 %v2122
      %v2187 = vunpack.c.l.b16 %v2123
      %v2188 = vunpack.c.l.b16 %v2124
      %v2189 = vunpack.c.l.b16 %v2125
      %v2190 = vunpack.c.l.b16 %v2126
      %v2191 = vunpack.c.l.b16 %v2127
      %v2192 = vunpack.c.l.b16 %v2128
      %v2193 = vunpack.c.l.b16 %v2129
      %v2194 = vunpack.c.l.b16 %v2130
      %v2195 = vunpack.c.l.b16 %v2131
      %v2196 = vunpack.c.l.b16 %v2132
      %v2197 = vunpack.c.l.b16 %v2133
      %v2198 = vunpack.c.l.b16 %v2134
      %v2199 = vunpack.c.l.b16 %v2135
      %v2200 = vunpack.c.l.b16 %v2136
      %v2201 = vunpack.c.l.b16 %v2137
      %v2202 = vunpack.c.l.b16 %v2138
      %v2203 = vunpack.c.l.b16 %v2139
      %v2204 = vunpack.c.l.b16 %v2140
      %v2205 = vunpack.c.l.b16 %v2141
      %v2206 = vunpack.c.l.b16 %v2142
      %v2207 = vunpack.c.l.b16 %v2143
      %v2208 = vpack.c.b16 %v2177, %v2176
      %v2209 = vpack.c.b16 %v2179, %v2178
      %v2210 = vpack.c.b16 %v2181, %v2180
      %v2211 = vpack.c.b16 %v2183, %v2182
      %v2212 = vpack.c.b16 %v2185, %v2184
      %v2213 = vpack.c.b16 %v2187, %v2186
      %v2214 = vpack.c.b16 %v2189, %v2188
      %v2215 = vpack.c.b16 %v2191, %v2190
      %v2216 = vpack.c.b16 %v2193, %v2192
      %v2217 = vpack.c.b16 %v2195, %v2194
      %v2218 = vpack.c.b16 %v2197, %v2196
      %v2219 = vpack.c.b16 %v2199, %v2198
      %v2220 = vpack.c.b16 %v2201, %v2200
      %v2221 = vpack.c.b16 %v2203, %v2202
      %v2222 = vpack.c.b16 %v2205, %v2204
      %v2223 = vpack.c.b16 %v2207, %v2206
      %2240 = vmatpush.bf16.msra.mxu0 %v2215
      %2241 = vmatpush.bf16.msra.mxu0 %v2214
      %2242 = vmatpush.bf16.msra.mxu0 %v2213
      %2243 = vmatpush.bf16.msra.mxu0 %v2212
      %2244 = vmatpush.bf16.msra.mxu0 %v2211
      %2245 = vmatpush.bf16.msra.mxu0 %v2210
      %2246 = vmatpush.bf16.msra.mxu0 %v2209
      %2247 = vmatpush.bf16.msra.mxu0 %v2208
      %2248 = vmatmul.bf16.gmra.mxu0 %v2109
      %v2249 = vpop.f32.mrf.mxu0
      %v2250 = vadd.f32 0.0, %v2249
      %v2251 = vpop.f32.mrf.mxu0
      %2252 = vdwg.mxu0
      %2253 = vmatpush.bf16.msra.mxu0 %v2223
      %2254 = vmatpush.bf16.msra.mxu0 %v2222
      %2255 = vmatpush.bf16.msra.mxu0 %v2221
      %2256 = vmatpush.bf16.msra.mxu0 %v2220
      %2257 = vmatpush.bf16.msra.mxu0 %v2219
      %2258 = vmatpush.bf16.msra.mxu0 %v2218
      %2259 = vmatpush.bf16.msra.mxu0 %v2217
      %2260 = vmatpush.bf16.msra.mxu0 %v2216
      %2261 = vmatmul.bf16.gmra.mxu0 %v2110
      %v2262 = vpop.f32.mrf.mxu0
      %v2263 = vadd.f32 %v2250, %v2262
      %v2264 = vpop.f32.mrf.mxu0
      %2265 = vdwg.mxu0
      %v2266 = vadd.f32 %v1975, %v2263
      %s2267 = scalar_lea.vmem %s13, 1
      %v2268 = vld [vmem:[%s2267] sm:$0x1]
      %v2270 = vperm.slane %v2268, 0
      %v2272 = vadd.f32 %v2266, %v2270
      %v2273 = vpack.c.bf16 %v2272, %v2272
      %s2274 = scalar_lea.vmem %s8, 384
      %v2275 = vld [vmem:[%s2274] sm:$0xff]
      %v2276 = vld [vmem:[%s2274 + $0x8] sm:$0xf]
      %v2277 = vld [vmem:[%s2274 + $0xc] sm:$0xff]
      %v2278 = vld [vmem:[%s2274 + $0x14] sm:$0xf]
      %v2279 = vld [vmem:[%s2274 + $0x18] sm:$0xff]
      %v2280 = vld [vmem:[%s2274 + $0x20] sm:$0xf]
      %v2281 = vld [vmem:[%s2274 + $0x24] sm:$0xff]
      %v2282 = vld [vmem:[%s2274 + $0x2c] sm:$0xf]
      %v2283 = vld [vmem:[%s2274 + $0x30] sm:$0xff]
      %v2284 = vld [vmem:[%s2274 + $0x38] sm:$0xf]
      %v2285 = vld [vmem:[%s2274 + $0x3c] sm:$0xff]
      %v2286 = vld [vmem:[%s2274 + $0x44] sm:$0xf]
      %v2287 = vld [vmem:[%s2274 + $0x48] sm:$0xff]
      %v2288 = vld [vmem:[%s2274 + $0x50] sm:$0xf]
      %v2289 = vld [vmem:[%s2274 + $0x54] sm:$0xff]
      %v2290 = vld [vmem:[%s2274 + $0x5c] sm:$0xf]
      %v2291 = vld [vmem:[%s2274 + $0x60] sm:$0xff]
      %v2292 = vld [vmem:[%s2274 + $0x68] sm:$0xf]
      %v2293 = vld [vmem:[%s2274 + $0x6c] sm:$0xff]
      %v2294 = vld [vmem:[%s2274 + $0x74] sm:$0xf]
      %v2295 = vld [vmem:[%s2274 + $0x78] sm:$0xff]
      %v2296 = vld [vmem:[%s2274 + $0x80] sm:$0xf]
      %v2297 = vld [vmem:[%s2274 + $0x84] sm:$0xff]
      %v2298 = vld [vmem:[%s2274 + $0x8c] sm:$0xf]
      %v2299 = vld [vmem:[%s2274 + $0x90] sm:$0xff]
      %v2300 = vld [vmem:[%s2274 + $0x98] sm:$0xf]
      %v2301 = vld [vmem:[%s2274 + $0x9c] sm:$0xff]
      %v2302 = vld [vmem:[%s2274 + $0xa4] sm:$0xf]
      %v2303 = vld [vmem:[%s2274 + $0xa8] sm:$0xff]
      %v2304 = vld [vmem:[%s2274 + $0xb0] sm:$0xf]
      %v2305 = vld [vmem:[%s2274 + $0xb4] sm:$0xff]
      %v2306 = vld [vmem:[%s2274 + $0xbc] sm:$0xf]
      %v2339 = vunpack.c.l.b16 %v2275
      %v2340 = vunpack.c.h.b16 %v2275
      %v2341 = vunpack.c.l.b16 %v2276
      %v2342 = vunpack.c.l.b16 %v2277
      %v2343 = vunpack.c.h.b16 %v2277
      %v2344 = vunpack.c.l.b16 %v2278
      %v2345 = vunpack.c.l.b16 %v2279
      %v2346 = vunpack.c.h.b16 %v2279
      %v2347 = vunpack.c.l.b16 %v2280
      %v2348 = vunpack.c.l.b16 %v2281
      %v2349 = vunpack.c.h.b16 %v2281
      %v2350 = vunpack.c.l.b16 %v2282
      %v2351 = vunpack.c.l.b16 %v2283
      %v2352 = vunpack.c.h.b16 %v2283
      %v2353 = vunpack.c.l.b16 %v2284
      %v2354 = vunpack.c.l.b16 %v2285
      %v2355 = vunpack.c.h.b16 %v2285
      %v2356 = vunpack.c.l.b16 %v2286
      %v2357 = vunpack.c.l.b16 %v2287
      %v2358 = vunpack.c.h.b16 %v2287
      %v2359 = vunpack.c.l.b16 %v2288
      %v2360 = vunpack.c.l.b16 %v2289
      %v2361 = vunpack.c.h.b16 %v2289
      %v2362 = vunpack.c.l.b16 %v2290
      %v2363 = vunpack.c.l.b16 %v2291
      %v2364 = vunpack.c.h.b16 %v2291
      %v2365 = vunpack.c.l.b16 %v2292
      %v2366 = vunpack.c.l.b16 %v2293
      %v2367 = vunpack.c.h.b16 %v2293
      %v2368 = vunpack.c.l.b16 %v2294
      %v2369 = vunpack.c.l.b16 %v2295
      %v2370 = vunpack.c.h.b16 %v2295
      %v2371 = vunpack.c.l.b16 %v2296
      %v2372 = vunpack.c.l.b16 %v2297
      %v2373 = vunpack.c.h.b16 %v2297
      %v2374 = vunpack.c.l.b16 %v2298
      %v2375 = vunpack.c.l.b16 %v2299
      %v2376 = vunpack.c.h.b16 %v2299
      %v2377 = vunpack.c.l.b16 %v2300
      %v2378 = vunpack.c.l.b16 %v2301
      %v2379 = vunpack.c.h.b16 %v2301
      %v2380 = vunpack.c.l.b16 %v2302
      %v2381 = vunpack.c.l.b16 %v2303
      %v2382 = vunpack.c.h.b16 %v2303
      %v2383 = vunpack.c.l.b16 %v2304
      %v2384 = vunpack.c.l.b16 %v2305
      %v2385 = vunpack.c.h.b16 %v2305
      %v2386 = vunpack.c.l.b16 %v2306
      %v2387 = vpack.c.b16 %v2342, %v2339
      %v2388 = vpack.c.b16 %v2343, %v2340
      %v2389 = vpack.c.b16 %v2344, %v2341
      %v2390 = vpack.c.b16 %v2348, %v2345
      %v2391 = vpack.c.b16 %v2349, %v2346
      %v2392 = vpack.c.b16 %v2350, %v2347
      %v2393 = vpack.c.b16 %v2354, %v2351
      %v2394 = vpack.c.b16 %v2355, %v2352
      %v2395 = vpack.c.b16 %v2356, %v2353
      %v2396 = vpack.c.b16 %v2360, %v2357
      %v2397 = vpack.c.b16 %v2361, %v2358
      %v2398 = vpack.c.b16 %v2362, %v2359
      %v2399 = vpack.c.b16 %v2366, %v2363
      %v2400 = vpack.c.b16 %v2367, %v2364
      %v2401 = vpack.c.b16 %v2368, %v2365
      %v2402 = vpack.c.b16 %v2372, %v2369
      %v2403 = vpack.c.b16 %v2373, %v2370
      %v2404 = vpack.c.b16 %v2374, %v2371
      %v2405 = vpack.c.b16 %v2378, %v2375
      %v2406 = vpack.c.b16 %v2379, %v2376
      %v2407 = vpack.c.b16 %v2380, %v2377
      %v2408 = vpack.c.b16 %v2384, %v2381
      %v2409 = vpack.c.b16 %v2385, %v2382
      %v2410 = vpack.c.b16 %v2386, %v2383
      %2435 = vmatpush.bf16.msra.mxu0 %v2408
      %2436 = vmatpush.bf16.msra.mxu0 %v2405
      %2437 = vmatpush.bf16.msra.mxu0 %v2402
      %2438 = vmatpush.bf16.msra.mxu0 %v2399
      %2439 = vmatpush.bf16.msra.mxu0 %v2396
      %2440 = vmatpush.bf16.msra.mxu0 %v2393
      %2441 = vmatpush.bf16.msra.mxu0 %v2390
      %2442 = vmatpush.bf16.msra.mxu0 %v2387
      %2443 = vmatmul.bf16.gmra.mxu0 %v2273
      %v2444 = vpop.f32.mrf.mxu0
      %v2445 = vadd.f32 0.0, %v2444
      %v2446 = vpop.f32.mrf.mxu0
      %2447 = vdwg.mxu0
      %2448 = vmatpush.bf16.msra.mxu0 %v2409
      %2449 = vmatpush.bf16.msra.mxu0 %v2406
      %2450 = vmatpush.bf16.msra.mxu0 %v2403
      %2451 = vmatpush.bf16.msra.mxu0 %v2400
      %2452 = vmatpush.bf16.msra.mxu0 %v2397
      %2453 = vmatpush.bf16.msra.mxu0 %v2394
      %2454 = vmatpush.bf16.msra.mxu0 %v2391
      %2455 = vmatpush.bf16.msra.mxu0 %v2388
      %2456 = vmatmul.bf16.gmra.mxu0 %v2273
      %v2457 = vpop.f32.mrf.mxu0
      %v2458 = vadd.f32 0.0, %v2457
      %v2459 = vpop.f32.mrf.mxu0
      %2460 = vdwg.mxu0
      %2461 = vmatpush.bf16.msra.mxu0 %v2410
      %2462 = vmatpush.bf16.msra.mxu0 %v2407
      %2463 = vmatpush.bf16.msra.mxu0 %v2404
      %2464 = vmatpush.bf16.msra.mxu0 %v2401
      %2465 = vmatpush.bf16.msra.mxu0 %v2398
      %2466 = vmatpush.bf16.msra.mxu0 %v2395
      %2467 = vmatpush.bf16.msra.mxu0 %v2392
      %2468 = vmatpush.bf16.msra.mxu0 %v2389
      %2469 = vmatmul.bf16.gmra.mxu0 %v2273
      %v2470 = vpop.f32.mrf.mxu0
      %v2471 = vadd.f32 0.0, %v2470
      %v2472 = vpop.f32.mrf.mxu0
      %2473 = vdwg.mxu0
      %v2474 = vpack.c.bf16 %v2458, %v2445
      %v2475 = vpack.c.bf16 %v2471, %v2471
      %v2476 = vld [vmem:[%s566] sm:$0xff]
      %v2478 = vunpack.c.h.b16 %v2474
      %v2479 = vpack.c.b16 %v2478, %v2478
      %v2481 = vsel %vm833, %v2474, 0
      %v2484 = vsel %vm833, %v2479, 0
      %2486 = vmatpush.bf16.xpose.msra.mxu0 0
      %2487 = vmatpush.bf16.xpose.msra.mxu0 0
      %2488 = vmatpush.bf16.xpose.msra.mxu0 0
      %2489 = vmatpush.bf16.xpose.msra.mxu0 0
      %2490 = vmatpush.bf16.xpose.msra.mxu0 0
      %2491 = vmatpush.bf16.xpose.msra.mxu0 0
      %2492 = vmatpush.bf16.xpose.msra.mxu0 0
      %2493 = vmatpush.bf16.xpose.msra.mxu0 %v2484
      %2494 = vmatmul.bf16.gmra.mxu0 %v2481
      %v2495 = vpop.f32.mrf.mxu0
      %v2496 = vadd.f32 %v2476, %v2495
      %v2497 = vpop.f32.mrf.mxu0
      %2498 = vdwg.mxu0
      %v2499 = vsel %vm579, %v2496, -inf
      %2500 = vmax.xlane.f32.xlu0 %v2499
      %v2501 = vpop.xlane.xlu0 %2500
      %v2502 = vsub.f32 %v2496, %v2501
      %v2503 = vmul.f32 %v2502, 1.442695
      %v2504 = vpow.pop %v2503
      %v2505 = vsel %vm579, %v2504, 0.0
      %2506 = vadd.xlane.f32.xlu0 %v2505
      %v2507 = vpop.xlane.xlu0 %2506
      %v2508 = vrcp.pop %v2507
      %v2509 = vmul.f32 %v2504, %v2508
      %v2510 = vpack.c.bf16 %v2509, %v2509
      %v2512 = vsel %vm579, %v2510, 0
      %v2515 = vsel %vm583, %v2475, 0
      %2517 = vmatpush.bf16.msra.mxu0 0
      %2518 = vmatpush.bf16.msra.mxu0 0
      %2519 = vmatpush.bf16.msra.mxu0 0
      %2520 = vmatpush.bf16.msra.mxu0 0
      %2521 = vmatpush.bf16.msra.mxu0 0
      %2522 = vmatpush.bf16.msra.mxu0 0
      %2523 = vmatpush.bf16.msra.mxu0 0
      %2524 = vmatpush.bf16.msra.mxu0 %v2515
      %2525 = vmatmul.bf16.gmra.mxu0 %v2512
      %v2526 = vpop.f32.mrf.mxu0
      %v2527 = vadd.f32 0.0, %v2526
      %v2528 = vpop.f32.mrf.mxu0
      %2529 = vdwg.mxu0
      %s2530 = scalar_lea.vmem %s566, 8
      %v2531 = vld [vmem:[%s2530] sm:$0xff]
      %v2532 = vunpack.c.l.b16 %v2474
      %v2533 = vpack.c.b16 %v2532, %v2532
      %2534 = vrot.lane.b32.xlu0 %v2533, 96
      %v2535 = vpop.permute.xlu0 %2534
      %2536 = vrot.lane.b32.xlu0 %v2479, 96
      %v2537 = vpop.permute.xlu0 %2536
      %v2539 = vsel %vm833, %v2535, 0
      %v2542 = vsel %vm833, %v2537, 0
      %2544 = vmatpush.bf16.xpose.msra.mxu0 0
      %2545 = vmatpush.bf16.xpose.msra.mxu0 0
      %2546 = vmatpush.bf16.xpose.msra.mxu0 0
      %2547 = vmatpush.bf16.xpose.msra.mxu0 0
      %2548 = vmatpush.bf16.xpose.msra.mxu0 0
      %2549 = vmatpush.bf16.xpose.msra.mxu0 0
      %2550 = vmatpush.bf16.xpose.msra.mxu0 0
      %2551 = vmatpush.bf16.xpose.msra.mxu0 %v2542
      %2552 = vmatmul.bf16.gmra.mxu0 %v2539
      %v2553 = vpop.f32.mrf.mxu0
      %v2554 = vadd.f32 %v2531, %v2553
      %v2555 = vpop.f32.mrf.mxu0
      %2556 = vdwg.mxu0
      %v2557 = vsel %vm579, %v2554, -inf
      %2558 = vmax.xlane.f32.xlu0 %v2557
      %v2559 = vpop.xlane.xlu0 %2558
      %v2560 = vsub.f32 %v2554, %v2559
      %v2561 = vmul.f32 %v2560, 1.442695
      %v2562 = vpow.pop %v2561
      %v2563 = vsel %vm579, %v2562, 0.0
      %2564 = vadd.xlane.f32.xlu0 %v2563
      %v2565 = vpop.xlane.xlu0 %2564
      %v2566 = vrcp.pop %v2565
      %v2567 = vmul.f32 %v2562, %v2566
      %v2568 = vpack.c.bf16 %v2567, %v2567
      %v2570 = vunpack.c.l.b16 %v2475
      %v2571 = vpack.c.b16 %v2570, %v2570
      %2572 = vrot.lane.b32.xlu0 %v2571, 96
      %v2573 = vpop.permute.xlu0 %2572
      %v2575 = vsel %vm579, %v2568, 0
      %v2578 = vsel %vm583, %v2573, 0
      %2580 = vmatpush.bf16.msra.mxu0 0
      %2581 = vmatpush.bf16.msra.mxu0 0
      %2582 = vmatpush.bf16.msra.mxu0 0
      %2583 = vmatpush.bf16.msra.mxu0 0
      %2584 = vmatpush.bf16.msra.mxu0 0
      %2585 = vmatpush.bf16.msra.mxu0 0
      %2586 = vmatpush.bf16.msra.mxu0 0
      %2587 = vmatpush.bf16.msra.mxu0 %v2578
      %2588 = vmatmul.bf16.gmra.mxu0 %v2575
      %v2589 = vpop.f32.mrf.mxu0
      %v2590 = vadd.f32 0.0, %v2589
      %v2591 = vpop.f32.mrf.mxu0
      %2592 = vdwg.mxu0
      %s2593 = scalar_lea.vmem %s566, 16
      %v2594 = vld [vmem:[%s2593] sm:$0xff]
      %2595 = vrot.lane.b32.xlu0 %v2533, 64
      %v2596 = vpop.permute.xlu0 %2595
      %2597 = vrot.lane.b32.xlu0 %v2479, 64
      %v2598 = vpop.permute.xlu0 %2597
      %v2600 = vsel %vm833, %v2596, 0
      %v2603 = vsel %vm833, %v2598, 0
      %2605 = vmatpush.bf16.xpose.msra.mxu0 0
      %2606 = vmatpush.bf16.xpose.msra.mxu0 0
      %2607 = vmatpush.bf16.xpose.msra.mxu0 0
      %2608 = vmatpush.bf16.xpose.msra.mxu0 0
      %2609 = vmatpush.bf16.xpose.msra.mxu0 0
      %2610 = vmatpush.bf16.xpose.msra.mxu0 0
      %2611 = vmatpush.bf16.xpose.msra.mxu0 0
      %2612 = vmatpush.bf16.xpose.msra.mxu0 %v2603
      %2613 = vmatmul.bf16.gmra.mxu0 %v2600
      %v2614 = vpop.f32.mrf.mxu0
      %v2615 = vadd.f32 %v2594, %v2614
      %v2616 = vpop.f32.mrf.mxu0
      %2617 = vdwg.mxu0
      %v2618 = vsel %vm579, %v2615, -inf
      %2619 = vmax.xlane.f32.xlu0 %v2618
      %v2620 = vpop.xlane.xlu0 %2619
      %v2621 = vsub.f32 %v2615, %v2620
      %v2622 = vmul.f32 %v2621, 1.442695
      %v2623 = vpow.pop %v2622
      %v2624 = vsel %vm579, %v2623, 0.0
      %2625 = vadd.xlane.f32.xlu0 %v2624
      %v2626 = vpop.xlane.xlu0 %2625
      %v2627 = vrcp.pop %v2626
      %v2628 = vmul.f32 %v2623, %v2627
      %v2629 = vpack.c.bf16 %v2628, %v2628
      %2630 = vrot.lane.b32.xlu0 %v2571, 64
      %v2631 = vpop.permute.xlu0 %2630
      %v2633 = vsel %vm579, %v2629, 0
      %v2636 = vsel %vm583, %v2631, 0
      %2638 = vmatpush.bf16.msra.mxu0 0
      %2639 = vmatpush.bf16.msra.mxu0 0
      %2640 = vmatpush.bf16.msra.mxu0 0
      %2641 = vmatpush.bf16.msra.mxu0 0
      %2642 = vmatpush.bf16.msra.mxu0 0
      %2643 = vmatpush.bf16.msra.mxu0 0
      %2644 = vmatpush.bf16.msra.mxu0 0
      %2645 = vmatpush.bf16.msra.mxu0 %v2636
      %2646 = vmatmul.bf16.gmra.mxu0 %v2633
      %v2647 = vpop.f32.mrf.mxu0
      %v2648 = vadd.f32 0.0, %v2647
      %v2649 = vpop.f32.mrf.mxu0
      %2650 = vdwg.mxu0
      %s2651 = scalar_lea.vmem %s566, 24
      %v2652 = vld [vmem:[%s2651] sm:$0xff]
      %2653 = vrot.lane.b32.xlu0 %v2533, 32
      %v2654 = vpop.permute.xlu0 %2653
      %2655 = vrot.lane.b32.xlu0 %v2479, 32
      %v2656 = vpop.permute.xlu0 %2655
      %v2658 = vsel %vm833, %v2654, 0
      %v2661 = vsel %vm833, %v2656, 0
      %2663 = vmatpush.bf16.xpose.msra.mxu0 0
      %2664 = vmatpush.bf16.xpose.msra.mxu0 0
      %2665 = vmatpush.bf16.xpose.msra.mxu0 0
      %2666 = vmatpush.bf16.xpose.msra.mxu0 0
      %2667 = vmatpush.bf16.xpose.msra.mxu0 0
      %2668 = vmatpush.bf16.xpose.msra.mxu0 0
      %2669 = vmatpush.bf16.xpose.msra.mxu0 0
      %2670 = vmatpush.bf16.xpose.msra.mxu0 %v2661
      %2671 = vmatmul.bf16.gmra.mxu0 %v2658
      %v2672 = vpop.f32.mrf.mxu0
      %v2673 = vadd.f32 %v2652, %v2672
      %v2674 = vpop.f32.mrf.mxu0
      %2675 = vdwg.mxu0
      %v2676 = vsel %vm579, %v2673, -inf
      %2677 = vmax.xlane.f32.xlu0 %v2676
      %v2678 = vpop.xlane.xlu0 %2677
      %v2679 = vsub.f32 %v2673, %v2678
      %v2680 = vmul.f32 %v2679, 1.442695
      %v2681 = vpow.pop %v2680
      %v2682 = vsel %vm579, %v2681, 0.0
      %2683 = vadd.xlane.f32.xlu0 %v2682
      %v2684 = vpop.xlane.xlu0 %2683
      %v2685 = vrcp.pop %v2684
      %v2686 = vmul.f32 %v2681, %v2685
      %v2687 = vpack.c.bf16 %v2686, %v2686
      %2688 = vrot.lane.b32.xlu0 %v2571, 32
      %v2689 = vpop.permute.xlu0 %2688
      %v2691 = vsel %vm579, %v2687, 0
      %v2694 = vsel %vm583, %v2689, 0
      %2696 = vmatpush.bf16.msra.mxu0 0
      %2697 = vmatpush.bf16.msra.mxu0 0
      %2698 = vmatpush.bf16.msra.mxu0 0
      %2699 = vmatpush.bf16.msra.mxu0 0
      %2700 = vmatpush.bf16.msra.mxu0 0
      %2701 = vmatpush.bf16.msra.mxu0 0
      %2702 = vmatpush.bf16.msra.mxu0 0
      %2703 = vmatpush.bf16.msra.mxu0 %v2694
      %2704 = vmatmul.bf16.gmra.mxu0 %v2691
      %v2705 = vpop.f32.mrf.mxu0
      %v2706 = vadd.f32 0.0, %v2705
      %v2707 = vpop.f32.mrf.mxu0
      %2708 = vdwg.mxu0
      %2710 = vrot.lane.b32.xlu0 %v2590, 32
      %v2711 = vpop.permute.xlu0 %2710
      %2714 = vrot.lane.b32.xlu0 %v2648, 64
      %v2715 = vpop.permute.xlu0 %2714
      %2718 = vrot.lane.b32.xlu0 %v2706, 96
      %v2719 = vpop.permute.xlu0 %2718
      %v2721 = vsel %vm833, %v2527, %v2711
      %v2722 = vsel %vm1076, %v2721, %v2715
      %v2723 = vsel %vm1078, %v2722, %v2719
      %v2724 = vpack.c.bf16 %v2723, %v2723
      %s2725 = scalar_lea.vmem %s9, 128
      %v2726 = vld [vmem:[%s2725] sm:$0xf]
      %v2727 = vld [vmem:[%s2725 + $0x4] sm:$0xf]
      %v2728 = vld [vmem:[%s2725 + $0x8] sm:$0xf]
      %v2729 = vld [vmem:[%s2725 + $0xc] sm:$0xf]
      %v2730 = vld [vmem:[%s2725 + $0x10] sm:$0xf]
      %v2731 = vld [vmem:[%s2725 + $0x14] sm:$0xf]
      %v2732 = vld [vmem:[%s2725 + $0x18] sm:$0xf]
      %v2733 = vld [vmem:[%s2725 + $0x1c] sm:$0xf]
      %v2734 = vld [vmem:[%s2725 + $0x20] sm:$0xf]
      %v2735 = vld [vmem:[%s2725 + $0x24] sm:$0xf]
      %v2736 = vld [vmem:[%s2725 + $0x28] sm:$0xf]
      %v2737 = vld [vmem:[%s2725 + $0x2c] sm:$0xf]
      %v2738 = vld [vmem:[%s2725 + $0x30] sm:$0xf]
      %v2739 = vld [vmem:[%s2725 + $0x34] sm:$0xf]
      %v2740 = vld [vmem:[%s2725 + $0x38] sm:$0xf]
      %v2741 = vld [vmem:[%s2725 + $0x3c] sm:$0xf]
      %v2758 = vunpack.c.l.b16 %v2726
      %v2759 = vunpack.c.l.b16 %v2727
      %v2760 = vunpack.c.l.b16 %v2728
      %v2761 = vunpack.c.l.b16 %v2729
      %v2762 = vunpack.c.l.b16 %v2730
      %v2763 = vunpack.c.l.b16 %v2731
      %v2764 = vunpack.c.l.b16 %v2732
      %v2765 = vunpack.c.l.b16 %v2733
      %v2766 = vunpack.c.l.b16 %v2734
      %v2767 = vunpack.c.l.b16 %v2735
      %v2768 = vunpack.c.l.b16 %v2736
      %v2769 = vunpack.c.l.b16 %v2737
      %v2770 = vunpack.c.l.b16 %v2738
      %v2771 = vunpack.c.l.b16 %v2739
      %v2772 = vunpack.c.l.b16 %v2740
      %v2773 = vunpack.c.l.b16 %v2741
      %v2774 = vpack.c.b16 %v2759, %v2758
      %v2775 = vpack.c.b16 %v2761, %v2760
      %v2776 = vpack.c.b16 %v2763, %v2762
      %v2777 = vpack.c.b16 %v2765, %v2764
      %v2778 = vpack.c.b16 %v2767, %v2766
      %v2779 = vpack.c.b16 %v2769, %v2768
      %v2780 = vpack.c.b16 %v2771, %v2770
      %v2781 = vpack.c.b16 %v2773, %v2772
      %2790 = vmatpush.bf16.msra.mxu0 %v2781
      %2791 = vmatpush.bf16.msra.mxu0 %v2780
      %2792 = vmatpush.bf16.msra.mxu0 %v2779
      %2793 = vmatpush.bf16.msra.mxu0 %v2778
      %2794 = vmatpush.bf16.msra.mxu0 %v2777
      %2795 = vmatpush.bf16.msra.mxu0 %v2776
      %2796 = vmatpush.bf16.msra.mxu0 %v2775
      %2797 = vmatpush.bf16.msra.mxu0 %v2774
      %2798 = vmatmul.bf16.gmra.mxu0 %v2724
      %v2799 = vpop.f32.mrf.mxu0
      %v2800 = vadd.f32 0.0, %v2799
      %v2801 = vpop.f32.mrf.mxu0
      %2802 = vdwg.mxu0
      %v2803 = vadd.f32 %v2272, %v2800
      %v2804 = vpack.c.bf16 %v2803, %v2803
      %s2805 = scalar_lea.vmem %s10, 256
      %v2806 = vld [vmem:[%s2805] sm:$0xff]
      %v2807 = vld [vmem:[%s2805 + $0x8] sm:$0xff]
      %v2808 = vld [vmem:[%s2805 + $0x10] sm:$0xff]
      %v2809 = vld [vmem:[%s2805 + $0x18] sm:$0xff]
      %v2810 = vld [vmem:[%s2805 + $0x20] sm:$0xff]
      %v2811 = vld [vmem:[%s2805 + $0x28] sm:$0xff]
      %v2812 = vld [vmem:[%s2805 + $0x30] sm:$0xff]
      %v2813 = vld [vmem:[%s2805 + $0x38] sm:$0xff]
      %v2814 = vld [vmem:[%s2805 + $0x40] sm:$0xff]
      %v2815 = vld [vmem:[%s2805 + $0x48] sm:$0xff]
      %v2816 = vld [vmem:[%s2805 + $0x50] sm:$0xff]
      %v2817 = vld [vmem:[%s2805 + $0x58] sm:$0xff]
      %v2818 = vld [vmem:[%s2805 + $0x60] sm:$0xff]
      %v2819 = vld [vmem:[%s2805 + $0x68] sm:$0xff]
      %v2820 = vld [vmem:[%s2805 + $0x70] sm:$0xff]
      %v2821 = vld [vmem:[%s2805 + $0x78] sm:$0xff]
      %s2822 = scalar_lea.vmem %s11, 4
      %v2823 = vld [vmem:[%s2822] sm:$0x3]
      %v2825 = vperm.slane %v2823, 0
      %v2826 = vperm.slane %v2823, 1
      %v2845 = vunpack.c.l.b16 %v2806
      %v2846 = vunpack.c.h.b16 %v2806
      %v2847 = vunpack.c.l.b16 %v2807
      %v2848 = vunpack.c.h.b16 %v2807
      %v2849 = vunpack.c.l.b16 %v2808
      %v2850 = vunpack.c.h.b16 %v2808
      %v2851 = vunpack.c.l.b16 %v2809
      %v2852 = vunpack.c.h.b16 %v2809
      %v2853 = vunpack.c.l.b16 %v2810
      %v2854 = vunpack.c.h.b16 %v2810
      %v2855 = vunpack.c.l.b16 %v2811
      %v2856 = vunpack.c.h.b16 %v2811
      %v2857 = vunpack.c.l.b16 %v2812
      %v2858 = vunpack.c.h.b16 %v2812
      %v2859 = vunpack.c.l.b16 %v2813
      %v2860 = vunpack.c.h.b16 %v2813
      %v2861 = vunpack.c.l.b16 %v2814
      %v2862 = vunpack.c.h.b16 %v2814
      %v2863 = vunpack.c.l.b16 %v2815
      %v2864 = vunpack.c.h.b16 %v2815
      %v2865 = vunpack.c.l.b16 %v2816
      %v2866 = vunpack.c.h.b16 %v2816
      %v2867 = vunpack.c.l.b16 %v2817
      %v2868 = vunpack.c.h.b16 %v2817
      %v2869 = vunpack.c.l.b16 %v2818
      %v2870 = vunpack.c.h.b16 %v2818
      %v2871 = vunpack.c.l.b16 %v2819
      %v2872 = vunpack.c.h.b16 %v2819
      %v2873 = vunpack.c.l.b16 %v2820
      %v2874 = vunpack.c.h.b16 %v2820
      %v2875 = vunpack.c.l.b16 %v2821
      %v2876 = vunpack.c.h.b16 %v2821
      %v2877 = vpack.c.b16 %v2847, %v2845
      %v2878 = vpack.c.b16 %v2848, %v2846
      %v2879 = vpack.c.b16 %v2851, %v2849
      %v2880 = vpack.c.b16 %v2852, %v2850
      %v2881 = vpack.c.b16 %v2855, %v2853
      %v2882 = vpack.c.b16 %v2856, %v2854
      %v2883 = vpack.c.b16 %v2859, %v2857
      %v2884 = vpack.c.b16 %v2860, %v2858
      %v2885 = vpack.c.b16 %v2863, %v2861
      %v2886 = vpack.c.b16 %v2864, %v2862
      %v2887 = vpack.c.b16 %v2867, %v2865
      %v2888 = vpack.c.b16 %v2868, %v2866
      %v2889 = vpack.c.b16 %v2871, %v2869
      %v2890 = vpack.c.b16 %v2872, %v2870
      %v2891 = vpack.c.b16 %v2875, %v2873
      %v2892 = vpack.c.b16 %v2876, %v2874
      %2909 = vmatpush.bf16.msra.mxu0 %v2891
      %2910 = vmatpush.bf16.msra.mxu0 %v2889
      %2911 = vmatpush.bf16.msra.mxu0 %v2887
      %2912 = vmatpush.bf16.msra.mxu0 %v2885
      %2913 = vmatpush.bf16.msra.mxu0 %v2883
      %2914 = vmatpush.bf16.msra.mxu0 %v2881
      %2915 = vmatpush.bf16.msra.mxu0 %v2879
      %2916 = vmatpush.bf16.msra.mxu0 %v2877
      %2917 = vmatmul.bf16.gmra.mxu0 %v2804
      %v2918 = vpop.f32.mrf.mxu0
      %v2919 = vadd.f32 %v2825, %v2918
      %v2920 = vpop.f32.mrf.mxu0
      %2921 = vdwg.mxu0
      %2922 = vmatpush.bf16.msra.mxu0 %v2892
      %2923 = vmatpush.bf16.msra.mxu0 %v2890
      %2924 = vmatpush.bf16.msra.mxu0 %v2888
      %2925 = vmatpush.bf16.msra.mxu0 %v2886
      %2926 = vmatpush.bf16.msra.mxu0 %v2884
      %2927 = vmatpush.bf16.msra.mxu0 %v2882
      %2928 = vmatpush.bf16.msra.mxu0 %v2880
      %2929 = vmatpush.bf16.msra.mxu0 %v2878
      %2930 = vmatmul.bf16.gmra.mxu0 %v2804
      %v2931 = vpop.f32.mrf.mxu0
      %v2932 = vadd.f32 %v2826, %v2931
      %v2933 = vpop.f32.mrf.mxu0
      %2934 = vdwg.mxu0
      %v2935 = vmax.f32 %v2919, 0.0
      %v2936 = vmax.f32 %v2932, 0.0
      %v2937 = vpack.c.bf16 %v2935, %v2935
      %v2938 = vpack.c.bf16 %v2936, %v2936
      %s2939 = scalar_lea.vmem %s12, 256
      %v2940 = vld [vmem:[%s2939] sm:$0xf]
      %v2941 = vld [vmem:[%s2939 + $0x4] sm:$0xf]
      %v2942 = vld [vmem:[%s2939 + $0x8] sm:$0xf]
      %v2943 = vld [vmem:[%s2939 + $0xc] sm:$0xf]
      %v2944 = vld [vmem:[%s2939 + $0x10] sm:$0xf]
      %v2945 = vld [vmem:[%s2939 + $0x14] sm:$0xf]
      %v2946 = vld [vmem:[%s2939 + $0x18] sm:$0xf]
      %v2947 = vld [vmem:[%s2939 + $0x1c] sm:$0xf]
      %v2948 = vld [vmem:[%s2939 + $0x20] sm:$0xf]
      %v2949 = vld [vmem:[%s2939 + $0x24] sm:$0xf]
      %v2950 = vld [vmem:[%s2939 + $0x28] sm:$0xf]
      %v2951 = vld [vmem:[%s2939 + $0x2c] sm:$0xf]
      %v2952 = vld [vmem:[%s2939 + $0x30] sm:$0xf]
      %v2953 = vld [vmem:[%s2939 + $0x34] sm:$0xf]
      %v2954 = vld [vmem:[%s2939 + $0x38] sm:$0xf]
      %v2955 = vld [vmem:[%s2939 + $0x3c] sm:$0xf]
      %v2956 = vld [vmem:[%s2939 + $0x40] sm:$0xf]
      %v2957 = vld [vmem:[%s2939 + $0x44] sm:$0xf]
      %v2958 = vld [vmem:[%s2939 + $0x48] sm:$0xf]
      %v2959 = vld [vmem:[%s2939 + $0x4c] sm:$0xf]
      %v2960 = vld [vmem:[%s2939 + $0x50] sm:$0xf]
      %v2961 = vld [vmem:[%s2939 + $0x54] sm:$0xf]
      %v2962 = vld [vmem:[%s2939 + $0x58] sm:$0xf]
      %v2963 = vld [vmem:[%s2939 + $0x5c] sm:$0xf]
      %v2964 = vld [vmem:[%s2939 + $0x60] sm:$0xf]
      %v2965 = vld [vmem:[%s2939 + $0x64] sm:$0xf]
      %v2966 = vld [vmem:[%s2939 + $0x68] sm:$0xf]
      %v2967 = vld [vmem:[%s2939 + $0x6c] sm:$0xf]
      %v2968 = vld [vmem:[%s2939 + $0x70] sm:$0xf]
      %v2969 = vld [vmem:[%s2939 + $0x74] sm:$0xf]
      %v2970 = vld [vmem:[%s2939 + $0x78] sm:$0xf]
      %v2971 = vld [vmem:[%s2939 + $0x7c] sm:$0xf]
      %v3004 = vunpack.c.l.b16 %v2940
      %v3005 = vunpack.c.l.b16 %v2941
      %v3006 = vunpack.c.l.b16 %v2942
      %v3007 = vunpack.c.l.b16 %v2943
      %v3008 = vunpack.c.l.b16 %v2944
      %v3009 = vunpack.c.l.b16 %v2945
      %v3010 = vunpack.c.l.b16 %v2946
      %v3011 = vunpack.c.l.b16 %v2947
      %v3012 = vunpack.c.l.b16 %v2948
      %v3013 = vunpack.c.l.b16 %v2949
      %v3014 = vunpack.c.l.b16 %v2950
      %v3015 = vunpack.c.l.b16 %v2951
      %v3016 = vunpack.c.l.b16 %v2952
      %v3017 = vunpack.c.l.b16 %v2953
      %v3018 = vunpack.c.l.b16 %v2954
      %v3019 = vunpack.c.l.b16 %v2955
      %v3020 = vunpack.c.l.b16 %v2956
      %v3021 = vunpack.c.l.b16 %v2957
      %v3022 = vunpack.c.l.b16 %v2958
      %v3023 = vunpack.c.l.b16 %v2959
      %v3024 = vunpack.c.l.b16 %v2960
      %v3025 = vunpack.c.l.b16 %v2961
      %v3026 = vunpack.c.l.b16 %v2962
      %v3027 = vunpack.c.l.b16 %v2963
      %v3028 = vunpack.c.l.b16 %v2964
      %v3029 = vunpack.c.l.b16 %v2965
      %v3030 = vunpack.c.l.b16 %v2966
      %v3031 = vunpack.c.l.b16 %v2967
      %v3032 = vunpack.c.l.b16 %v2968
      %v3033 = vunpack.c.l.b16 %v2969
      %v3034 = vunpack.c.l.b16 %v2970
      %v3035 = vunpack.c.l.b16 %v2971
      %v3036 = vpack.c.b16 %v3005, %v3004
      %v3037 = vpack.c.b16 %v3007, %v3006
      %v3038 = vpack.c.b16 %v3009, %v3008
      %v3039 = vpack.c.b16 %v3011, %v3010
      %v3040 = vpack.c.b16 %v3013, %v3012
      %v3041 = vpack.c.b16 %v3015, %v3014
      %v3042 = vpack.c.b16 %v3017, %v3016
      %v3043 = vpack.c.b16 %v3019, %v3018
      %v3044 = vpack.c.b16 %v3021, %v3020
      %v3045 = vpack.c.b16 %v3023, %v3022
      %v3046 = vpack.c.b16 %v3025, %v3024
      %v3047 = vpack.c.b16 %v3027, %v3026
      %v3048 = vpack.c.b16 %v3029, %v3028
      %v3049 = vpack.c.b16 %v3031, %v3030
      %v3050 = vpack.c.b16 %v3033, %v3032
      %v3051 = vpack.c.b16 %v3035, %v3034
      %3068 = vmatpush.bf16.msra.mxu0 %v3043
      %3069 = vmatpush.bf16.msra.mxu0 %v3042
      %3070 = vmatpush.bf16.msra.mxu0 %v3041
      %3071 = vmatpush.bf16.msra.mxu0 %v3040
      %3072 = vmatpush.bf16.msra.mxu0 %v3039
      %3073 = vmatpush.bf16.msra.mxu0 %v3038
      %3074 = vmatpush.bf16.msra.mxu0 %v3037
      %3075 = vmatpush.bf16.msra.mxu0 %v3036
      %3076 = vmatmul.bf16.gmra.mxu0 %v2937
      %v3077 = vpop.f32.mrf.mxu0
      %v3078 = vadd.f32 0.0, %v3077
      %v3079 = vpop.f32.mrf.mxu0
      %3080 = vdwg.mxu0
      %3081 = vmatpush.bf16.msra.mxu0 %v3051
      %3082 = vmatpush.bf16.msra.mxu0 %v3050
      %3083 = vmatpush.bf16.msra.mxu0 %v3049
      %3084 = vmatpush.bf16.msra.mxu0 %v3048
      %3085 = vmatpush.bf16.msra.mxu0 %v3047
      %3086 = vmatpush.bf16.msra.mxu0 %v3046
      %3087 = vmatpush.bf16.msra.mxu0 %v3045
      %3088 = vmatpush.bf16.msra.mxu0 %v3044
      %3089 = vmatmul.bf16.gmra.mxu0 %v2938
      %v3090 = vpop.f32.mrf.mxu0
      %v3091 = vadd.f32 %v3078, %v3090
      %v3092 = vpop.f32.mrf.mxu0
      %3093 = vdwg.mxu0
      %v3094 = vadd.f32 %v2803, %v3091
      %s3095 = scalar_lea.vmem %s13, 2
      %v3096 = vld [vmem:[%s3095] sm:$0x1]
      %v3098 = vperm.slane %v3096, 0
      %v3100 = vadd.f32 %v3094, %v3098
      %v3101 = vpack.c.bf16 %v3100, %v3100
      %s3102 = scalar_lea.vmem %s8, 576
      %v3103 = vld [vmem:[%s3102] sm:$0xff]
      %v3104 = vld [vmem:[%s3102 + $0x8] sm:$0xf]
      %v3105 = vld [vmem:[%s3102 + $0xc] sm:$0xff]
      %v3106 = vld [vmem:[%s3102 + $0x14] sm:$0xf]
      %v3107 = vld [vmem:[%s3102 + $0x18] sm:$0xff]
      %v3108 = vld [vmem:[%s3102 + $0x20] sm:$0xf]
      %v3109 = vld [vmem:[%s3102 + $0x24] sm:$0xff]
      %v3110 = vld [vmem:[%s3102 + $0x2c] sm:$0xf]
      %v3111 = vld [vmem:[%s3102 + $0x30] sm:$0xff]
      %v3112 = vld [vmem:[%s3102 + $0x38] sm:$0xf]
      %v3113 = vld [vmem:[%s3102 + $0x3c] sm:$0xff]
      %v3114 = vld [vmem:[%s3102 + $0x44] sm:$0xf]
      %v3115 = vld [vmem:[%s3102 + $0x48] sm:$0xff]
      %v3116 = vld [vmem:[%s3102 + $0x50] sm:$0xf]
      %v3117 = vld [vmem:[%s3102 + $0x54] sm:$0xff]
      %v3118 = vld [vmem:[%s3102 + $0x5c] sm:$0xf]
      %v3119 = vld [vmem:[%s3102 + $0x60] sm:$0xff]
      %v3120 = vld [vmem:[%s3102 + $0x68] sm:$0xf]
      %v3121 = vld [vmem:[%s3102 + $0x6c] sm:$0xff]
      %v3122 = vld [vmem:[%s3102 + $0x74] sm:$0xf]
      %v3123 = vld [vmem:[%s3102 + $0x78] sm:$0xff]
      %v3124 = vld [vmem:[%s3102 + $0x80] sm:$0xf]
      %v3125 = vld [vmem:[%s3102 + $0x84] sm:$0xff]
      %v3126 = vld [vmem:[%s3102 + $0x8c] sm:$0xf]
      %v3127 = vld [vmem:[%s3102 + $0x90] sm:$0xff]
      %v3128 = vld [vmem:[%s3102 + $0x98] sm:$0xf]
      %v3129 = vld [vmem:[%s3102 + $0x9c] sm:$0xff]
      %v3130 = vld [vmem:[%s3102 + $0xa4] sm:$0xf]
      %v3131 = vld [vmem:[%s3102 + $0xa8] sm:$0xff]
      %v3132 = vld [vmem:[%s3102 + $0xb0] sm:$0xf]
      %v3133 = vld [vmem:[%s3102 + $0xb4] sm:$0xff]
      %v3134 = vld [vmem:[%s3102 + $0xbc] sm:$0xf]
      %v3167 = vunpack.c.l.b16 %v3103
      %v3168 = vunpack.c.h.b16 %v3103
      %v3169 = vunpack.c.l.b16 %v3104
      %v3170 = vunpack.c.l.b16 %v3105
      %v3171 = vunpack.c.h.b16 %v3105
      %v3172 = vunpack.c.l.b16 %v3106
      %v3173 = vunpack.c.l.b16 %v3107
      %v3174 = vunpack.c.h.b16 %v3107
      %v3175 = vunpack.c.l.b16 %v3108
      %v3176 = vunpack.c.l.b16 %v3109
      %v3177 = vunpack.c.h.b16 %v3109
      %v3178 = vunpack.c.l.b16 %v3110
      %v3179 = vunpack.c.l.b16 %v3111
      %v3180 = vunpack.c.h.b16 %v3111
      %v3181 = vunpack.c.l.b16 %v3112
      %v3182 = vunpack.c.l.b16 %v3113
      %v3183 = vunpack.c.h.b16 %v3113
      %v3184 = vunpack.c.l.b16 %v3114
      %v3185 = vunpack.c.l.b16 %v3115
      %v3186 = vunpack.c.h.b16 %v3115
      %v3187 = vunpack.c.l.b16 %v3116
      %v3188 = vunpack.c.l.b16 %v3117
      %v3189 = vunpack.c.h.b16 %v3117
      %v3190 = vunpack.c.l.b16 %v3118
      %v3191 = vunpack.c.l.b16 %v3119
      %v3192 = vunpack.c.h.b16 %v3119
      %v3193 = vunpack.c.l.b16 %v3120
      %v3194 = vunpack.c.l.b16 %v3121
      %v3195 = vunpack.c.h.b16 %v3121
      %v3196 = vunpack.c.l.b16 %v3122
      %v3197 = vunpack.c.l.b16 %v3123
      %v3198 = vunpack.c.h.b16 %v3123
      %v3199 = vunpack.c.l.b16 %v3124
      %v3200 = vunpack.c.l.b16 %v3125
      %v3201 = vunpack.c.h.b16 %v3125
      %v3202 = vunpack.c.l.b16 %v3126
      %v3203 = vunpack.c.l.b16 %v3127
      %v3204 = vunpack.c.h.b16 %v3127
      %v3205 = vunpack.c.l.b16 %v3128
      %v3206 = vunpack.c.l.b16 %v3129
      %v3207 = vunpack.c.h.b16 %v3129
      %v3208 = vunpack.c.l.b16 %v3130
      %v3209 = vunpack.c.l.b16 %v3131
      %v3210 = vunpack.c.h.b16 %v3131
      %v3211 = vunpack.c.l.b16 %v3132
      %v3212 = vunpack.c.l.b16 %v3133
      %v3213 = vunpack.c.h.b16 %v3133
      %v3214 = vunpack.c.l.b16 %v3134
      %v3215 = vpack.c.b16 %v3170, %v3167
      %v3216 = vpack.c.b16 %v3171, %v3168
      %v3217 = vpack.c.b16 %v3172, %v3169
      %v3218 = vpack.c.b16 %v3176, %v3173
      %v3219 = vpack.c.b16 %v3177, %v3174
      %v3220 = vpack.c.b16 %v3178, %v3175
      %v3221 = vpack.c.b16 %v3182, %v3179
      %v3222 = vpack.c.b16 %v3183, %v3180
      %v3223 = vpack.c.b16 %v3184, %v3181
      %v3224 = vpack.c.b16 %v3188, %v3185
      %v3225 = vpack.c.b16 %v3189, %v3186
      %v3226 = vpack.c.b16 %v3190, %v3187
      %v3227 = vpack.c.b16 %v3194, %v3191
      %v3228 = vpack.c.b16 %v3195, %v3192
      %v3229 = vpack.c.b16 %v3196, %v3193
      %v3230 = vpack.c.b16 %v3200, %v3197
      %v3231 = vpack.c.b16 %v3201, %v3198
      %v3232 = vpack.c.b16 %v3202, %v3199
      %v3233 = vpack.c.b16 %v3206, %v3203
      %v3234 = vpack.c.b16 %v3207, %v3204
      %v3235 = vpack.c.b16 %v3208, %v3205
      %v3236 = vpack.c.b16 %v3212, %v3209
      %v3237 = vpack.c.b16 %v3213, %v3210
      %v3238 = vpack.c.b16 %v3214, %v3211
      %3263 = vmatpush.bf16.msra.mxu0 %v3236
      %3264 = vmatpush.bf16.msra.mxu0 %v3233
      %3265 = vmatpush.bf16.msra.mxu0 %v3230
      %3266 = vmatpush.bf16.msra.mxu0 %v3227
      %3267 = vmatpush.bf16.msra.mxu0 %v3224
      %3268 = vmatpush.bf16.msra.mxu0 %v3221
      %3269 = vmatpush.bf16.msra.mxu0 %v3218
      %3270 = vmatpush.bf16.msra.mxu0 %v3215
      %3271 = vmatmul.bf16.gmra.mxu0 %v3101
      %v3272 = vpop.f32.mrf.mxu0
      %v3273 = vadd.f32 0.0, %v3272
      %v3274 = vpop.f32.mrf.mxu0
      %3275 = vdwg.mxu0
      %3276 = vmatpush.bf16.msra.mxu0 %v3237
      %3277 = vmatpush.bf16.msra.mxu0 %v3234
      %3278 = vmatpush.bf16.msra.mxu0 %v3231
      %3279 = vmatpush.bf16.msra.mxu0 %v3228
      %3280 = vmatpush.bf16.msra.mxu0 %v3225
      %3281 = vmatpush.bf16.msra.mxu0 %v3222
      %3282 = vmatpush.bf16.msra.mxu0 %v3219
      %3283 = vmatpush.bf16.msra.mxu0 %v3216
      %3284 = vmatmul.bf16.gmra.mxu0 %v3101
      %v3285 = vpop.f32.mrf.mxu0
      %v3286 = vadd.f32 0.0, %v3285
      %v3287 = vpop.f32.mrf.mxu0
      %3288 = vdwg.mxu0
      %3289 = vmatpush.bf16.msra.mxu0 %v3238
      %3290 = vmatpush.bf16.msra.mxu0 %v3235
      %3291 = vmatpush.bf16.msra.mxu0 %v3232
      %3292 = vmatpush.bf16.msra.mxu0 %v3229
      %3293 = vmatpush.bf16.msra.mxu0 %v3226
      %3294 = vmatpush.bf16.msra.mxu0 %v3223
      %3295 = vmatpush.bf16.msra.mxu0 %v3220
      %3296 = vmatpush.bf16.msra.mxu0 %v3217
      %3297 = vmatmul.bf16.gmra.mxu0 %v3101
      %v3298 = vpop.f32.mrf.mxu0
      %v3299 = vadd.f32 0.0, %v3298
      %v3300 = vpop.f32.mrf.mxu0
      %3301 = vdwg.mxu0
      %v3302 = vpack.c.bf16 %v3286, %v3273
      %v3303 = vpack.c.bf16 %v3299, %v3299
      %v3305 = vunpack.c.h.b16 %v3302
      %v3306 = vpack.c.b16 %v3305, %v3305
      %v3308 = vsel %vm833, %v3302, 0
      %v3311 = vsel %vm833, %v3306, 0
      %3313 = vmatpush.bf16.xpose.msra.mxu0 0
      %3314 = vmatpush.bf16.xpose.msra.mxu0 0
      %3315 = vmatpush.bf16.xpose.msra.mxu0 0
      %3316 = vmatpush.bf16.xpose.msra.mxu0 0
      %3317 = vmatpush.bf16.xpose.msra.mxu0 0
      %3318 = vmatpush.bf16.xpose.msra.mxu0 0
      %3319 = vmatpush.bf16.xpose.msra.mxu0 0
      %3320 = vmatpush.bf16.xpose.msra.mxu0 %v3311
      %3321 = vmatmul.bf16.gmra.mxu0 %v3308
      %v3322 = vpop.f32.mrf.mxu0
      %v3323 = vadd.f32 %v2476, %v3322
      %v3324 = vpop.f32.mrf.mxu0
      %3325 = vdwg.mxu0
      %v3326 = vsel %vm579, %v3323, -inf
      %3327 = vmax.xlane.f32.xlu0 %v3326
      %v3328 = vpop.xlane.xlu0 %3327
      %v3329 = vsub.f32 %v3323, %v3328
      %v3330 = vmul.f32 %v3329, 1.442695
      %v3331 = vpow.pop %v3330
      %v3332 = vsel %vm579, %v3331, 0.0
      %3333 = vadd.xlane.f32.xlu0 %v3332
      %v3334 = vpop.xlane.xlu0 %3333
      %v3335 = vrcp.pop %v3334
      %v3336 = vmul.f32 %v3331, %v3335
      %v3337 = vpack.c.bf16 %v3336, %v3336
      %v3339 = vsel %vm579, %v3337, 0
      %v3342 = vsel %vm583, %v3303, 0
      %3344 = vmatpush.bf16.msra.mxu0 0
      %3345 = vmatpush.bf16.msra.mxu0 0
      %3346 = vmatpush.bf16.msra.mxu0 0
      %3347 = vmatpush.bf16.msra.mxu0 0
      %3348 = vmatpush.bf16.msra.mxu0 0
      %3349 = vmatpush.bf16.msra.mxu0 0
      %3350 = vmatpush.bf16.msra.mxu0 0
      %3351 = vmatpush.bf16.msra.mxu0 %v3342
      %3352 = vmatmul.bf16.gmra.mxu0 %v3339
      %v3353 = vpop.f32.mrf.mxu0
      %v3354 = vadd.f32 0.0, %v3353
      %v3355 = vpop.f32.mrf.mxu0
      %3356 = vdwg.mxu0
      %v3357 = vunpack.c.l.b16 %v3302
      %v3358 = vpack.c.b16 %v3357, %v3357
      %3359 = vrot.lane.b32.xlu0 %v3358, 96
      %v3360 = vpop.permute.xlu0 %3359
      %3361 = vrot.lane.b32.xlu0 %v3306, 96
      %v3362 = vpop.permute.xlu0 %3361
      %v3364 = vsel %vm833, %v3360, 0
      %v3367 = vsel %vm833, %v3362, 0
      %3369 = vmatpush.bf16.xpose.msra.mxu0 0
      %3370 = vmatpush.bf16.xpose.msra.mxu0 0
      %3371 = vmatpush.bf16.xpose.msra.mxu0 0
      %3372 = vmatpush.bf16.xpose.msra.mxu0 0
      %3373 = vmatpush.bf16.xpose.msra.mxu0 0
      %3374 = vmatpush.bf16.xpose.msra.mxu0 0
      %3375 = vmatpush.bf16.xpose.msra.mxu0 0
      %3376 = vmatpush.bf16.xpose.msra.mxu0 %v3367
      %3377 = vmatmul.bf16.gmra.mxu0 %v3364
      %v3378 = vpop.f32.mrf.mxu0
      %v3379 = vadd.f32 %v2531, %v3378
      %v3380 = vpop.f32.mrf.mxu0
      %3381 = vdwg.mxu0
      %v3382 = vsel %vm579, %v3379, -inf
      %3383 = vmax.xlane.f32.xlu0 %v3382
      %v3384 = vpop.xlane.xlu0 %3383
      %v3385 = vsub.f32 %v3379, %v3384
      %v3386 = vmul.f32 %v3385, 1.442695
      %v3387 = vpow.pop %v3386
      %v3388 = vsel %vm579, %v3387, 0.0
      %3389 = vadd.xlane.f32.xlu0 %v3388
      %v3390 = vpop.xlane.xlu0 %3389
      %v3391 = vrcp.pop %v3390
      %v3392 = vmul.f32 %v3387, %v3391
      %v3393 = vpack.c.bf16 %v3392, %v3392
      %v3395 = vunpack.c.l.b16 %v3303
      %v3396 = vpack.c.b16 %v3395, %v3395
      %3397 = vrot.lane.b32.xlu0 %v3396, 96
      %v3398 = vpop.permute.xlu0 %3397
      %v3400 = vsel %vm579, %v3393, 0
      %v3403 = vsel %vm583, %v3398, 0
      %3405 = vmatpush.bf16.msra.mxu0 0
      %3406 = vmatpush.bf16.msra.mxu0 0
      %3407 = vmatpush.bf16.msra.mxu0 0
      %3408 = vmatpush.bf16.msra.mxu0 0
      %3409 = vmatpush.bf16.msra.mxu0 0
      %3410 = vmatpush.bf16.msra.mxu0 0
      %3411 = vmatpush.bf16.msra.mxu0 0
      %3412 = vmatpush.bf16.msra.mxu0 %v3403
      %3413 = vmatmul.bf16.gmra.mxu0 %v3400
      %v3414 = vpop.f32.mrf.mxu0
      %v3415 = vadd.f32 0.0, %v3414
      %v3416 = vpop.f32.mrf.mxu0
      %3417 = vdwg.mxu0
      %3418 = vrot.lane.b32.xlu0 %v3358, 64
      %v3419 = vpop.permute.xlu0 %3418
      %3420 = vrot.lane.b32.xlu0 %v3306, 64
      %v3421 = vpop.permute.xlu0 %3420
      %v3423 = vsel %vm833, %v3419, 0
      %v3426 = vsel %vm833, %v3421, 0
      %3428 = vmatpush.bf16.xpose.msra.mxu0 0
      %3429 = vmatpush.bf16.xpose.msra.mxu0 0
      %3430 = vmatpush.bf16.xpose.msra.mxu0 0
      %3431 = vmatpush.bf16.xpose.msra.mxu0 0
      %3432 = vmatpush.bf16.xpose.msra.mxu0 0
      %3433 = vmatpush.bf16.xpose.msra.mxu0 0
      %3434 = vmatpush.bf16.xpose.msra.mxu0 0
      %3435 = vmatpush.bf16.xpose.msra.mxu0 %v3426
      %3436 = vmatmul.bf16.gmra.mxu0 %v3423
      %v3437 = vpop.f32.mrf.mxu0
      %v3438 = vadd.f32 %v2594, %v3437
      %v3439 = vpop.f32.mrf.mxu0
      %3440 = vdwg.mxu0
      %v3441 = vsel %vm579, %v3438, -inf
      %3442 = vmax.xlane.f32.xlu0 %v3441
      %v3443 = vpop.xlane.xlu0 %3442
      %v3444 = vsub.f32 %v3438, %v3443
      %v3445 = vmul.f32 %v3444, 1.442695
      %v3446 = vpow.pop %v3445
      %v3447 = vsel %vm579, %v3446, 0.0
      %3448 = vadd.xlane.f32.xlu0 %v3447
      %v3449 = vpop.xlane.xlu0 %3448
      %v3450 = vrcp.pop %v3449
      %v3451 = vmul.f32 %v3446, %v3450
      %v3452 = vpack.c.bf16 %v3451, %v3451
      %3453 = vrot.lane.b32.xlu0 %v3396, 64
      %v3454 = vpop.permute.xlu0 %3453
      %v3456 = vsel %vm579, %v3452, 0
      %v3459 = vsel %vm583, %v3454, 0
      %3461 = vmatpush.bf16.msra.mxu0 0
      %3462 = vmatpush.bf16.msra.mxu0 0
      %3463 = vmatpush.bf16.msra.mxu0 0
      %3464 = vmatpush.bf16.msra.mxu0 0
      %3465 = vmatpush.bf16.msra.mxu0 0
      %3466 = vmatpush.bf16.msra.mxu0 0
      %3467 = vmatpush.bf16.msra.mxu0 0
      %3468 = vmatpush.bf16.msra.mxu0 %v3459
      %3469 = vmatmul.bf16.gmra.mxu0 %v3456
      %v3470 = vpop.f32.mrf.mxu0
      %v3471 = vadd.f32 0.0, %v3470
      %v3472 = vpop.f32.mrf.mxu0
      %3473 = vdwg.mxu0
      %3474 = vrot.lane.b32.xlu0 %v3358, 32
      %v3475 = vpop.permute.xlu0 %3474
      %3476 = vrot.lane.b32.xlu0 %v3306, 32
      %v3477 = vpop.permute.xlu0 %3476
      %v3479 = vsel %vm833, %v3475, 0
      %v3482 = vsel %vm833, %v3477, 0
      %3484 = vmatpush.bf16.xpose.msra.mxu0 0
      %3485 = vmatpush.bf16.xpose.msra.mxu0 0
      %3486 = vmatpush.bf16.xpose.msra.mxu0 0
      %3487 = vmatpush.bf16.xpose.msra.mxu0 0
      %3488 = vmatpush.bf16.xpose.msra.mxu0 0
      %3489 = vmatpush.bf16.xpose.msra.mxu0 0
      %3490 = vmatpush.bf16.xpose.msra.mxu0 0
      %3491 = vmatpush.bf16.xpose.msra.mxu0 %v3482
      %3492 = vmatmul.bf16.gmra.mxu0 %v3479
      %v3493 = vpop.f32.mrf.mxu0
      %v3494 = vadd.f32 %v2652, %v3493
      %v3495 = vpop.f32.mrf.mxu0
      %3496 = vdwg.mxu0
      %v3497 = vsel %vm579, %v3494, -inf
      %3498 = vmax.xlane.f32.xlu0 %v3497
      %v3499 = vpop.xlane.xlu0 %3498
      %v3500 = vsub.f32 %v3494, %v3499
      %v3501 = vmul.f32 %v3500, 1.442695
      %v3502 = vpow.pop %v3501
      %v3503 = vsel %vm579, %v3502, 0.0
      %3504 = vadd.xlane.f32.xlu0 %v3503
      %v3505 = vpop.xlane.xlu0 %3504
      %v3506 = vrcp.pop %v3505
      %v3507 = vmul.f32 %v3502, %v3506
      %v3508 = vpack.c.bf16 %v3507, %v3507
      %3509 = vrot.lane.b32.xlu0 %v3396, 32
      %v3510 = vpop.permute.xlu0 %3509
      %v3512 = vsel %vm579, %v3508, 0
      %v3515 = vsel %vm583, %v3510, 0
      %3517 = vmatpush.bf16.msra.mxu0 0
      %3518 = vmatpush.bf16.msra.mxu0 0
      %3519 = vmatpush.bf16.msra.mxu0 0
      %3520 = vmatpush.bf16.msra.mxu0 0
      %3521 = vmatpush.bf16.msra.mxu0 0
      %3522 = vmatpush.bf16.msra.mxu0 0
      %3523 = vmatpush.bf16.msra.mxu0 0
      %3524 = vmatpush.bf16.msra.mxu0 %v3515
      %3525 = vmatmul.bf16.gmra.mxu0 %v3512
      %v3526 = vpop.f32.mrf.mxu0
      %v3527 = vadd.f32 0.0, %v3526
      %v3528 = vpop.f32.mrf.mxu0
      %3529 = vdwg.mxu0
      %3531 = vrot.lane.b32.xlu0 %v3415, 32
      %v3532 = vpop.permute.xlu0 %3531
      %3535 = vrot.lane.b32.xlu0 %v3471, 64
      %v3536 = vpop.permute.xlu0 %3535
      %3539 = vrot.lane.b32.xlu0 %v3527, 96
      %v3540 = vpop.permute.xlu0 %3539
      %v3542 = vsel %vm833, %v3354, %v3532
      %v3543 = vsel %vm1076, %v3542, %v3536
      %v3544 = vsel %vm1078, %v3543, %v3540
      %v3545 = vpack.c.bf16 %v3544, %v3544
      %s3546 = scalar_lea.vmem %s9, 192
      %v3547 = vld [vmem:[%s3546] sm:$0xf]
      %v3548 = vld [vmem:[%s3546 + $0x4] sm:$0xf]
      %v3549 = vld [vmem:[%s3546 + $0x8] sm:$0xf]
      %v3550 = vld [vmem:[%s3546 + $0xc] sm:$0xf]
      %v3551 = vld [vmem:[%s3546 + $0x10] sm:$0xf]
      %v3552 = vld [vmem:[%s3546 + $0x14] sm:$0xf]
      %v3553 = vld [vmem:[%s3546 + $0x18] sm:$0xf]
      %v3554 = vld [vmem:[%s3546 + $0x1c] sm:$0xf]
      %v3555 = vld [vmem:[%s3546 + $0x20] sm:$0xf]
      %v3556 = vld [vmem:[%s3546 + $0x24] sm:$0xf]
      %v3557 = vld [vmem:[%s3546 + $0x28] sm:$0xf]
      %v3558 = vld [vmem:[%s3546 + $0x2c] sm:$0xf]
      %v3559 = vld [vmem:[%s3546 + $0x30] sm:$0xf]
      %v3560 = vld [vmem:[%s3546 + $0x34] sm:$0xf]
      %v3561 = vld [vmem:[%s3546 + $0x38] sm:$0xf]
      %v3562 = vld [vmem:[%s3546 + $0x3c] sm:$0xf]
      %v3579 = vunpack.c.l.b16 %v3547
      %v3580 = vunpack.c.l.b16 %v3548
      %v3581 = vunpack.c.l.b16 %v3549
      %v3582 = vunpack.c.l.b16 %v3550
      %v3583 = vunpack.c.l.b16 %v3551
      %v3584 = vunpack.c.l.b16 %v3552
      %v3585 = vunpack.c.l.b16 %v3553
      %v3586 = vunpack.c.l.b16 %v3554
      %v3587 = vunpack.c.l.b16 %v3555
      %v3588 = vunpack.c.l.b16 %v3556
      %v3589 = vunpack.c.l.b16 %v3557
      %v3590 = vunpack.c.l.b16 %v3558
      %v3591 = vunpack.c.l.b16 %v3559
      %v3592 = vunpack.c.l.b16 %v3560
      %v3593 = vunpack.c.l.b16 %v3561
      %v3594 = vunpack.c.l.b16 %v3562
      %v3595 = vpack.c.b16 %v3580, %v3579
      %v3596 = vpack.c.b16 %v3582, %v3581
      %v3597 = vpack.c.b16 %v3584, %v3583
      %v3598 = vpack.c.b16 %v3586, %v3585
      %v3599 = vpack.c.b16 %v3588, %v3587
      %v3600 = vpack.c.b16 %v3590, %v3589
      %v3601 = vpack.c.b16 %v3592, %v3591
      %v3602 = vpack.c.b16 %v3594, %v3593
      %3611 = vmatpush.bf16.msra.mxu0 %v3602
      %3612 = vmatpush.bf16.msra.mxu0 %v3601
      %3613 = vmatpush.bf16.msra.mxu0 %v3600
      %3614 = vmatpush.bf16.msra.mxu0 %v3599
      %3615 = vmatpush.bf16.msra.mxu0 %v3598
      %3616 = vmatpush.bf16.msra.mxu0 %v3597
      %3617 = vmatpush.bf16.msra.mxu0 %v3596
      %3618 = vmatpush.bf16.msra.mxu0 %v3595
      %3619 = vmatmul.bf16.gmra.mxu0 %v3545
      %v3620 = vpop.f32.mrf.mxu0
      %v3621 = vadd.f32 0.0, %v3620
      %v3622 = vpop.f32.mrf.mxu0
      %3623 = vdwg.mxu0
      %v3624 = vadd.f32 %v3100, %v3621
      %v3625 = vpack.c.bf16 %v3624, %v3624
      %s3626 = scalar_lea.vmem %s10, 384
      %v3627 = vld [vmem:[%s3626] sm:$0xff]
      %v3628 = vld [vmem:[%s3626 + $0x8] sm:$0xff]
      %v3629 = vld [vmem:[%s3626 + $0x10] sm:$0xff]
      %v3630 = vld [vmem:[%s3626 + $0x18] sm:$0xff]
      %v3631 = vld [vmem:[%s3626 + $0x20] sm:$0xff]
      %v3632 = vld [vmem:[%s3626 + $0x28] sm:$0xff]
      %v3633 = vld [vmem:[%s3626 + $0x30] sm:$0xff]
      %v3634 = vld [vmem:[%s3626 + $0x38] sm:$0xff]
      %v3635 = vld [vmem:[%s3626 + $0x40] sm:$0xff]
      %v3636 = vld [vmem:[%s3626 + $0x48] sm:$0xff]
      %v3637 = vld [vmem:[%s3626 + $0x50] sm:$0xff]
      %v3638 = vld [vmem:[%s3626 + $0x58] sm:$0xff]
      %v3639 = vld [vmem:[%s3626 + $0x60] sm:$0xff]
      %v3640 = vld [vmem:[%s3626 + $0x68] sm:$0xff]
      %v3641 = vld [vmem:[%s3626 + $0x70] sm:$0xff]
      %v3642 = vld [vmem:[%s3626 + $0x78] sm:$0xff]
      %s3643 = scalar_lea.vmem %s11, 6
      %v3644 = vld [vmem:[%s3643] sm:$0x3]
      %v3646 = vperm.slane %v3644, 0
      %v3647 = vperm.slane %v3644, 1
      %v3666 = vunpack.c.l.b16 %v3627
      %v3667 = vunpack.c.h.b16 %v3627
      %v3668 = vunpack.c.l.b16 %v3628
      %v3669 = vunpack.c.h.b16 %v3628
      %v3670 = vunpack.c.l.b16 %v3629
      %v3671 = vunpack.c.h.b16 %v3629
      %v3672 = vunpack.c.l.b16 %v3630
      %v3673 = vunpack.c.h.b16 %v3630
      %v3674 = vunpack.c.l.b16 %v3631
      %v3675 = vunpack.c.h.b16 %v3631
      %v3676 = vunpack.c.l.b16 %v3632
      %v3677 = vunpack.c.h.b16 %v3632
      %v3678 = vunpack.c.l.b16 %v3633
      %v3679 = vunpack.c.h.b16 %v3633
      %v3680 = vunpack.c.l.b16 %v3634
      %v3681 = vunpack.c.h.b16 %v3634
      %v3682 = vunpack.c.l.b16 %v3635
      %v3683 = vunpack.c.h.b16 %v3635
      %v3684 = vunpack.c.l.b16 %v3636
      %v3685 = vunpack.c.h.b16 %v3636
      %v3686 = vunpack.c.l.b16 %v3637
      %v3687 = vunpack.c.h.b16 %v3637
      %v3688 = vunpack.c.l.b16 %v3638
      %v3689 = vunpack.c.h.b16 %v3638
      %v3690 = vunpack.c.l.b16 %v3639
      %v3691 = vunpack.c.h.b16 %v3639
      %v3692 = vunpack.c.l.b16 %v3640
      %v3693 = vunpack.c.h.b16 %v3640
      %v3694 = vunpack.c.l.b16 %v3641
      %v3695 = vunpack.c.h.b16 %v3641
      %v3696 = vunpack.c.l.b16 %v3642
      %v3697 = vunpack.c.h.b16 %v3642
      %v3698 = vpack.c.b16 %v3668, %v3666
      %v3699 = vpack.c.b16 %v3669, %v3667
      %v3700 = vpack.c.b16 %v3672, %v3670
      %v3701 = vpack.c.b16 %v3673, %v3671
      %v3702 = vpack.c.b16 %v3676, %v3674
      %v3703 = vpack.c.b16 %v3677, %v3675
      %v3704 = vpack.c.b16 %v3680, %v3678
      %v3705 = vpack.c.b16 %v3681, %v3679
      %v3706 = vpack.c.b16 %v3684, %v3682
      %v3707 = vpack.c.b16 %v3685, %v3683
      %v3708 = vpack.c.b16 %v3688, %v3686
      %v3709 = vpack.c.b16 %v3689, %v3687
      %v3710 = vpack.c.b16 %v3692, %v3690
      %v3711 = vpack.c.b16 %v3693, %v3691
      %v3712 = vpack.c.b16 %v3696, %v3694
      %v3713 = vpack.c.b16 %v3697, %v3695
      %3730 = vmatpush.bf16.msra.mxu0 %v3712
      %3731 = vmatpush.bf16.msra.mxu0 %v3710
      %3732 = vmatpush.bf16.msra.mxu0 %v3708
      %3733 = vmatpush.bf16.msra.mxu0 %v3706
      %3734 = vmatpush.bf16.msra.mxu0 %v3704
      %3735 = vmatpush.bf16.msra.mxu0 %v3702
      %3736 = vmatpush.bf16.msra.mxu0 %v3700
      %3737 = vmatpush.bf16.msra.mxu0 %v3698
      %3738 = vmatmul.bf16.gmra.mxu0 %v3625
      %v3739 = vpop.f32.mrf.mxu0
      %v3740 = vadd.f32 %v3646, %v3739
      %v3741 = vpop.f32.mrf.mxu0
      %3742 = vdwg.mxu0
      %3743 = vmatpush.bf16.msra.mxu0 %v3713
      %3744 = vmatpush.bf16.msra.mxu0 %v3711
      %3745 = vmatpush.bf16.msra.mxu0 %v3709
      %3746 = vmatpush.bf16.msra.mxu0 %v3707
      %3747 = vmatpush.bf16.msra.mxu0 %v3705
      %3748 = vmatpush.bf16.msra.mxu0 %v3703
      %3749 = vmatpush.bf16.msra.mxu0 %v3701
      %3750 = vmatpush.bf16.msra.mxu0 %v3699
      %3751 = vmatmul.bf16.gmra.mxu0 %v3625
      %v3752 = vpop.f32.mrf.mxu0
      %v3753 = vadd.f32 %v3647, %v3752
      %v3754 = vpop.f32.mrf.mxu0
      %3755 = vdwg.mxu0
      %v3756 = vmax.f32 %v3740, 0.0
      %v3757 = vmax.f32 %v3753, 0.0
      %v3758 = vpack.c.bf16 %v3756, %v3756
      %v3759 = vpack.c.bf16 %v3757, %v3757
      %s3760 = scalar_lea.vmem %s12, 384
      %v3761 = vld [vmem:[%s3760] sm:$0xf]
      %v3762 = vld [vmem:[%s3760 + $0x4] sm:$0xf]
      %v3763 = vld [vmem:[%s3760 + $0x8] sm:$0xf]
      %v3764 = vld [vmem:[%s3760 + $0xc] sm:$0xf]
      %v3765 = vld [vmem:[%s3760 + $0x10] sm:$0xf]
      %v3766 = vld [vmem:[%s3760 + $0x14] sm:$0xf]
      %v3767 = vld [vmem:[%s3760 + $0x18] sm:$0xf]
      %v3768 = vld [vmem:[%s3760 + $0x1c] sm:$0xf]
      %v3769 = vld [vmem:[%s3760 + $0x20] sm:$0xf]
      %v3770 = vld [vmem:[%s3760 + $0x24] sm:$0xf]
      %v3771 = vld [vmem:[%s3760 + $0x28] sm:$0xf]
      %v3772 = vld [vmem:[%s3760 + $0x2c] sm:$0xf]
      %v3773 = vld [vmem:[%s3760 + $0x30] sm:$0xf]
      %v3774 = vld [vmem:[%s3760 + $0x34] sm:$0xf]
      %v3775 = vld [vmem:[%s3760 + $0x38] sm:$0xf]
      %v3776 = vld [vmem:[%s3760 + $0x3c] sm:$0xf]
      %v3777 = vld [vmem:[%s3760 + $0x40] sm:$0xf]
      %v3778 = vld [vmem:[%s3760 + $0x44] sm:$0xf]
      %v3779 = vld [vmem:[%s3760 + $0x48] sm:$0xf]
      %v3780 = vld [vmem:[%s3760 + $0x4c] sm:$0xf]
      %v3781 = vld [vmem:[%s3760 + $0x50] sm:$0xf]
      %v3782 = vld [vmem:[%s3760 + $0x54] sm:$0xf]
      %v3783 = vld [vmem:[%s3760 + $0x58] sm:$0xf]
      %v3784 = vld [vmem:[%s3760 + $0x5c] sm:$0xf]
      %v3785 = vld [vmem:[%s3760 + $0x60] sm:$0xf]
      %v3786 = vld [vmem:[%s3760 + $0x64] sm:$0xf]
      %v3787 = vld [vmem:[%s3760 + $0x68] sm:$0xf]
      %v3788 = vld [vmem:[%s3760 + $0x6c] sm:$0xf]
      %v3789 = vld [vmem:[%s3760 + $0x70] sm:$0xf]
      %v3790 = vld [vmem:[%s3760 + $0x74] sm:$0xf]
      %v3791 = vld [vmem:[%s3760 + $0x78] sm:$0xf]
      %v3792 = vld [vmem:[%s3760 + $0x7c] sm:$0xf]
      %v3825 = vunpack.c.l.b16 %v3761
      %v3826 = vunpack.c.l.b16 %v3762
      %v3827 = vunpack.c.l.b16 %v3763
      %v3828 = vunpack.c.l.b16 %v3764
      %v3829 = vunpack.c.l.b16 %v3765
      %v3830 = vunpack.c.l.b16 %v3766
      %v3831 = vunpack.c.l.b16 %v3767
      %v3832 = vunpack.c.l.b16 %v3768
      %v3833 = vunpack.c.l.b16 %v3769
      %v3834 = vunpack.c.l.b16 %v3770
      %v3835 = vunpack.c.l.b16 %v3771
      %v3836 = vunpack.c.l.b16 %v3772
      %v3837 = vunpack.c.l.b16 %v3773
      %v3838 = vunpack.c.l.b16 %v3774
      %v3839 = vunpack.c.l.b16 %v3775
      %v3840 = vunpack.c.l.b16 %v3776
      %v3841 = vunpack.c.l.b16 %v3777
      %v3842 = vunpack.c.l.b16 %v3778
      %v3843 = vunpack.c.l.b16 %v3779
      %v3844 = vunpack.c.l.b16 %v3780
      %v3845 = vunpack.c.l.b16 %v3781
      %v3846 = vunpack.c.l.b16 %v3782
      %v3847 = vunpack.c.l.b16 %v3783
      %v3848 = vunpack.c.l.b16 %v3784
      %v3849 = vunpack.c.l.b16 %v3785
      %v3850 = vunpack.c.l.b16 %v3786
      %v3851 = vunpack.c.l.b16 %v3787
      %v3852 = vunpack.c.l.b16 %v3788
      %v3853 = vunpack.c.l.b16 %v3789
      %v3854 = vunpack.c.l.b16 %v3790
      %v3855 = vunpack.c.l.b16 %v3791
      %v3856 = vunpack.c.l.b16 %v3792
      %v3857 = vpack.c.b16 %v3826, %v3825
      %v3858 = vpack.c.b16 %v3828, %v3827
      %v3859 = vpack.c.b16 %v3830, %v3829
      %v3860 = vpack.c.b16 %v3832, %v3831
      %v3861 = vpack.c.b16 %v3834, %v3833
      %v3862 = vpack.c.b16 %v3836, %v3835
      %v3863 = vpack.c.b16 %v3838, %v3837
      %v3864 = vpack.c.b16 %v3840, %v3839
      %v3865 = vpack.c.b16 %v3842, %v3841
      %v3866 = vpack.c.b16 %v3844, %v3843
      %v3867 = vpack.c.b16 %v3846, %v3845
      %v3868 = vpack.c.b16 %v3848, %v3847
      %v3869 = vpack.c.b16 %v3850, %v3849
      %v3870 = vpack.c.b16 %v3852, %v3851
      %v3871 = vpack.c.b16 %v3854, %v3853
      %v3872 = vpack.c.b16 %v3856, %v3855
      %3889 = vmatpush.bf16.msra.mxu0 %v3864
      %3890 = vmatpush.bf16.msra.mxu0 %v3863
      %3891 = vmatpush.bf16.msra.mxu0 %v3862
      %3892 = vmatpush.bf16.msra.mxu0 %v3861
      %3893 = vmatpush.bf16.msra.mxu0 %v3860
      %3894 = vmatpush.bf16.msra.mxu0 %v3859
      %3895 = vmatpush.bf16.msra.mxu0 %v3858
      %3896 = vmatpush.bf16.msra.mxu0 %v3857
      %3897 = vmatmul.bf16.gmra.mxu0 %v3758
      %v3898 = vpop.f32.mrf.mxu0
      %v3899 = vadd.f32 0.0, %v3898
      %v3900 = vpop.f32.mrf.mxu0
      %3901 = vdwg.mxu0
      %3902 = vmatpush.bf16.msra.mxu0 %v3872
      %3903 = vmatpush.bf16.msra.mxu0 %v3871
      %3904 = vmatpush.bf16.msra.mxu0 %v3870
      %3905 = vmatpush.bf16.msra.mxu0 %v3869
      %3906 = vmatpush.bf16.msra.mxu0 %v3868
      %3907 = vmatpush.bf16.msra.mxu0 %v3867
      %3908 = vmatpush.bf16.msra.mxu0 %v3866
      %3909 = vmatpush.bf16.msra.mxu0 %v3865
      %3910 = vmatmul.bf16.gmra.mxu0 %v3759
      %v3911 = vpop.f32.mrf.mxu0
      %v3912 = vadd.f32 %v3899, %v3911
      %v3913 = vpop.f32.mrf.mxu0
      %3914 = vdwg.mxu0
      %v3915 = vadd.f32 %v3624, %v3912
      %s3916 = scalar_lea.vmem %s13, 3
      %v3917 = vld [vmem:[%s3916] sm:$0x1]
      %v3919 = vperm.slane %v3917, 0
      %v3921 = vadd.f32 %v3915, %v3919
      %v3922 = vpack.c.bf16 %v3921, %v3921
      %v3923 = vld [vmem:[%s14] sm:$0xf]
      %v3924 = vld [vmem:[%s14 + $0x4] sm:$0xf]
      %v3925 = vld [vmem:[%s14 + $0x8] sm:$0xf]
      %v3926 = vld [vmem:[%s14 + $0xc] sm:$0xf]
      %v3927 = vld [vmem:[%s14 + $0x10] sm:$0xf]
      %v3928 = vld [vmem:[%s14 + $0x14] sm:$0xf]
      %v3929 = vld [vmem:[%s14 + $0x18] sm:$0xf]
      %v3930 = vld [vmem:[%s14 + $0x1c] sm:$0xf]
      %v3931 = vld [vmem:[%s14 + $0x20] sm:$0xf]
      %v3932 = vld [vmem:[%s14 + $0x24] sm:$0xf]
      %v3933 = vld [vmem:[%s14 + $0x28] sm:$0xf]
      %v3934 = vld [vmem:[%s14 + $0x2c] sm:$0xf]
      %v3935 = vld [vmem:[%s14 + $0x30] sm:$0xf]
      %v3936 = vld [vmem:[%s14 + $0x34] sm:$0xf]
      %v3937 = vld [vmem:[%s14 + $0x38] sm:$0xf]
      %v3938 = vld [vmem:[%s14 + $0x3c] sm:$0xf]
      %v3939 = vld [vmem:[%s15] sm:$0x1]
      %v3941 = vperm.slane %v3939, 0
      %v3959 = vunpack.c.l.b16 %v3923
      %v3960 = vunpack.c.l.b16 %v3924
      %v3961 = vunpack.c.l.b16 %v3925
      %v3962 = vunpack.c.l.b16 %v3926
      %v3963 = vunpack.c.l.b16 %v3927
      %v3964 = vunpack.c.l.b16 %v3928
      %v3965 = vunpack.c.l.b16 %v3929
      %v3966 = vunpack.c.l.b16 %v3930
      %v3967 = vunpack.c.l.b16 %v3931
      %v3968 = vunpack.c.l.b16 %v3932
      %v3969 = vunpack.c.l.b16 %v3933
      %v3970 = vunpack.c.l.b16 %v3934
      %v3971 = vunpack.c.l.b16 %v3935
      %v3972 = vunpack.c.l.b16 %v3936
      %v3973 = vunpack.c.l.b16 %v3937
      %v3974 = vunpack.c.l.b16 %v3938
      %v3975 = vpack.c.b16 %v3960, %v3959
      %v3976 = vpack.c.b16 %v3962, %v3961
      %v3977 = vpack.c.b16 %v3964, %v3963
      %v3978 = vpack.c.b16 %v3966, %v3965
      %v3979 = vpack.c.b16 %v3968, %v3967
      %v3980 = vpack.c.b16 %v3970, %v3969
      %v3981 = vpack.c.b16 %v3972, %v3971
      %v3982 = vpack.c.b16 %v3974, %v3973
      %3991 = vmatpush.bf16.msra.mxu0 %v3982
      %3992 = vmatpush.bf16.msra.mxu0 %v3981
      %3993 = vmatpush.bf16.msra.mxu0 %v3980
      %3994 = vmatpush.bf16.msra.mxu0 %v3979
      %3995 = vmatpush.bf16.msra.mxu0 %v3978
      %3996 = vmatpush.bf16.msra.mxu0 %v3977
      %3997 = vmatpush.bf16.msra.mxu0 %v3976
      %3998 = vmatpush.bf16.msra.mxu0 %v3975
      %3999 = vmatmul.bf16.gmra.mxu0 %v3922
      %v4000 = vpop.f32.mrf.mxu0
      %v4001 = vadd.f32 %v3941, %v4000
      %v4002 = vpop.f32.mrf.mxu0
      %4003 = vdwg.mxu0
      %4004 = vst.msk [vmem:[%s570] sm:$0xff] %vm604, %v4001
      %p4005 = scmp.lt.s32.totalorder %s27, 1
      %s4006 = scalar_select %p4005, %s27, 1
      %s4007 = smul.addr %s4006, 8
      %s4008 = scalar_lea.vmem %s16, %s4007
      // Predicated region
      $region85: #{_lambda_.1} parent=83 // pred_check
        %p4009 = pneg %p401
      $region86: #{_lambda_.1} parent=83 // pred_check_branch
        %4011 = sbr.rel (%p4009) target = $region88
      $region87: #{_lambda_.1} parent=83 // pred_region
        _
      $region88: #{_lambda_.1} parent=83 // pred_fallthru
        _
    $region84: #{_lambda_.1} parent=5 // pred_fallthru
      _
    %p4012 = scmp.le.s32.totalorder 2, %s22
    // Predicated region
    $region89: #{_lambda_.1} parent=5 // pred_check
      %p4013 = pneg %p4012
    $region90: #{_lambda_.1} parent=5 // pred_check_branch
      %4015 = sbr.rel (%p4013) target = $region92
    $region91: #{_lambda_.1} parent=5 // pred_region
      %s4016 = ssub.s32 %s22, 2
      // Predicated region
      $region93: #{_lambda_.1} parent=91 // pred_check
        %p4017 = pneg %p407
      $region94: #{_lambda_.1} parent=91 // pred_check_branch
        %4019 = sbr.rel (%p4017) target = $region96
      $region95: #{_lambda_.1} parent=91 // pred_region
        %p4020 = scmp.lt.s32.totalorder %s28, 1
        %s4021 = scalar_select %p4020, %s28, 1
        %s4022 = smul.addr %s4021, 8
        %s4023 = scalar_lea.vmem %s16, %s4022
      $region96: #{_lambda_.1} parent=91 // pred_fallthru
        _
    $region92: #{_lambda_.1} parent=5 // pred_fallthru
      _
  $region6: #{_lambda_.1} parent=0 // loop_footer
    %s26 = sadd.s32 1, %s22
  $region7: #{_lambda_.1} parent=0 // loop_footer_branch
    %21 = sbr.rel target = $region3
  $region8: #{_lambda_.1} parent=0 // loop_exit
    _

</llo_original>
